<compile_context>
chip_gen: v7x
topology: tpu7x:2x2x1
jax: 0.10.0
libtpu: 0.0.40
codegen_flags: <defaults>
</compile_context>

<pallas_src>
import functools

import numpy as np
import jax
import jax.numpy as jnp
from jax.experimental import pallas as pl
from jax.experimental.pallas import tpu as pltpu


# ----------------------------- host-side helpers -----------------------------

def _positional_embedding_np(L, d_model):
    pos = np.arange(L, dtype=np.float64)[:, None]
    div = np.exp(np.arange(0, d_model, 2, dtype=np.float64)
                 * (-np.log(10000.0) / d_model))
    pe = np.zeros((L, d_model), dtype=np.float64)
    pe[:, 0::2] = np.sin(pos * div)
    pe[:, 1::2] = np.cos(pos * div)
    return pe.astype(np.float32)


def _head_block_mask_np(H, Lk, D):
    """mask[h*Lk + l, d] = 1 iff column d belongs to head h."""
    E = D // H
    m = np.zeros((H * Lk, D), dtype=np.float32)
    for h in range(H):
        m[h * Lk:(h + 1) * Lk, h * E:(h + 1) * E] = 1.0
    return m


def _causal_bias_np(L, H):
    """(L, H*L) additive bias, 0 where key<=query else -1e9, tiled per head."""
    row = np.arange(L)[:, None]
    col = np.arange(L)[None, :]
    base = np.where(col <= row, 0.0, -1e9).astype(np.float32)
    return np.tile(base, (1, H))


def _unfold_circular(x):
    """Conv1d(kernel=3, circular padding) taps [x[t-1], x[t], x[t+1]] -> (B, L, 3C)."""
    return jnp.concatenate([jnp.roll(x, 1, axis=1), x, jnp.roll(x, -1, axis=1)], axis=-1)


def _pack_slab(entries):
    """Pack (name, 2-D array) pairs into one (rows, 128) f32 slab.
    Every entry is zero-padded to 128 lanes; row offsets are 8-aligned."""
    index = {}
    pieces = []
    cur = 0
    for name, arr in entries:
        arr = jnp.asarray(arr, dtype=jnp.float32)
        r, c = arr.shape
        assert c <= 128, (name, (r, c))
        r_pad = ((r + 7) // 8) * 8
        pieces.append(jnp.pad(arr, ((0, r_pad - r), (0, 128 - c))))
        index[name] = (cur, r, c)
        cur += r_pad
    return jnp.concatenate(pieces, axis=0), index


def _pick_bb(B, L_e, L_d):
    """Batch-block size: fill the MXU M dim (<=256 rows) but keep >=2 grid steps."""
    target = 256
    best = 1
    for bb in range(1, B + 1):
        if B % bb == 0 and bb * max(L_e, L_d) <= target:
            best = bb
    if B >= 2 and B // best < 2:
        cand = [bb for bb in range(1, best) if B % bb == 0 and B // bb >= 2]
        if cand:
            best = max(cand)
    return best


# ----------------------------- fused forward ---------------------------------

def model_forward(params, x_enc, x_mark_enc, x_dec, x_mark_dec, cfg):
    B, L_e, _ = x_enc.shape
    L_d = x_dec.shape[1]
    D = cfg["d_model"]
    H = cfg["n_heads"]
    E = D // H
    pred_len = cfg["pred_len"]
    c_out = cfg["c_out"]
    act = cfg["activation"]
    e_layers = cfg["e_layers"]
    d_layers = cfg["d_layers"]

    # --- tiny XLA prep: circular-conv unfold + concat with the time-mark features
    enc_cat = jnp.concatenate([_unfold_circular(x_enc), x_mark_enc], axis=-1).astype(jnp.float32)
    dec_cat = jnp.concatenate([_unfold_circular(x_dec), x_mark_dec], axis=-1).astype(jnp.float32)
    C_e = enc_cat.shape[-1]
    C_d = dec_cat.shape[-1]

    # --- pack ALL weights + compile-time tables into ONE lane-aligned slab
    scale = 1.0 / float(E) ** 0.5
    entries = []
    add = lambda n, a: entries.append((n, a))
    add("pe_enc", _positional_embedding_np(L_e, D))
    add("pe_dec", _positional_embedding_np(L_d, D))
    add("mask_enc", _head_block_mask_np(H, L_e, D))
    add("mask_dec", _head_block_mask_np(H, L_d, D))
    add("causal_dec", _causal_bias_np(L_d, H))
    add("enc_emb_w", jnp.concatenate([params["enc_tok"], params["enc_temp"]], axis=0))
    add("dec_emb_w", jnp.concatenate([params["dec_tok"], params["dec_temp"]], axis=0))
    add("enc_norm_g", params["enc_norm_g"]); add("enc_norm_b", params["enc_norm_b"])
    add("dec_norm_g", params["dec_norm_g"]); add("dec_norm_b", params["dec_norm_b"])
    add("proj_w", jnp.pad(params["proj_w"], ((0, 0), (0, 128 - c_out))))   # lane-dense out
    add("proj_b", jnp.pad(params["proj_b"], ((0, 0), (0, 128 - c_out))))
    for li, lp in enumerate(params["enc_layers"]):
        pre = f"enc{li}_"
        add(pre + "wqkv", lp["wqkv"].at[:, :D].multiply(scale))   # fold 1/sqrt(E) into Q
        add(pre + "bqkv", lp["bqkv"].at[:, :D].multiply(scale))
        add(pre + "wo", lp["wo"]); add(pre + "bo", lp["bo"])
        add(pre + "w1", lp["w1"]); add(pre + "b1", lp["b1"])
        add(pre + "w2", lp["w2"]); add(pre + "b2", lp["b2"])
        for n in ("n1g", "n1b", "n2g", "n2b"):
            add(pre + n, lp[n])
    for li, lp in enumerate(params["dec_layers"]):
        pre = f"dec{li}_"
        add(pre + "self_wqkv", lp["self_wqkv"].at[:, :D].multiply(scale))
        add(pre + "self_bqkv", lp["self_bqkv"].at[:, :D].multiply(scale))
        add(pre + "self_wo", lp["self_wo"]); add(pre + "self_bo", lp["self_bo"])
        add(pre + "cross_wq", lp["cross_wq"] * scale)
        add(pre + "cross_bq", lp["cross_bq"] * scale)
        add(pre + "cross_wkv", lp["cross_wkv"]); add(pre + "cross_bkv", lp["cross_bkv"])
        add(pre + "cross_wo", lp["cross_wo"]); add(pre + "cross_bo", lp["cross_bo"])
        add(pre + "w1", lp["w1"]); add(pre + "b1", lp["b1"])
        add(pre + "w2", lp["w2"]); add(pre + "b2", lp["b2"])
        for n in ("n1g", "n1b", "n2g", "n2b", "n3g", "n3b"):
            add(pre + n, lp[n])
    slab, index = _pack_slab(entries)

    Bb = _pick_bb(B, L_e, L_d)
    G = B // Bb
    f32, bf16 = jnp.float32, jnp.bfloat16

    def kernel(enc_ref, dec_ref, slab_ref, out_ref):
        def W(name):                       # JIT load of one packed weight, near its use
            off, nr, nc = index[name]
            return slab_ref[off:off + nr, 0:nc]

        def mm(x, w):                      # bf16 MXU operands, f32 accumulation
            return jnp.dot(x.astype(bf16), w.astype(bf16), preferred_element_type=f32)

        def ln(x, gname, bname):           # LayerNorm, eps = 1e-5 (PyTorch default), f32
            mu = jnp.mean(x, axis=-1, keepdims=True)
            xc = x - mu
            var = jnp.mean(xc * xc, axis=-1, keepdims=True)
            return xc * jax.lax.rsqrt(var + 1e-5) * W(gname) + W(bname)

        def attn_core(q, k, v, mask_hd, causal_bias):
            # All heads in one MXU call via block-diagonal K / V (0/1 head mask).
            kbd = jnp.concatenate([k] * H, axis=0) * mask_hd        # (H*Lk, D)
            vbd = jnp.concatenate([v] * H, axis=0) * mask_hd        # (H*Lk, D)
            s = jnp.einsum('qd,kd->qk', q.astype(bf16), kbd.astype(bf16),
                           preferred_element_type=f32)              # (Lq, H*Lk)
            if causal_bias is not None:
                s = s + causal_bias
            m = jnp.max(s, axis=-1, keepdims=True)                  # shift-invariant
            e = jnp.exp(s - m)                                      # f32
            denom = jnp.dot(e, mask_hd, preferred_element_type=f32)  # (Lq, D) per-head sums
            o = jnp.dot(e.astype(bf16), vbd.astype(bf16), preferred_element_type=f32)
            return o * pl.reciprocal(denom, approx=True)            # EUP slot

        def mha(q, k, v, Lq, Lk, mask_name, causal_name):
            mask_hd = W(mask_name)
            cb = W(causal_name) if causal_name is not None else None
            outs = [attn_core(q[b * Lq:(b + 1) * Lq, :],
                              k[b * Lk:(b + 1) * Lk, :],
                              v[b * Lk:(b + 1) * Lk, :], mask_hd, cb)
                    for b in range(Bb)]
            return outs[0] if Bb == 1 else jnp.concatenate(outs, axis=0)

        def self_attn(x, pre, Lq, mask_name, causal_name):
            qkv = mm(x, W(pre + "wqkv")) + W(pre + "bqkv")
            o = mha(qkv[:, 0:D], qkv[:, D:2 * D], qkv[:, 2 * D:3 * D],
                    Lq, Lq, mask_name, causal_name)
            return mm(o, W(pre + "wo")) + W(pre + "bo")

        def cross_attn(x, cross, pre, Lq, Lk, mask_name):
            q = mm(x, W(pre + "wq")) + W(pre + "bq")
            kv = mm(cross, W(pre + "wkv")) + W(pre + "bkv")
            o = mha(q, kv[:, 0:D], kv[:, D:2 * D], Lq, Lk, mask_name, None)
            return mm(o, W(pre + "wo")) + W(pre + "bo")

        def ffn(x, pre):
            y = mm(x, W(pre + "w1")) + W(pre + "b1")
            y = jnp.maximum(y, 0.0) if act == "relu" else jax.nn.gelu(y)
            return mm(y, W(pre + "w2")) + W(pre + "b2")

        # ---------------- encoder ----------------
        xe = enc_ref[0] if Bb == 1 else enc_ref[...].reshape(Bb * L_e, C_e)
        pe = W("pe_enc")
        enc = mm(xe, W("enc_emb_w")) + (pe if Bb == 1 else jnp.concatenate([pe] * Bb, axis=0))
        for li in range(e_layers):
            pre = f"enc{li}_"
            enc = ln(enc + self_attn(enc, pre, L_e, "mask_enc", None),
                     pre + "n1g", pre + "n1b")
            enc = ln(enc + ffn(enc, pre), pre + "n2g", pre + "n2b")
        enc = ln(enc, "enc_norm_g", "enc_norm_b")

        # ---------------- decoder ----------------
        xd = dec_ref[0] if Bb == 1 else dec_ref[...].reshape(Bb * L_d, C_d)
        ped = W("pe_dec")
        dec = mm(xd, W("dec_emb_w")) + (ped if Bb == 1 else jnp.concatenate([ped] * Bb, axis=0))
        for li in range(d_layers):
            pre = f"dec{li}_"
            dec = ln(dec + self_attn(dec, pre + "self_", L_d, "mask_dec", "causal_dec"),
                     pre + "n1g", pre + "n1b")
            dec = ln(dec + cross_attn(dec, enc, pre + "cross_", L_d, L_e, "mask_enc"),
                     pre + "n2g", pre + "n2b")
            dec = ln(dec + ffn(dec, pre), pre + "n3g", pre + "n3b")

        # final LayerNorm + projection only for the last pred_len rows per element
        if Bb == 1:
            tail = dec[L_d - pred_len:, :]
        else:
            tail = jnp.concatenate(
                [dec[b * L_d + L_d - pred_len:(b + 1) * L_d, :] for b in range(Bb)], axis=0)
        tail = ln(tail, "dec_norm_g", "dec_norm_b")
        out = mm(tail, W("proj_w")) + W("proj_b")       # (Bb*pred_len, 128), lane-dense
        if Bb == 1:
            out_ref[0] = out.astype(out_ref.dtype)
        else:
            out_ref[...] = out.reshape(Bb, pred_len, 128).astype(out_ref.dtype)

    out_padded = pl.pallas_call(
        kernel,
        out_shape=jax.ShapeDtypeStruct((B, pred_len, 128), jnp.float32),
        grid=(G,),
        in_specs=[
            pl.BlockSpec((Bb, L_e, C_e), lambda i: (i, 0, 0)),
            pl.BlockSpec((Bb, L_d, C_d), lambda i: (i, 0, 0)),
            pl.BlockSpec(tuple(slab.shape), lambda i: (0, 0)),   # weight slab, fetched once
        ],
        out_specs=pl.BlockSpec((Bb, pred_len, 128), lambda i: (i, 0, 0)),
        compiler_params=pltpu.CompilerParams(dimension_semantics=("parallel",)),
    )(enc_cat, dec_cat, slab)

    return out_padded[:, :, :c_out].astype(x_enc.dtype)


# ----------------------------- parameter init --------------------------------

def _dense(key, shape, scale=0.02):
    return scale * jax.random.normal(key, shape, dtype=jnp.float32)


def _init_mha(key, d_model, prefix=""):
    ks = jax.random.split(key, 4)
    wqkv = jnp.concatenate([_dense(ks[0], (d_model, d_model)),
                            _dense(ks[1], (d_model, d_model)),
                            _dense(ks[2], (d_model, d_model))], axis=1)
    return {prefix + "wqkv": wqkv, prefix + "bqkv": jnp.zeros((1, 3 * d_model)),
            prefix + "wo": _dense(ks[3], (d_model, d_model)),
            prefix + "bo": jnp.zeros((1, d_model))}


def _init_cross(key, d_model):
    ks = jax.random.split(key, 4)
    return {"cross_wq": _dense(ks[0], (d_model, d_model)),
            "cross_bq": jnp.zeros((1, d_model)),
            "cross_wkv": jnp.concatenate([_dense(ks[1], (d_model, d_model)),
                                          _dense(ks[2], (d_model, d_model))], axis=1),
            "cross_bkv": jnp.zeros((1, 2 * d_model)),
            "cross_wo": _dense(ks[3], (d_model, d_model)),
            "cross_bo": jnp.zeros((1, d_model))}


def init_params(key, cfg):
    d_model, d_ff = cfg["d_model"], cfg["d_ff"]
    keys = jax.random.split(key, 8)
    params = {
        "enc_tok": _dense(keys[0], (3 * cfg["enc_in"], d_model)),
        "enc_temp": _dense(keys[1], (cfg["mark_dim"], d_model)),
        "dec_tok": _dense(keys[2], (3 * cfg["dec_in"], d_model)),
        "dec_temp": _dense(keys[3], (cfg["mark_dim"], d_model)),
        "enc_norm_g": jnp.ones((1, d_model)), "enc_norm_b": jnp.zeros((1, d_model)),
        "dec_norm_g": jnp.ones((1, d_model)), "dec_norm_b": jnp.zeros((1, d_model)),
        "proj_w": _dense(keys[4], (d_model, cfg["c_out"])),
        "proj_b": jnp.zeros((1, cfg["c_out"])),
        "enc_layers": [],
        "dec_layers": [],
    }
    ek = jax.random.split(keys[5], cfg["e_layers"])
    for i in range(cfg["e_layers"]):
        sk = jax.random.split(ek[i], 3)
        params["enc_layers"].append({
            **_init_mha(sk[0], d_model),
            "w1": _dense(sk[1], (d_model, d_ff)), "b1": jnp.zeros((1, d_ff)),
            "w2": _dense(sk[2], (d_ff, d_model)), "b2": jnp.zeros((1, d_model)),
            "n1g": jnp.ones((1, d_model)), "n1b": jnp.zeros((1, d_model)),
            "n2g": jnp.ones((1, d_model)), "n2b": jnp.zeros((1, d_model)),
        })
    dk = jax.random.split(keys[6], cfg["d_layers"])
    for i in range(cfg["d_layers"]):
        sk = jax.random.split(dk[i], 4)
        params["dec_layers"].append({
            **_init_mha(sk[0], d_model, "self_"),
            **_init_cross(sk[1], d_model),
            "w1": _dense(sk[2], (d_model, d_ff)), "b1": jnp.zeros((1, d_ff)),
            "w2": _dense(sk[3], (d_ff, d_model)), "b2": jnp.zeros((1, d_model)),
            "n1g": jnp.ones((1, d_model)), "n1b": jnp.zeros((1, d_model)),
            "n2g": jnp.ones((1, d_model)), "n2b": jnp.zeros((1, d_model)),
            "n3g": jnp.ones((1, d_model)), "n3b": jnp.zeros((1, d_model)),
        })
    return params


# --------------------------------- main ---------------------------------------

if __name__ == "__main__":
    cfg = dict(task_name="long_term_forecast",
               seq_len=16, label_len=8, pred_len=8,
               enc_in=4, dec_in=4, c_out=4,
               d_model=32, n_heads=4, d_ff=64,
               e_layers=2, d_layers=1,
               mark_dim=4,          # 'timeF' features for freq='h'
               activation="relu")   # dropout = 0 (eval mode)
    # TODO(synk): only the forecast() task path is implemented (imputation /
    # anomaly_detection / classification branches of the PyTorch Model are unused here).
    # TODO(synk): circular-conv taps are packed in [t-1, t, t+1] order; real PyTorch
    # Conv1d weights (d_model, C_in, 3) would need reordering to this layout.

    key = jax.random.PRNGKey(0)
    kp, k1, k2, k3, k4 = jax.random.split(key, 5)
    params = init_params(kp, cfg)

    B = 2
    x_enc = jax.random.normal(k1, (B, cfg["seq_len"], cfg["enc_in"]), jnp.float32)
    x_mark_enc = jax.random.normal(k2, (B, cfg["seq_len"], cfg["mark_dim"]), jnp.float32)
    dec_len = cfg["label_len"] + cfg["pred_len"]
    x_dec = jax.random.normal(k3, (B, dec_len, cfg["dec_in"]), jnp.float32)
    x_mark_dec = jax.random.normal(k4, (B, dec_len, cfg["mark_dim"]), jnp.float32)

    fwd = jax.jit(functools.partial(model_forward, cfg=cfg))
    out = fwd(params, x_enc, x_mark_enc, x_dec, x_mark_dec)
    out = jax.block_until_ready(out)
    assert out.shape == (B, cfg["pred_len"], cfg["c_out"]), out.shape
    assert bool(jnp.all(jnp.isfinite(out)))
    print("KERNEL_OK")
</pallas_src>

<mosaic_0001>
module attributes {stable_mosaic.version = 11 : i64} {
  func.func @kernel(%arg0: i32, %arg1: memref<1x16x16xf32, #tpu.memory_space<vmem>>, %arg2: memref<1x16x16xf32, #tpu.memory_space<vmem>>, %arg3: memref<1088x128xf32, #tpu.memory_space<vmem>>, %arg4: memref<1x8x128xf32, #tpu.memory_space<vmem>>) attributes {dimension_semantics = [#tpu.dimension_semantics<parallel>], iteration_bounds = array<i64: 2>, scalar_prefetch = 0 : i64, scratch_operands = 0 : i64, tpu.core_type = #tpu.core_type<tc>, window_params = [{transform_indices = @transform_0, window_bounds = array<i64: 1, 16, 16>}, {transform_indices = @transform_1, window_bounds = array<i64: 1, 16, 16>}, {pipeline_mode = #tpu.pipeline_mode<synchronous>, transform_indices = @transform_2, window_bounds = array<i64: 1088, 128>}, {transform_indices = @transform_3, window_bounds = array<i64: 1, 8, 128>}]} {
    %c0 = arith.constant 0 : index
    %c0_0 = arith.constant 0 : index
    %c0_1 = arith.constant 0 : index
    %0 = vector.load %arg1[%c0, %c0_0, %c0_1] : memref<1x16x16xf32, #tpu.memory_space<vmem>>, vector<1x16x16xf32>
    %1 = vector.shape_cast %0 : vector<1x16x16xf32> to vector<16x16xf32>
    %c0_2 = arith.constant 0 : index
    %c0_3 = arith.constant 0 : index
    %2 = vector.load %arg3[%c0_2, %c0_3] : memref<1088x128xf32, #tpu.memory_space<vmem>>, vector<16x32xf32>
    %c176 = arith.constant 176 : index
    %c0_4 = arith.constant 0 : index
    %3 = vector.load %arg3[%c176, %c0_4] : memref<1088x128xf32, #tpu.memory_space<vmem>>, vector<16x32xf32>
    %4 = arith.truncf %1 : vector<16x16xf32> to vector<16x16xbf16>
    %5 = arith.truncf %3 : vector<16x32xf32> to vector<16x32xbf16>
    %cst = arith.constant dense<0.000000e+00> : vector<16x32xf32>
    %6 = tpu.matmul %4, %5, %cst {dimension_numbers = #tpu.dot_dimension_numbers<[1], [0], [0], [1], [0, 0, 1, 1], [], []>} : vector<16x16xbf16>, vector<16x32xbf16>, vector<16x32xf32> -> vector<16x32xf32>
    %7 = arith.addf %6, %2 : vector<16x32xf32>
    %c280 = arith.constant 280 : index
    %c0_5 = arith.constant 0 : index
    %8 = vector.load %arg3[%c280, %c0_5] : memref<1088x128xf32, #tpu.memory_space<vmem>>, vector<32x96xf32>
    %9 = arith.truncf %7 : vector<16x32xf32> to vector<16x32xbf16>
    %10 = arith.truncf %8 : vector<32x96xf32> to vector<32x96xbf16>
    %cst_6 = arith.constant dense<0.000000e+00> : vector<16x96xf32>
    %11 = tpu.matmul %9, %10, %cst_6 {dimension_numbers = #tpu.dot_dimension_numbers<[1], [0], [0], [1], [0, 0, 1, 1], [], []>} : vector<16x32xbf16>, vector<32x96xbf16>, vector<16x96xf32> -> vector<16x96xf32>
    %c312 = arith.constant 312 : index
    %c0_7 = arith.constant 0 : index
    %12 = vector.load %arg3[%c312, %c0_7] : memref<1088x128xf32, #tpu.memory_space<vmem>>, vector<1x96xf32>
    %13 = vector.broadcast %12 : vector<1x96xf32> to vector<16x96xf32>
    %14 = arith.addf %11, %13 : vector<16x96xf32>
    %15 = vector.extract_strided_slice %14 {offsets = [0, 0], sizes = [16, 32], strides = [1, 1]} : vector<16x96xf32> to vector<16x32xf32>
    %16 = vector.extract_strided_slice %14 {offsets = [0, 32], sizes = [16, 32], strides = [1, 1]} : vector<16x96xf32> to vector<16x32xf32>
    %17 = vector.extract_strided_slice %14 {offsets = [0, 64], sizes = [16, 32], strides = [1, 1]} : vector<16x96xf32> to vector<16x32xf32>
    %c32 = arith.constant 32 : index
    %c0_8 = arith.constant 0 : index
    %18 = vector.load %arg3[%c32, %c0_8] : memref<1088x128xf32, #tpu.memory_space<vmem>>, vector<64x32xf32>
    %19 = tpu.concatenate %16, %16, %16, %16 in 0 : vector<16x32xf32>, vector<16x32xf32>, vector<16x32xf32>, vector<16x32xf32> -> vector<64x32xf32>
    %20 = arith.mulf %19, %18 : vector<64x32xf32>
    %21 = tpu.concatenate %17, %17, %17, %17 in 0 : vector<16x32xf32>, vector<16x32xf32>, vector<16x32xf32>, vector<16x32xf32> -> vector<64x32xf32>
    %22 = arith.mulf %21, %18 : vector<64x32xf32>
    %23 = arith.truncf %15 : vector<16x32xf32> to vector<16x32xbf16>
    %24 = arith.truncf %20 : vector<64x32xf32> to vector<64x32xbf16>
    "tpu.trace_start"() <{level = 10 : i32, message = "qd,kd->qk"}> : () -> ()
    %cst_9 = arith.constant dense<0.000000e+00> : vector<16x64xf32>
    %25 = tpu.matmul %23, %24, %cst_9 {dimension_numbers = #tpu.dot_dimension_numbers<[1], [1], [0], [0], [0, 0, 1, 0], [], []>} : vector<16x32xbf16>, vector<64x32xbf16>, vector<16x64xf32> -> vector<16x64xf32>
    "tpu.trace_stop"() : () -> ()
    %cst_10 = arith.constant dense<0xFF800000> : vector<16xf32>
    %26 = vector.multi_reduction <maximumf>, %25, %cst_10 [1] : vector<16x64xf32> to vector<16xf32>
    %27 = vector.shape_cast %26 : vector<16xf32> to vector<16x1xf32>
    %28 = vector.broadcast %27 : vector<16x1xf32> to vector<16x64xf32>
    %29 = arith.subf %25, %28 : vector<16x64xf32>
    %30 = math.exp %29 : vector<16x64xf32>
    %cst_11 = arith.constant dense<0.000000e+00> : vector<16x32xf32>
    %31 = tpu.matmul %30, %18, %cst_11 {dimension_numbers = #tpu.dot_dimension_numbers<[1], [0], [0], [1], [0, 0, 1, 1], [], []>} : vector<16x64xf32>, vector<64x32xf32>, vector<16x32xf32> -> vector<16x32xf32>
    %32 = arith.truncf %30 : vector<16x64xf32> to vector<16x64xbf16>
    %33 = arith.truncf %22 : vector<64x32xf32> to vector<64x32xbf16>
    %cst_12 = arith.constant dense<0.000000e+00> : vector<16x32xf32>
    %34 = tpu.matmul %32, %33, %cst_12 {dimension_numbers = #tpu.dot_dimension_numbers<[1], [0], [0], [1], [0, 0, 1, 1], [], []>} : vector<16x64xbf16>, vector<64x32xbf16>, vector<16x32xf32> -> vector<16x32xf32>
    %35 = tpu.reciprocal %31 {approx = true} : vector<16x32xf32> -> vector<16x32xf32>
    %36 = arith.mulf %34, %35 : vector<16x32xf32>
    %c320 = arith.constant 320 : index
    %c0_13 = arith.constant 0 : index
    %37 = vector.load %arg3[%c320, %c0_13] : memref<1088x128xf32, #tpu.memory_space<vmem>>, vector<32x32xf32>
    %38 = arith.truncf %36 : vector<16x32xf32> to vector<16x32xbf16>
    %39 = arith.truncf %37 : vector<32x32xf32> to vector<32x32xbf16>
    %cst_14 = arith.constant dense<0.000000e+00> : vector<16x32xf32>
    %40 = tpu.matmul %38, %39, %cst_14 {dimension_numbers = #tpu.dot_dimension_numbers<[1], [0], [0], [1], [0, 0, 1, 1], [], []>} : vector<16x32xbf16>, vector<32x32xbf16>, vector<16x32xf32> -> vector<16x32xf32>
    %c352 = arith.constant 352 : index
    %c0_15 = arith.constant 0 : index
    %41 = vector.load %arg3[%c352, %c0_15] : memref<1088x128xf32, #tpu.memory_space<vmem>>, vector<1x32xf32>
    %42 = vector.broadcast %41 : vector<1x32xf32> to vector<16x32xf32>
    %43 = arith.addf %40, %42 : vector<16x32xf32>
    %44 = arith.addf %7, %43 : vector<16x32xf32>
    %cst_16 = arith.constant dense<0.000000e+00> : vector<16xf32>
    %45 = vector.multi_reduction <add>, %44, %cst_16 [1] : vector<16x32xf32> to vector<16xf32>
    %46 = vector.shape_cast %45 : vector<16xf32> to vector<16x1xf32>
    %cst_17 = arith.constant 3.200000e+01 : f32
    %47 = vector.broadcast %cst_17 : f32 to vector<16x1xf32>
    %48 = arith.divf %46, %47 : vector<16x1xf32>
    %49 = vector.broadcast %48 : vector<16x1xf32> to vector<16x32xf32>
    %50 = arith.subf %44, %49 : vector<16x32xf32>
    %51 = arith.mulf %50, %50 : vector<16x32xf32>
    %cst_18 = arith.constant dense<0.000000e+00> : vector<16xf32>
    %52 = vector.multi_reduction <add>, %51, %cst_18 [1] : vector<16x32xf32> to vector<16xf32>
    %53 = vector.shape_cast %52 : vector<16xf32> to vector<16x1xf32>
    %cst_19 = arith.constant 3.200000e+01 : f32
    %54 = vector.broadcast %cst_19 : f32 to vector<16x1xf32>
    %55 = arith.divf %53, %54 : vector<16x1xf32>
    %cst_20 = arith.constant 9.99999974E-6 : f32
    %56 = vector.broadcast %cst_20 : f32 to vector<16x1xf32>
    %57 = arith.addf %55, %56 : vector<16x1xf32>
    %58 = math.rsqrt %57 : vector<16x1xf32>
    %59 = vector.broadcast %58 : vector<16x1xf32> to vector<16x32xf32>
    %60 = arith.mulf %50, %59 : vector<16x32xf32>
    %c472 = arith.constant 472 : index
    %c0_21 = arith.constant 0 : index
    %61 = vector.load %arg3[%c472, %c0_21] : memref<1088x128xf32, #tpu.memory_space<vmem>>, vector<1x32xf32>
    %62 = vector.broadcast %61 : vector<1x32xf32> to vector<16x32xf32>
    %63 = arith.mulf %60, %62 : vector<16x32xf32>
    %c480 = arith.constant 480 : index
    %c0_22 = arith.constant 0 : index
    %64 = vector.load %arg3[%c480, %c0_22] : memref<1088x128xf32, #tpu.memory_space<vmem>>, vector<1x32xf32>
    %65 = vector.broadcast %64 : vector<1x32xf32> to vector<16x32xf32>
    %66 = arith.addf %63, %65 : vector<16x32xf32>
    %c360 = arith.constant 360 : index
    %c0_23 = arith.constant 0 : index
    %67 = vector.load %arg3[%c360, %c0_23] : memref<1088x128xf32, #tpu.memory_space<vmem>>, vector<32x64xf32>
    %68 = arith.truncf %66 : vector<16x32xf32> to vector<16x32xbf16>
    %69 = arith.truncf %67 : vector<32x64xf32> to vector<32x64xbf16>
    %cst_24 = arith.constant dense<0.000000e+00> : vector<16x64xf32>
    %70 = tpu.matmul %68, %69, %cst_24 {dimension_numbers = #tpu.dot_dimension_numbers<[1], [0], [0], [1], [0, 0, 1, 1], [], []>} : vector<16x32xbf16>, vector<32x64xbf16>, vector<16x64xf32> -> vector<16x64xf32>
    %c392 = arith.constant 392 : index
    %c0_25 = arith.constant 0 : index
    %71 = vector.load %arg3[%c392, %c0_25] : memref<1088x128xf32, #tpu.memory_space<vmem>>, vector<1x64xf32>
    %72 = vector.broadcast %71 : vector<1x64xf32> to vector<16x64xf32>
    %73 = arith.addf %70, %72 : vector<16x64xf32>
    %cst_26 = arith.constant 0.000000e+00 : f32
    %74 = vector.broadcast %cst_26 : f32 to vector<16x64xf32>
    %75 = arith.maximumf %73, %74 : vector<16x64xf32>
    %c400 = arith.constant 400 : index
    %c0_27 = arith.constant 0 : index
    %76 = vector.load %arg3[%c400, %c0_27] : memref<1088x128xf32, #tpu.memory_space<vmem>>, vector<64x32xf32>
    %77 = arith.truncf %75 : vector<16x64xf32> to vector<16x64xbf16>
    %78 = arith.truncf %76 : vector<64x32xf32> to vector<64x32xbf16>
    %cst_28 = arith.constant dense<0.000000e+00> : vector<16x32xf32>
    %79 = tpu.matmul %77, %78, %cst_28 {dimension_numbers = #tpu.dot_dimension_numbers<[1], [0], [0], [1], [0, 0, 1, 1], [], []>} : vector<16x64xbf16>, vector<64x32xbf16>, vector<16x32xf32> -> vector<16x32xf32>
    %c464 = arith.constant 464 : index
    %c0_29 = arith.constant 0 : index
    %80 = vector.load %arg3[%c464, %c0_29] : memref<1088x128xf32, #tpu.memory_space<vmem>>, vector<1x32xf32>
    %81 = vector.broadcast %80 : vector<1x32xf32> to vector<16x32xf32>
    %82 = arith.addf %79, %81 : vector<16x32xf32>
    %83 = arith.addf %66, %82 : vector<16x32xf32>
    %cst_30 = arith.constant dense<0.000000e+00> : vector<16xf32>
    %84 = vector.multi_reduction <add>, %83, %cst_30 [1] : vector<16x32xf32> to vector<16xf32>
    %85 = vector.shape_cast %84 : vector<16xf32> to vector<16x1xf32>
    %cst_31 = arith.constant 3.200000e+01 : f32
    %86 = vector.broadcast %cst_31 : f32 to vector<16x1xf32>
    %87 = arith.divf %85, %86 : vector<16x1xf32>
    %88 = vector.broadcast %87 : vector<16x1xf32> to vector<16x32xf32>
    %89 = arith.subf %83, %88 : vector<16x32xf32>
    %90 = arith.mulf %89, %89 : vector<16x32xf32>
    %cst_32 = arith.constant dense<0.000000e+00> : vector<16xf32>
    %91 = vector.multi_reduction <add>, %90, %cst_32 [1] : vector<16x32xf32> to vector<16xf32>
    %92 = vector.shape_cast %91 : vector<16xf32> to vector<16x1xf32>
    %cst_33 = arith.constant 3.200000e+01 : f32
    %93 = vector.broadcast %cst_33 : f32 to vector<16x1xf32>
    %94 = arith.divf %92, %93 : vector<16x1xf32>
    %cst_34 = arith.constant 9.99999974E-6 : f32
    %95 = vector.broadcast %cst_34 : f32 to vector<16x1xf32>
    %96 = arith.addf %94, %95 : vector<16x1xf32>
    %97 = math.rsqrt %96 : vector<16x1xf32>
    %98 = vector.broadcast %97 : vector<16x1xf32> to vector<16x32xf32>
    %99 = arith.mulf %89, %98 : vector<16x32xf32>
    %c488 = arith.constant 488 : index
    %c0_35 = arith.constant 0 : index
    %100 = vector.load %arg3[%c488, %c0_35] : memref<1088x128xf32, #tpu.memory_space<vmem>>, vector<1x32xf32>
    %101 = vector.broadcast %100 : vector<1x32xf32> to vector<16x32xf32>
    %102 = arith.mulf %99, %101 : vector<16x32xf32>
    %c496 = arith.constant 496 : index
    %c0_36 = arith.constant 0 : index
    %103 = vector.load %arg3[%c496, %c0_36] : memref<1088x128xf32, #tpu.memory_space<vmem>>, vector<1x32xf32>
    %104 = vector.broadcast %103 : vector<1x32xf32> to vector<16x32xf32>
    %105 = arith.addf %102, %104 : vector<16x32xf32>
    %c504 = arith.constant 504 : index
    %c0_37 = arith.constant 0 : index
    %106 = vector.load %arg3[%c504, %c0_37] : memref<1088x128xf32, #tpu.memory_space<vmem>>, vector<32x96xf32>
    %107 = arith.truncf %105 : vector<16x32xf32> to vector<16x32xbf16>
    %108 = arith.truncf %106 : vector<32x96xf32> to vector<32x96xbf16>
    %cst_38 = arith.constant dense<0.000000e+00> : vector<16x96xf32>
    %109 = tpu.matmul %107, %108, %cst_38 {dimension_numbers = #tpu.dot_dimension_numbers<[1], [0], [0], [1], [0, 0, 1, 1], [], []>} : vector<16x32xbf16>, vector<32x96xbf16>, vector<16x96xf32> -> vector<16x96xf32>
    %c536 = arith.constant 536 : index
    %c0_39 = arith.constant 0 : index
    %110 = vector.load %arg3[%c536, %c0_39] : memref<1088x128xf32, #tpu.memory_space<vmem>>, vector<1x96xf32>
    %111 = vector.broadcast %110 : vector<1x96xf32> to vector<16x96xf32>
    %112 = arith.addf %109, %111 : vector<16x96xf32>
    %113 = vector.extract_strided_slice %112 {offsets = [0, 0], sizes = [16, 32], strides = [1, 1]} : vector<16x96xf32> to vector<16x32xf32>
    %114 = vector.extract_strided_slice %112 {offsets = [0, 32], sizes = [16, 32], strides = [1, 1]} : vector<16x96xf32> to vector<16x32xf32>
    %115 = vector.extract_strided_slice %112 {offsets = [0, 64], sizes = [16, 32], strides = [1, 1]} : vector<16x96xf32> to vector<16x32xf32>
    %c32_40 = arith.constant 32 : index
    %c0_41 = arith.constant 0 : index
    %116 = vector.load %arg3[%c32_40, %c0_41] : memref<1088x128xf32, #tpu.memory_space<vmem>>, vector<64x32xf32>
    %117 = tpu.concatenate %114, %114, %114, %114 in 0 : vector<16x32xf32>, vector<16x32xf32>, vector<16x32xf32>, vector<16x32xf32> -> vector<64x32xf32>
    %118 = arith.mulf %117, %116 : vector<64x32xf32>
    %119 = tpu.concatenate %115, %115, %115, %115 in 0 : vector<16x32xf32>, vector<16x32xf32>, vector<16x32xf32>, vector<16x32xf32> -> vector<64x32xf32>
    %120 = arith.mulf %119, %116 : vector<64x32xf32>
    %121 = arith.truncf %113 : vector<16x32xf32> to vector<16x32xbf16>
    %122 = arith.truncf %118 : vector<64x32xf32> to vector<64x32xbf16>
    "tpu.trace_start"() <{level = 10 : i32, message = "qd,kd->qk"}> : () -> ()
    %cst_42 = arith.constant dense<0.000000e+00> : vector<16x64xf32>
    %123 = tpu.matmul %121, %122, %cst_42 {dimension_numbers = #tpu.dot_dimension_numbers<[1], [1], [0], [0], [0, 0, 1, 0], [], []>} : vector<16x32xbf16>, vector<64x32xbf16>, vector<16x64xf32> -> vector<16x64xf32>
    "tpu.trace_stop"() : () -> ()
    %cst_43 = arith.constant dense<0xFF800000> : vector<16xf32>
    %124 = vector.multi_reduction <maximumf>, %123, %cst_43 [1] : vector<16x64xf32> to vector<16xf32>
    %125 = vector.shape_cast %124 : vector<16xf32> to vector<16x1xf32>
    %126 = vector.broadcast %125 : vector<16x1xf32> to vector<16x64xf32>
    %127 = arith.subf %123, %126 : vector<16x64xf32>
    %128 = math.exp %127 : vector<16x64xf32>
    %cst_44 = arith.constant dense<0.000000e+00> : vector<16x32xf32>
    %129 = tpu.matmul %128, %116, %cst_44 {dimension_numbers = #tpu.dot_dimension_numbers<[1], [0], [0], [1], [0, 0, 1, 1], [], []>} : vector<16x64xf32>, vector<64x32xf32>, vector<16x32xf32> -> vector<16x32xf32>
    %130 = arith.truncf %128 : vector<16x64xf32> to vector<16x64xbf16>
    %131 = arith.truncf %120 : vector<64x32xf32> to vector<64x32xbf16>
    %cst_45 = arith.constant dense<0.000000e+00> : vector<16x32xf32>
    %132 = tpu.matmul %130, %131, %cst_45 {dimension_numbers = #tpu.dot_dimension_numbers<[1], [0], [0], [1], [0, 0, 1, 1], [], []>} : vector<16x64xbf16>, vector<64x32xbf16>, vector<16x32xf32> -> vector<16x32xf32>
    %133 = tpu.reciprocal %129 {approx = true} : vector<16x32xf32> -> vector<16x32xf32>
    %134 = arith.mulf %132, %133 : vector<16x32xf32>
    %c544 = arith.constant 544 : index
    %c0_46 = arith.constant 0 : index
    %135 = vector.load %arg3[%c544, %c0_46] : memref<1088x128xf32, #tpu.memory_space<vmem>>, vector<32x32xf32>
    %136 = arith.truncf %134 : vector<16x32xf32> to vector<16x32xbf16>
    %137 = arith.truncf %135 : vector<32x32xf32> to vector<32x32xbf16>
    %cst_47 = arith.constant dense<0.000000e+00> : vector<16x32xf32>
    %138 = tpu.matmul %136, %137, %cst_47 {dimension_numbers = #tpu.dot_dimension_numbers<[1], [0], [0], [1], [0, 0, 1, 1], [], []>} : vector<16x32xbf16>, vector<32x32xbf16>, vector<16x32xf32> -> vector<16x32xf32>
    %c576 = arith.constant 576 : index
    %c0_48 = arith.constant 0 : index
    %139 = vector.load %arg3[%c576, %c0_48] : memref<1088x128xf32, #tpu.memory_space<vmem>>, vector<1x32xf32>
    %140 = vector.broadcast %139 : vector<1x32xf32> to vector<16x32xf32>
    %141 = arith.addf %138, %140 : vector<16x32xf32>
    %142 = arith.addf %105, %141 : vector<16x32xf32>
    %cst_49 = arith.constant dense<0.000000e+00> : vector<16xf32>
    %143 = vector.multi_reduction <add>, %142, %cst_49 [1] : vector<16x32xf32> to vector<16xf32>
    %144 = vector.shape_cast %143 : vector<16xf32> to vector<16x1xf32>
    %cst_50 = arith.constant 3.200000e+01 : f32
    %145 = vector.broadcast %cst_50 : f32 to vector<16x1xf32>
    %146 = arith.divf %144, %145 : vector<16x1xf32>
    %147 = vector.broadcast %146 : vector<16x1xf32> to vector<16x32xf32>
    %148 = arith.subf %142, %147 : vector<16x32xf32>
    %149 = arith.mulf %148, %148 : vector<16x32xf32>
    %cst_51 = arith.constant dense<0.000000e+00> : vector<16xf32>
    %150 = vector.multi_reduction <add>, %149, %cst_51 [1] : vector<16x32xf32> to vector<16xf32>
    %151 = vector.shape_cast %150 : vector<16xf32> to vector<16x1xf32>
    %cst_52 = arith.constant 3.200000e+01 : f32
    %152 = vector.broadcast %cst_52 : f32 to vector<16x1xf32>
    %153 = arith.divf %151, %152 : vector<16x1xf32>
    %cst_53 = arith.constant 9.99999974E-6 : f32
    %154 = vector.broadcast %cst_53 : f32 to vector<16x1xf32>
    %155 = arith.addf %153, %154 : vector<16x1xf32>
    %156 = math.rsqrt %155 : vector<16x1xf32>
    %157 = vector.broadcast %156 : vector<16x1xf32> to vector<16x32xf32>
    %158 = arith.mulf %148, %157 : vector<16x32xf32>
    %c696 = arith.constant 696 : index
    %c0_54 = arith.constant 0 : index
    %159 = vector.load %arg3[%c696, %c0_54] : memref<1088x128xf32, #tpu.memory_space<vmem>>, vector<1x32xf32>
    %160 = vector.broadcast %159 : vector<1x32xf32> to vector<16x32xf32>
    %161 = arith.mulf %158, %160 : vector<16x32xf32>
    %c704 = arith.constant 704 : index
    %c0_55 = arith.constant 0 : index
    %162 = vector.load %arg3[%c704, %c0_55] : memref<1088x128xf32, #tpu.memory_space<vmem>>, vector<1x32xf32>
    %163 = vector.broadcast %162 : vector<1x32xf32> to vector<16x32xf32>
    %164 = arith.addf %161, %163 : vector<16x32xf32>
    %c584 = arith.constant 584 : index
    %c0_56 = arith.constant 0 : index
    %165 = vector.load %arg3[%c584, %c0_56] : memref<1088x128xf32, #tpu.memory_space<vmem>>, vector<32x64xf32>
    %166 = arith.truncf %164 : vector<16x32xf32> to vector<16x32xbf16>
    %167 = arith.truncf %165 : vector<32x64xf32> to vector<32x64xbf16>
    %cst_57 = arith.constant dense<0.000000e+00> : vector<16x64xf32>
    %168 = tpu.matmul %166, %167, %cst_57 {dimension_numbers = #tpu.dot_dimension_numbers<[1], [0], [0], [1], [0, 0, 1, 1], [], []>} : vector<16x32xbf16>, vector<32x64xbf16>, vector<16x64xf32> -> vector<16x64xf32>
    %c616 = arith.constant 616 : index
    %c0_58 = arith.constant 0 : index
    %169 = vector.load %arg3[%c616, %c0_58] : memref<1088x128xf32, #tpu.memory_space<vmem>>, vector<1x64xf32>
    %170 = vector.broadcast %169 : vector<1x64xf32> to vector<16x64xf32>
    %171 = arith.addf %168, %170 : vector<16x64xf32>
    %cst_59 = arith.constant 0.000000e+00 : f32
    %172 = vector.broadcast %cst_59 : f32 to vector<16x64xf32>
    %173 = arith.maximumf %171, %172 : vector<16x64xf32>
    %c624 = arith.constant 624 : index
    %c0_60 = arith.constant 0 : index
    %174 = vector.load %arg3[%c624, %c0_60] : memref<1088x128xf32, #tpu.memory_space<vmem>>, vector<64x32xf32>
    %175 = arith.truncf %173 : vector<16x64xf32> to vector<16x64xbf16>
    %176 = arith.truncf %174 : vector<64x32xf32> to vector<64x32xbf16>
    %cst_61 = arith.constant dense<0.000000e+00> : vector<16x32xf32>
    %177 = tpu.matmul %175, %176, %cst_61 {dimension_numbers = #tpu.dot_dimension_numbers<[1], [0], [0], [1], [0, 0, 1, 1], [], []>} : vector<16x64xbf16>, vector<64x32xbf16>, vector<16x32xf32> -> vector<16x32xf32>
    %c688 = arith.constant 688 : index
    %c0_62 = arith.constant 0 : index
    %178 = vector.load %arg3[%c688, %c0_62] : memref<1088x128xf32, #tpu.memory_space<vmem>>, vector<1x32xf32>
    %179 = vector.broadcast %178 : vector<1x32xf32> to vector<16x32xf32>
    %180 = arith.addf %177, %179 : vector<16x32xf32>
    %181 = arith.addf %164, %180 : vector<16x32xf32>
    %cst_63 = arith.constant dense<0.000000e+00> : vector<16xf32>
    %182 = vector.multi_reduction <add>, %181, %cst_63 [1] : vector<16x32xf32> to vector<16xf32>
    %183 = vector.shape_cast %182 : vector<16xf32> to vector<16x1xf32>
    %cst_64 = arith.constant 3.200000e+01 : f32
    %184 = vector.broadcast %cst_64 : f32 to vector<16x1xf32>
    %185 = arith.divf %183, %184 : vector<16x1xf32>
    %186 = vector.broadcast %185 : vector<16x1xf32> to vector<16x32xf32>
    %187 = arith.subf %181, %186 : vector<16x32xf32>
    %188 = arith.mulf %187, %187 : vector<16x32xf32>
    %cst_65 = arith.constant dense<0.000000e+00> : vector<16xf32>
    %189 = vector.multi_reduction <add>, %188, %cst_65 [1] : vector<16x32xf32> to vector<16xf32>
    %190 = vector.shape_cast %189 : vector<16xf32> to vector<16x1xf32>
    %cst_66 = arith.constant 3.200000e+01 : f32
    %191 = vector.broadcast %cst_66 : f32 to vector<16x1xf32>
    %192 = arith.divf %190, %191 : vector<16x1xf32>
    %cst_67 = arith.constant 9.99999974E-6 : f32
    %193 = vector.broadcast %cst_67 : f32 to vector<16x1xf32>
    %194 = arith.addf %192, %193 : vector<16x1xf32>
    %195 = math.rsqrt %194 : vector<16x1xf32>
    %196 = vector.broadcast %195 : vector<16x1xf32> to vector<16x32xf32>
    %197 = arith.mulf %187, %196 : vector<16x32xf32>
    %c712 = arith.constant 712 : index
    %c0_68 = arith.constant 0 : index
    %198 = vector.load %arg3[%c712, %c0_68] : memref<1088x128xf32, #tpu.memory_space<vmem>>, vector<1x32xf32>
    %199 = vector.broadcast %198 : vector<1x32xf32> to vector<16x32xf32>
    %200 = arith.mulf %197, %199 : vector<16x32xf32>
    %c720 = arith.constant 720 : index
    %c0_69 = arith.constant 0 : index
    %201 = vector.load %arg3[%c720, %c0_69] : memref<1088x128xf32, #tpu.memory_space<vmem>>, vector<1x32xf32>
    %202 = vector.broadcast %201 : vector<1x32xf32> to vector<16x32xf32>
    %203 = arith.addf %200, %202 : vector<16x32xf32>
    %cst_70 = arith.constant dense<0.000000e+00> : vector<16xf32>
    %204 = vector.multi_reduction <add>, %203, %cst_70 [1] : vector<16x32xf32> to vector<16xf32>
    %205 = vector.shape_cast %204 : vector<16xf32> to vector<16x1xf32>
    %cst_71 = arith.constant 3.200000e+01 : f32
    %206 = vector.broadcast %cst_71 : f32 to vector<16x1xf32>
    %207 = arith.divf %205, %206 : vector<16x1xf32>
    %208 = vector.broadcast %207 : vector<16x1xf32> to vector<16x32xf32>
    %209 = arith.subf %203, %208 : vector<16x32xf32>
    %210 = arith.mulf %209, %209 : vector<16x32xf32>
    %cst_72 = arith.constant dense<0.000000e+00> : vector<16xf32>
    %211 = vector.multi_reduction <add>, %210, %cst_72 [1] : vector<16x32xf32> to vector<16xf32>
    %212 = vector.shape_cast %211 : vector<16xf32> to vector<16x1xf32>
    %cst_73 = arith.constant 3.200000e+01 : f32
    %213 = vector.broadcast %cst_73 : f32 to vector<16x1xf32>
    %214 = arith.divf %212, %213 : vector<16x1xf32>
    %cst_74 = arith.constant 9.99999974E-6 : f32
    %215 = vector.broadcast %cst_74 : f32 to vector<16x1xf32>
    %216 = arith.addf %214, %215 : vector<16x1xf32>
    %217 = math.rsqrt %216 : vector<16x1xf32>
    %218 = vector.broadcast %217 : vector<16x1xf32> to vector<16x32xf32>
    %219 = arith.mulf %209, %218 : vector<16x32xf32>
    %c208 = arith.constant 208 : index
    %c0_75 = arith.constant 0 : index
    %220 = vector.load %arg3[%c208, %c0_75] : memref<1088x128xf32, #tpu.memory_space<vmem>>, vector<1x32xf32>
    %221 = vector.broadcast %220 : vector<1x32xf32> to vector<16x32xf32>
    %222 = arith.mulf %219, %221 : vector<16x32xf32>
    %c216 = arith.constant 216 : index
    %c0_76 = arith.constant 0 : index
    %223 = vector.load %arg3[%c216, %c0_76] : memref<1088x128xf32, #tpu.memory_space<vmem>>, vector<1x32xf32>
    %224 = vector.broadcast %223 : vector<1x32xf32> to vector<16x32xf32>
    %225 = arith.addf %222, %224 : vector<16x32xf32>
    %c0_77 = arith.constant 0 : index
    %c0_78 = arith.constant 0 : index
    %c0_79 = arith.constant 0 : index
    %226 = vector.load %arg2[%c0_77, %c0_78, %c0_79] : memref<1x16x16xf32, #tpu.memory_space<vmem>>, vector<1x16x16xf32>
    %227 = vector.shape_cast %226 : vector<1x16x16xf32> to vector<16x16xf32>
    %c16 = arith.constant 16 : index
    %c0_80 = arith.constant 0 : index
    %228 = vector.load %arg3[%c16, %c0_80] : memref<1088x128xf32, #tpu.memory_space<vmem>>, vector<16x32xf32>
    %c192 = arith.constant 192 : index
    %c0_81 = arith.constant 0 : index
    %229 = vector.load %arg3[%c192, %c0_81] : memref<1088x128xf32, #tpu.memory_space<vmem>>, vector<16x32xf32>
    %230 = arith.truncf %227 : vector<16x16xf32> to vector<16x16xbf16>
    %231 = arith.truncf %229 : vector<16x32xf32> to vector<16x32xbf16>
    %cst_82 = arith.constant dense<0.000000e+00> : vector<16x32xf32>
    %232 = tpu.matmul %230, %231, %cst_82 {dimension_numbers = #tpu.dot_dimension_numbers<[1], [0], [0], [1], [0, 0, 1, 1], [], []>} : vector<16x16xbf16>, vector<16x32xbf16>, vector<16x32xf32> -> vector<16x32xf32>
    %233 = arith.addf %232, %228 : vector<16x32xf32>
    %c728 = arith.constant 728 : index
    %c0_83 = arith.constant 0 : index
    %234 = vector.load %arg3[%c728, %c0_83] : memref<1088x128xf32, #tpu.memory_space<vmem>>, vector<32x96xf32>
    %235 = arith.truncf %233 : vector<16x32xf32> to vector<16x32xbf16>
    %236 = arith.truncf %234 : vector<32x96xf32> to vector<32x96xbf16>
    %cst_84 = arith.constant dense<0.000000e+00> : vector<16x96xf32>
    %237 = tpu.matmul %235, %236, %cst_84 {dimension_numbers = #tpu.dot_dimension_numbers<[1], [0], [0], [1], [0, 0, 1, 1], [], []>} : vector<16x32xbf16>, vector<32x96xbf16>, vector<16x96xf32> -> vector<16x96xf32>
    %c760 = arith.constant 760 : index
    %c0_85 = arith.constant 0 : index
    %238 = vector.load %arg3[%c760, %c0_85] : memref<1088x128xf32, #tpu.memory_space<vmem>>, vector<1x96xf32>
    %239 = vector.broadcast %238 : vector<1x96xf32> to vector<16x96xf32>
    %240 = arith.addf %237, %239 : vector<16x96xf32>
    %241 = vector.extract_strided_slice %240 {offsets = [0, 0], sizes = [16, 32], strides = [1, 1]} : vector<16x96xf32> to vector<16x32xf32>
    %242 = vector.extract_strided_slice %240 {offsets = [0, 32], sizes = [16, 32], strides = [1, 1]} : vector<16x96xf32> to vector<16x32xf32>
    %243 = vector.extract_strided_slice %240 {offsets = [0, 64], sizes = [16, 32], strides = [1, 1]} : vector<16x96xf32> to vector<16x32xf32>
    %c96 = arith.constant 96 : index
    %c0_86 = arith.constant 0 : index
    %244 = vector.load %arg3[%c96, %c0_86] : memref<1088x128xf32, #tpu.memory_space<vmem>>, vector<64x32xf32>
    %c160 = arith.constant 160 : index
    %c0_87 = arith.constant 0 : index
    %245 = vector.load %arg3[%c160, %c0_87] : memref<1088x128xf32, #tpu.memory_space<vmem>>, vector<16x64xf32>
    %246 = tpu.concatenate %242, %242, %242, %242 in 0 : vector<16x32xf32>, vector<16x32xf32>, vector<16x32xf32>, vector<16x32xf32> -> vector<64x32xf32>
    %247 = arith.mulf %246, %244 : vector<64x32xf32>
    %248 = tpu.concatenate %243, %243, %243, %243 in 0 : vector<16x32xf32>, vector<16x32xf32>, vector<16x32xf32>, vector<16x32xf32> -> vector<64x32xf32>
    %249 = arith.mulf %248, %244 : vector<64x32xf32>
    %250 = arith.truncf %241 : vector<16x32xf32> to vector<16x32xbf16>
    %251 = arith.truncf %247 : vector<64x32xf32> to vector<64x32xbf16>
    "tpu.trace_start"() <{level = 10 : i32, message = "qd,kd->qk"}> : () -> ()
    %cst_88 = arith.constant dense<0.000000e+00> : vector<16x64xf32>
    %252 = tpu.matmul %250, %251, %cst_88 {dimension_numbers = #tpu.dot_dimension_numbers<[1], [1], [0], [0], [0, 0, 1, 0], [], []>} : vector<16x32xbf16>, vector<64x32xbf16>, vector<16x64xf32> -> vector<16x64xf32>
    "tpu.trace_stop"() : () -> ()
    %253 = arith.addf %252, %245 : vector<16x64xf32>
    %cst_89 = arith.constant dense<0xFF800000> : vector<16xf32>
    %254 = vector.multi_reduction <maximumf>, %253, %cst_89 [1] : vector<16x64xf32> to vector<16xf32>
    %255 = vector.shape_cast %254 : vector<16xf32> to vector<16x1xf32>
    %256 = vector.broadcast %255 : vector<16x1xf32> to vector<16x64xf32>
    %257 = arith.subf %253, %256 : vector<16x64xf32>
    %258 = math.exp %257 : vector<16x64xf32>
    %cst_90 = arith.constant dense<0.000000e+00> : vector<16x32xf32>
    %259 = tpu.matmul %258, %244, %cst_90 {dimension_numbers = #tpu.dot_dimension_numbers<[1], [0], [0], [1], [0, 0, 1, 1], [], []>} : vector<16x64xf32>, vector<64x32xf32>, vector<16x32xf32> -> vector<16x32xf32>
    %260 = arith.truncf %258 : vector<16x64xf32> to vector<16x64xbf16>
    %261 = arith.truncf %249 : vector<64x32xf32> to vector<64x32xbf16>
    %cst_91 = arith.constant dense<0.000000e+00> : vector<16x32xf32>
    %262 = tpu.matmul %260, %261, %cst_91 {dimension_numbers = #tpu.dot_dimension_numbers<[1], [0], [0], [1], [0, 0, 1, 1], [], []>} : vector<16x64xbf16>, vector<64x32xbf16>, vector<16x32xf32> -> vector<16x32xf32>
    %263 = tpu.reciprocal %259 {approx = true} : vector<16x32xf32> -> vector<16x32xf32>
    %264 = arith.mulf %262, %263 : vector<16x32xf32>
    %c768 = arith.constant 768 : index
    %c0_92 = arith.constant 0 : index
    %265 = vector.load %arg3[%c768, %c0_92] : memref<1088x128xf32, #tpu.memory_space<vmem>>, vector<32x32xf32>
    %266 = arith.truncf %264 : vector<16x32xf32> to vector<16x32xbf16>
    %267 = arith.truncf %265 : vector<32x32xf32> to vector<32x32xbf16>
    %cst_93 = arith.constant dense<0.000000e+00> : vector<16x32xf32>
    %268 = tpu.matmul %266, %267, %cst_93 {dimension_numbers = #tpu.dot_dimension_numbers<[1], [0], [0], [1], [0, 0, 1, 1], [], []>} : vector<16x32xbf16>, vector<32x32xbf16>, vector<16x32xf32> -> vector<16x32xf32>
    %c800 = arith.constant 800 : index
    %c0_94 = arith.constant 0 : index
    %269 = vector.load %arg3[%c800, %c0_94] : memref<1088x128xf32, #tpu.memory_space<vmem>>, vector<1x32xf32>
    %270 = vector.broadcast %269 : vector<1x32xf32> to vector<16x32xf32>
    %271 = arith.addf %268, %270 : vector<16x32xf32>
    %272 = arith.addf %233, %271 : vector<16x32xf32>
    %cst_95 = arith.constant dense<0.000000e+00> : vector<16xf32>
    %273 = vector.multi_reduction <add>, %272, %cst_95 [1] : vector<16x32xf32> to vector<16xf32>
    %274 = vector.shape_cast %273 : vector<16xf32> to vector<16x1xf32>
    %cst_96 = arith.constant 3.200000e+01 : f32
    %275 = vector.broadcast %cst_96 : f32 to vector<16x1xf32>
    %276 = arith.divf %274, %275 : vector<16x1xf32>
    %277 = vector.broadcast %276 : vector<16x1xf32> to vector<16x32xf32>
    %278 = arith.subf %272, %277 : vector<16x32xf32>
    %279 = arith.mulf %278, %278 : vector<16x32xf32>
    %cst_97 = arith.constant dense<0.000000e+00> : vector<16xf32>
    %280 = vector.multi_reduction <add>, %279, %cst_97 [1] : vector<16x32xf32> to vector<16xf32>
    %281 = vector.shape_cast %280 : vector<16xf32> to vector<16x1xf32>
    %cst_98 = arith.constant 3.200000e+01 : f32
    %282 = vector.broadcast %cst_98 : f32 to vector<16x1xf32>
    %283 = arith.divf %281, %282 : vector<16x1xf32>
    %cst_99 = arith.constant 9.99999974E-6 : f32
    %284 = vector.broadcast %cst_99 : f32 to vector<16x1xf32>
    %285 = arith.addf %283, %284 : vector<16x1xf32>
    %286 = math.rsqrt %285 : vector<16x1xf32>
    %287 = vector.broadcast %286 : vector<16x1xf32> to vector<16x32xf32>
    %288 = arith.mulf %278, %287 : vector<16x32xf32>
    %c1040 = arith.constant 1040 : index
    %c0_100 = arith.constant 0 : index
    %289 = vector.load %arg3[%c1040, %c0_100] : memref<1088x128xf32, #tpu.memory_space<vmem>>, vector<1x32xf32>
    %290 = vector.broadcast %289 : vector<1x32xf32> to vector<16x32xf32>
    %291 = arith.mulf %288, %290 : vector<16x32xf32>
    %c1048 = arith.constant 1048 : index
    %c0_101 = arith.constant 0 : index
    %292 = vector.load %arg3[%c1048, %c0_101] : memref<1088x128xf32, #tpu.memory_space<vmem>>, vector<1x32xf32>
    %293 = vector.broadcast %292 : vector<1x32xf32> to vector<16x32xf32>
    %294 = arith.addf %291, %293 : vector<16x32xf32>
    %c808 = arith.constant 808 : index
    %c0_102 = arith.constant 0 : index
    %295 = vector.load %arg3[%c808, %c0_102] : memref<1088x128xf32, #tpu.memory_space<vmem>>, vector<32x32xf32>
    %296 = arith.truncf %294 : vector<16x32xf32> to vector<16x32xbf16>
    %297 = arith.truncf %295 : vector<32x32xf32> to vector<32x32xbf16>
    %cst_103 = arith.constant dense<0.000000e+00> : vector<16x32xf32>
    %298 = tpu.matmul %296, %297, %cst_103 {dimension_numbers = #tpu.dot_dimension_numbers<[1], [0], [0], [1], [0, 0, 1, 1], [], []>} : vector<16x32xbf16>, vector<32x32xbf16>, vector<16x32xf32> -> vector<16x32xf32>
    %c840 = arith.constant 840 : index
    %c0_104 = arith.constant 0 : index
    %299 = vector.load %arg3[%c840, %c0_104] : memref<1088x128xf32, #tpu.memory_space<vmem>>, vector<1x32xf32>
    %300 = vector.broadcast %299 : vector<1x32xf32> to vector<16x32xf32>
    %301 = arith.addf %298, %300 : vector<16x32xf32>
    %c848 = arith.constant 848 : index
    %c0_105 = arith.constant 0 : index
    %302 = vector.load %arg3[%c848, %c0_105] : memref<1088x128xf32, #tpu.memory_space<vmem>>, vector<32x64xf32>
    %303 = arith.truncf %225 : vector<16x32xf32> to vector<16x32xbf16>
    %304 = arith.truncf %302 : vector<32x64xf32> to vector<32x64xbf16>
    %cst_106 = arith.constant dense<0.000000e+00> : vector<16x64xf32>
    %305 = tpu.matmul %303, %304, %cst_106 {dimension_numbers = #tpu.dot_dimension_numbers<[1], [0], [0], [1], [0, 0, 1, 1], [], []>} : vector<16x32xbf16>, vector<32x64xbf16>, vector<16x64xf32> -> vector<16x64xf32>
    %c880 = arith.constant 880 : index
    %c0_107 = arith.constant 0 : index
    %306 = vector.load %arg3[%c880, %c0_107] : memref<1088x128xf32, #tpu.memory_space<vmem>>, vector<1x64xf32>
    %307 = vector.broadcast %306 : vector<1x64xf32> to vector<16x64xf32>
    %308 = arith.addf %305, %307 : vector<16x64xf32>
    %309 = vector.extract_strided_slice %308 {offsets = [0, 0], sizes = [16, 32], strides = [1, 1]} : vector<16x64xf32> to vector<16x32xf32>
    %310 = vector.extract_strided_slice %308 {offsets = [0, 32], sizes = [16, 32], strides = [1, 1]} : vector<16x64xf32> to vector<16x32xf32>
    %c32_108 = arith.constant 32 : index
    %c0_109 = arith.constant 0 : index
    %311 = vector.load %arg3[%c32_108, %c0_109] : memref<1088x128xf32, #tpu.memory_space<vmem>>, vector<64x32xf32>
    %312 = tpu.concatenate %309, %309, %309, %309 in 0 : vector<16x32xf32>, vector<16x32xf32>, vector<16x32xf32>, vector<16x32xf32> -> vector<64x32xf32>
    %313 = arith.mulf %312, %311 : vector<64x32xf32>
    %314 = tpu.concatenate %310, %310, %310, %310 in 0 : vector<16x32xf32>, vector<16x32xf32>, vector<16x32xf32>, vector<16x32xf32> -> vector<64x32xf32>
    %315 = arith.mulf %314, %311 : vector<64x32xf32>
    %316 = arith.truncf %301 : vector<16x32xf32> to vector<16x32xbf16>
    %317 = arith.truncf %313 : vector<64x32xf32> to vector<64x32xbf16>
    "tpu.trace_start"() <{level = 10 : i32, message = "qd,kd->qk"}> : () -> ()
    %cst_110 = arith.constant dense<0.000000e+00> : vector<16x64xf32>
    %318 = tpu.matmul %316, %317, %cst_110 {dimension_numbers = #tpu.dot_dimension_numbers<[1], [1], [0], [0], [0, 0, 1, 0], [], []>} : vector<16x32xbf16>, vector<64x32xbf16>, vector<16x64xf32> -> vector<16x64xf32>
    "tpu.trace_stop"() : () -> ()
    %cst_111 = arith.constant dense<0xFF800000> : vector<16xf32>
    %319 = vector.multi_reduction <maximumf>, %318, %cst_111 [1] : vector<16x64xf32> to vector<16xf32>
    %320 = vector.shape_cast %319 : vector<16xf32> to vector<16x1xf32>
    %321 = vector.broadcast %320 : vector<16x1xf32> to vector<16x64xf32>
    %322 = arith.subf %318, %321 : vector<16x64xf32>
    %323 = math.exp %322 : vector<16x64xf32>
    %cst_112 = arith.constant dense<0.000000e+00> : vector<16x32xf32>
    %324 = tpu.matmul %323, %311, %cst_112 {dimension_numbers = #tpu.dot_dimension_numbers<[1], [0], [0], [1], [0, 0, 1, 1], [], []>} : vector<16x64xf32>, vector<64x32xf32>, vector<16x32xf32> -> vector<16x32xf32>
    %325 = arith.truncf %323 : vector<16x64xf32> to vector<16x64xbf16>
    %326 = arith.truncf %315 : vector<64x32xf32> to vector<64x32xbf16>
    %cst_113 = arith.constant dense<0.000000e+00> : vector<16x32xf32>
    %327 = tpu.matmul %325, %326, %cst_113 {dimension_numbers = #tpu.dot_dimension_numbers<[1], [0], [0], [1], [0, 0, 1, 1], [], []>} : vector<16x64xbf16>, vector<64x32xbf16>, vector<16x32xf32> -> vector<16x32xf32>
    %328 = tpu.reciprocal %324 {approx = true} : vector<16x32xf32> -> vector<16x32xf32>
    %329 = arith.mulf %327, %328 : vector<16x32xf32>
    %c888 = arith.constant 888 : index
    %c0_114 = arith.constant 0 : index
    %330 = vector.load %arg3[%c888, %c0_114] : memref<1088x128xf32, #tpu.memory_space<vmem>>, vector<32x32xf32>
    %331 = arith.truncf %329 : vector<16x32xf32> to vector<16x32xbf16>
    %332 = arith.truncf %330 : vector<32x32xf32> to vector<32x32xbf16>
    %cst_115 = arith.constant dense<0.000000e+00> : vector<16x32xf32>
    %333 = tpu.matmul %331, %332, %cst_115 {dimension_numbers = #tpu.dot_dimension_numbers<[1], [0], [0], [1], [0, 0, 1, 1], [], []>} : vector<16x32xbf16>, vector<32x32xbf16>, vector<16x32xf32> -> vector<16x32xf32>
    %c920 = arith.constant 920 : index
    %c0_116 = arith.constant 0 : index
    %334 = vector.load %arg3[%c920, %c0_116] : memref<1088x128xf32, #tpu.memory_space<vmem>>, vector<1x32xf32>
    %335 = vector.broadcast %334 : vector<1x32xf32> to vector<16x32xf32>
    %336 = arith.addf %333, %335 : vector<16x32xf32>
    %337 = arith.addf %294, %336 : vector<16x32xf32>
    %cst_117 = arith.constant dense<0.000000e+00> : vector<16xf32>
    %338 = vector.multi_reduction <add>, %337, %cst_117 [1] : vector<16x32xf32> to vector<16xf32>
    %339 = vector.shape_cast %338 : vector<16xf32> to vector<16x1xf32>
    %cst_118 = arith.constant 3.200000e+01 : f32
    %340 = vector.broadcast %cst_118 : f32 to vector<16x1xf32>
    %341 = arith.divf %339, %340 : vector<16x1xf32>
    %342 = vector.broadcast %341 : vector<16x1xf32> to vector<16x32xf32>
    %343 = arith.subf %337, %342 : vector<16x32xf32>
    %344 = arith.mulf %343, %343 : vector<16x32xf32>
    %cst_119 = arith.constant dense<0.000000e+00> : vector<16xf32>
    %345 = vector.multi_reduction <add>, %344, %cst_119 [1] : vector<16x32xf32> to vector<16xf32>
    %346 = vector.shape_cast %345 : vector<16xf32> to vector<16x1xf32>
    %cst_120 = arith.constant 3.200000e+01 : f32
    %347 = vector.broadcast %cst_120 : f32 to vector<16x1xf32>
    %348 = arith.divf %346, %347 : vector<16x1xf32>
    %cst_121 = arith.constant 9.99999974E-6 : f32
    %349 = vector.broadcast %cst_121 : f32 to vector<16x1xf32>
    %350 = arith.addf %348, %349 : vector<16x1xf32>
    %351 = math.rsqrt %350 : vector<16x1xf32>
    %352 = vector.broadcast %351 : vector<16x1xf32> to vector<16x32xf32>
    %353 = arith.mulf %343, %352 : vector<16x32xf32>
    %c1056 = arith.constant 1056 : index
    %c0_122 = arith.constant 0 : index
    %354 = vector.load %arg3[%c1056, %c0_122] : memref<1088x128xf32, #tpu.memory_space<vmem>>, vector<1x32xf32>
    %355 = vector.broadcast %354 : vector<1x32xf32> to vector<16x32xf32>
    %356 = arith.mulf %353, %355 : vector<16x32xf32>
    %c1064 = arith.constant 1064 : index
    %c0_123 = arith.constant 0 : index
    %357 = vector.load %arg3[%c1064, %c0_123] : memref<1088x128xf32, #tpu.memory_space<vmem>>, vector<1x32xf32>
    %358 = vector.broadcast %357 : vector<1x32xf32> to vector<16x32xf32>
    %359 = arith.addf %356, %358 : vector<16x32xf32>
    %c928 = arith.constant 928 : index
    %c0_124 = arith.constant 0 : index
    %360 = vector.load %arg3[%c928, %c0_124] : memref<1088x128xf32, #tpu.memory_space<vmem>>, vector<32x64xf32>
    %361 = arith.truncf %359 : vector<16x32xf32> to vector<16x32xbf16>
    %362 = arith.truncf %360 : vector<32x64xf32> to vector<32x64xbf16>
    %cst_125 = arith.constant dense<0.000000e+00> : vector<16x64xf32>
    %363 = tpu.matmul %361, %362, %cst_125 {dimension_numbers = #tpu.dot_dimension_numbers<[1], [0], [0], [1], [0, 0, 1, 1], [], []>} : vector<16x32xbf16>, vector<32x64xbf16>, vector<16x64xf32> -> vector<16x64xf32>
    %c960 = arith.constant 960 : index
    %c0_126 = arith.constant 0 : index
    %364 = vector.load %arg3[%c960, %c0_126] : memref<1088x128xf32, #tpu.memory_space<vmem>>, vector<1x64xf32>
    %365 = vector.broadcast %364 : vector<1x64xf32> to vector<16x64xf32>
    %366 = arith.addf %363, %365 : vector<16x64xf32>
    %cst_127 = arith.constant 0.000000e+00 : f32
    %367 = vector.broadcast %cst_127 : f32 to vector<16x64xf32>
    %368 = arith.maximumf %366, %367 : vector<16x64xf32>
    %c968 = arith.constant 968 : index
    %c0_128 = arith.constant 0 : index
    %369 = vector.load %arg3[%c968, %c0_128] : memref<1088x128xf32, #tpu.memory_space<vmem>>, vector<64x32xf32>
    %370 = arith.truncf %368 : vector<16x64xf32> to vector<16x64xbf16>
    %371 = arith.truncf %369 : vector<64x32xf32> to vector<64x32xbf16>
    %cst_129 = arith.constant dense<0.000000e+00> : vector<16x32xf32>
    %372 = tpu.matmul %370, %371, %cst_129 {dimension_numbers = #tpu.dot_dimension_numbers<[1], [0], [0], [1], [0, 0, 1, 1], [], []>} : vector<16x64xbf16>, vector<64x32xbf16>, vector<16x32xf32> -> vector<16x32xf32>
    %c1032 = arith.constant 1032 : index
    %c0_130 = arith.constant 0 : index
    %373 = vector.load %arg3[%c1032, %c0_130] : memref<1088x128xf32, #tpu.memory_space<vmem>>, vector<1x32xf32>
    %374 = vector.broadcast %373 : vector<1x32xf32> to vector<16x32xf32>
    %375 = arith.addf %372, %374 : vector<16x32xf32>
    %376 = arith.addf %359, %375 : vector<16x32xf32>
    %cst_131 = arith.constant dense<0.000000e+00> : vector<16xf32>
    %377 = vector.multi_reduction <add>, %376, %cst_131 [1] : vector<16x32xf32> to vector<16xf32>
    %378 = vector.shape_cast %377 : vector<16xf32> to vector<16x1xf32>
    %cst_132 = arith.constant 3.200000e+01 : f32
    %379 = vector.broadcast %cst_132 : f32 to vector<16x1xf32>
    %380 = arith.divf %378, %379 : vector<16x1xf32>
    %381 = vector.broadcast %380 : vector<16x1xf32> to vector<16x32xf32>
    %382 = arith.subf %376, %381 : vector<16x32xf32>
    %383 = arith.mulf %382, %382 : vector<16x32xf32>
    %cst_133 = arith.constant dense<0.000000e+00> : vector<16xf32>
    %384 = vector.multi_reduction <add>, %383, %cst_133 [1] : vector<16x32xf32> to vector<16xf32>
    %385 = vector.shape_cast %384 : vector<16xf32> to vector<16x1xf32>
    %cst_134 = arith.constant 3.200000e+01 : f32
    %386 = vector.broadcast %cst_134 : f32 to vector<16x1xf32>
    %387 = arith.divf %385, %386 : vector<16x1xf32>
    %cst_135 = arith.constant 9.99999974E-6 : f32
    %388 = vector.broadcast %cst_135 : f32 to vector<16x1xf32>
    %389 = arith.addf %387, %388 : vector<16x1xf32>
    %390 = math.rsqrt %389 : vector<16x1xf32>
    %391 = vector.broadcast %390 : vector<16x1xf32> to vector<16x32xf32>
    %392 = arith.mulf %382, %391 : vector<16x32xf32>
    %c1072 = arith.constant 1072 : index
    %c0_136 = arith.constant 0 : index
    %393 = vector.load %arg3[%c1072, %c0_136] : memref<1088x128xf32, #tpu.memory_space<vmem>>, vector<1x32xf32>
    %394 = vector.broadcast %393 : vector<1x32xf32> to vector<16x32xf32>
    %395 = arith.mulf %392, %394 : vector<16x32xf32>
    %c1080 = arith.constant 1080 : index
    %c0_137 = arith.constant 0 : index
    %396 = vector.load %arg3[%c1080, %c0_137] : memref<1088x128xf32, #tpu.memory_space<vmem>>, vector<1x32xf32>
    %397 = vector.broadcast %396 : vector<1x32xf32> to vector<16x32xf32>
    %398 = arith.addf %395, %397 : vector<16x32xf32>
    %399 = vector.extract_strided_slice %398 {offsets = [8, 0], sizes = [8, 32], strides = [1, 1]} : vector<16x32xf32> to vector<8x32xf32>
    %cst_138 = arith.constant dense<0.000000e+00> : vector<8xf32>
    %400 = vector.multi_reduction <add>, %399, %cst_138 [1] : vector<8x32xf32> to vector<8xf32>
    %401 = vector.shape_cast %400 : vector<8xf32> to vector<8x1xf32>
    %cst_139 = arith.constant 3.200000e+01 : f32
    %402 = vector.broadcast %cst_139 : f32 to vector<8x1xf32>
    %403 = arith.divf %401, %402 : vector<8x1xf32>
    %404 = vector.broadcast %403 : vector<8x1xf32> to vector<8x32xf32>
    %405 = arith.subf %399, %404 : vector<8x32xf32>
    %406 = arith.mulf %405, %405 : vector<8x32xf32>
    %cst_140 = arith.constant dense<0.000000e+00> : vector<8xf32>
    %407 = vector.multi_reduction <add>, %406, %cst_140 [1] : vector<8x32xf32> to vector<8xf32>
    %408 = vector.shape_cast %407 : vector<8xf32> to vector<8x1xf32>
    %cst_141 = arith.constant 3.200000e+01 : f32
    %409 = vector.broadcast %cst_141 : f32 to vector<8x1xf32>
    %410 = arith.divf %408, %409 : vector<8x1xf32>
    %cst_142 = arith.constant 9.99999974E-6 : f32
    %411 = vector.broadcast %cst_142 : f32 to vector<8x1xf32>
    %412 = arith.addf %410, %411 : vector<8x1xf32>
    %413 = math.rsqrt %412 : vector<8x1xf32>
    %414 = vector.broadcast %413 : vector<8x1xf32> to vector<8x32xf32>
    %415 = arith.mulf %405, %414 : vector<8x32xf32>
    %c224 = arith.constant 224 : index
    %c0_143 = arith.constant 0 : index
    %416 = vector.load %arg3[%c224, %c0_143] : memref<1088x128xf32, #tpu.memory_space<vmem>>, vector<1x32xf32>
    %417 = vector.broadcast %416 : vector<1x32xf32> to vector<8x32xf32>
    %418 = arith.mulf %415, %417 : vector<8x32xf32>
    %c232 = arith.constant 232 : index
    %c0_144 = arith.constant 0 : index
    %419 = vector.load %arg3[%c232, %c0_144] : memref<1088x128xf32, #tpu.memory_space<vmem>>, vector<1x32xf32>
    %420 = vector.broadcast %419 : vector<1x32xf32> to vector<8x32xf32>
    %421 = arith.addf %418, %420 : vector<8x32xf32>
    %c240 = arith.constant 240 : index
    %c0_145 = arith.constant 0 : index
    %422 = vector.load %arg3[%c240, %c0_145] : memref<1088x128xf32, #tpu.memory_space<vmem>>, vector<32x128xf32>
    %423 = arith.truncf %421 : vector<8x32xf32> to vector<8x32xbf16>
    %424 = arith.truncf %422 : vector<32x128xf32> to vector<32x128xbf16>
    %cst_146 = arith.constant dense<0.000000e+00> : vector<8x128xf32>
    %425 = tpu.matmul %423, %424, %cst_146 {dimension_numbers = #tpu.dot_dimension_numbers<[1], [0], [0], [1], [0, 0, 1, 1], [], []>} : vector<8x32xbf16>, vector<32x128xbf16>, vector<8x128xf32> -> vector<8x128xf32>
    %c272 = arith.constant 272 : index
    %c0_147 = arith.constant 0 : index
    %426 = vector.load %arg3[%c272, %c0_147] : memref<1088x128xf32, #tpu.memory_space<vmem>>, vector<1x128xf32>
    %427 = vector.broadcast %426 : vector<1x128xf32> to vector<8x128xf32>
    %428 = arith.addf %425, %427 : vector<8x128xf32>
    %c0_148 = arith.constant 0 : index
    %c0_149 = arith.constant 0 : index
    %c0_150 = arith.constant 0 : index
    %429 = vector.load %arg4[%c0_148, %c0_149, %c0_150] : memref<1x8x128xf32, #tpu.memory_space<vmem>>, vector<1x8x128xf32>
    %430 = vector.shape_cast %429 : vector<1x8x128xf32> to vector<8x128xf32>
    %431 = vector.shape_cast %428 : vector<8x128xf32> to vector<1x8x128xf32>
    tpu.vector_store %arg4[%c0_148, %c0_149, %c0_150], %431 {strides = array<i32>} : memref<1x8x128xf32, #tpu.memory_space<vmem>>, vector<1x8x128xf32>,
    return
  }
  func.func @transform_0(%arg0: i32) -> (i32, i32, i32) {
    %c0_i32 = arith.constant 0 : i32
    %c0_i32_0 = arith.constant 0 : i32
    %c0_i32_1 = arith.constant 0 : i32
    return %arg0, %c0_i32, %c0_i32_0 : i32, i32, i32
  }
  func.func @transform_1(%arg0: i32) -> (i32, i32, i32) {
    %c0_i32 = arith.constant 0 : i32
    %c0_i32_0 = arith.constant 0 : i32
    %c0_i32_1 = arith.constant 0 : i32
    return %arg0, %c0_i32, %c0_i32_0 : i32, i32, i32
  }
  func.func @transform_2(%arg0: i32) -> (i32, i32) {
    %c0_i32 = arith.constant 0 : i32
    %c0_i32_0 = arith.constant 0 : i32
    %c0_i32_1 = arith.constant 0 : i32
    return %c0_i32, %c0_i32_0 : i32, i32
  }
  func.func @transform_3(%arg0: i32) -> (i32, i32, i32) {
    %c0_i32 = arith.constant 0 : i32
    %c0_i32_0 = arith.constant 0 : i32
    %c0_i32_1 = arith.constant 0 : i32
    return %arg0, %c0_i32, %c0_i32_0 : i32, i32, i32
  }
}

</mosaic_0001>

<llo_original>
// kernel: model_forward.1
$region0: #{model_forward.1}
  #allocation0 [shape = 'u32[]', space=smem, size = 0x4, offset = 0x4, fixed_abs, tag = 'smem constant byte address 0x4 - core index']
  #allocation1 [shape = 'u32[144,128]{1,0:T(1,128)}', space=vmem, size = 0x12000, scoped, tag = 'internal scratch']
  %s0 = inlined_call_operand.vmem [shape: f32[2,16,16], index: 0, kind: input, shape index: {}]
  %s1 = inlined_call_operand.vmem [shape: f32[2,16,16], index: 1, kind: input, shape index: {}]
  %s2 = inlined_call_operand.vmem [shape: f32[1088,128], index: 2, kind: input, shape index: {}]
  %s3 = inlined_call_operand.vmem [shape: f32[2,8,128], index: 3, kind: output, shape index: {}]
  %s4 = sld [smem:[#allocation0]]
  $region45: #{model_forward.1} parent=0
    _
  %s6 = ssub.s32 1, %s4
  %s7 = scalar_select 0, %s6, %s4
  loop: start=0, step=1, limit=4
  $region2: #{model_forward.1} parent=0 // loop_pre_header
    _
  $region3: #{model_forward.1} parent=0 // loop_header
    %s9 = sphi 0, %s13
    %p10 = scmp.ge.s32.totalorder %s9, 4
    %s19 = sphi 0, %s21
    %s22 = sphi 0, %s19
    %s23 = sphi 0, %s22
    %s39 = sphi 0, %s23
    %s45 = sphi 0, %s47
    %s48 = sphi 0, %s45
    %s49 = sphi 0, %s48
    %s65 = sphi 0, %s49
    %s69 = sphi 0, %s69
    %s71 = sphi 0, %s69
    %s72 = sphi 0, %s71
    %s86 = sphi 0, %s72
    %s92 = sphi 0, %s94
    %s95 = sphi 0, %s92
    %s96 = sphi 0, %s95
    %s112 = sphi 0, %s96
  $region4: #{model_forward.1} parent=0 // loop_header_branch
    %12 = sbr.rel (%p10) target = $region8
  $region5: #{model_forward.1} parent=0 // loop_body
    %s14 = ssub.s32 %s9, 1
    %s15 = ssub.s32 %s9, 2
    %s16 = sadd.s32 %s9, 1
    %s17 = ssub.s32 %s9, %s16
    %p18 = scmp.eq.s32.totalorder %s17, 0
    %s20 = sadd.s32 %s19, 1
    %s21 = scalar_select %p18, %s19, %s20
    %p24 = pneg %p18
    %p25 = scmp.eq.s32.totalorder %s9, 1
    %p26 = por %p24, %p25
    %p27 = scmp.ne.s32.totalorder %s19, %s22
    %p28 = scmp.eq.s32.totalorder %s9, 0
    %p29 = por %p27, %p28
    %p30 = scmp.ne.s32.totalorder %s19, %s22
    %p31 = scmp.eq.s32.totalorder %s14, 1
    %p32 = por %p30, %p31
    %p33 = scmp.ne.s32.totalorder %s22, %s23
    %p34 = scmp.eq.s32.totalorder %s14, 0
    %p35 = por %p33, %p34
    %p36 = scmp.ne.s32.totalorder %s22, %s23
    %p37 = scmp.eq.s32.totalorder %s15, 1
    %p38 = por %p36, %p37
    %p40 = scmp.ne.s32.totalorder %s23, %s39
    %p41 = scmp.eq.s32.totalorder %s15, 0
    %p42 = por %p40, %p41
    %s43 = ssub.s32 %s9, %s16
    %p44 = scmp.eq.s32.totalorder %s43, 0
    %s46 = sadd.s32 %s45, 1
    %s47 = scalar_select %p44, %s45, %s46
    %p50 = pneg %p44
    %p51 = scmp.eq.s32.totalorder %s9, 1
    %p52 = por %p50, %p51
    %p53 = scmp.ne.s32.totalorder %s45, %s48
    %p54 = scmp.eq.s32.totalorder %s9, 0
    %p55 = por %p53, %p54
    %p56 = scmp.ne.s32.totalorder %s45, %s48
    %p57 = scmp.eq.s32.totalorder %s14, 1
    %p58 = por %p56, %p57
    %p59 = scmp.ne.s32.totalorder %s48, %s49
    %p60 = scmp.eq.s32.totalorder %s14, 0
    %p61 = por %p59, %p60
    %p62 = scmp.ne.s32.totalorder %s48, %s49
    %p63 = scmp.eq.s32.totalorder %s15, 1
    %p64 = por %p62, %p63
    %p66 = scmp.ne.s32.totalorder %s49, %s65
    %p67 = scmp.eq.s32.totalorder %s15, 0
    %p68 = por %p66, %p67
    %s70 = sadd.s32 %s69, 1
    %p73 = scmp.eq.s32.totalorder %s9, 1
    %p74 = scmp.ne.s32.totalorder %s69, %s71
    %p75 = scmp.eq.s32.totalorder %s9, 0
    %p76 = por %p74, %p75
    %p77 = scmp.ne.s32.totalorder %s69, %s71
    %p78 = scmp.eq.s32.totalorder %s14, 1
    %p79 = por %p77, %p78
    %p80 = scmp.ne.s32.totalorder %s71, %s72
    %p81 = scmp.eq.s32.totalorder %s14, 0
    %p82 = por %p80, %p81
    %p83 = scmp.ne.s32.totalorder %s71, %s72
    %p84 = scmp.eq.s32.totalorder %s15, 1
    %p85 = por %p83, %p84
    %p87 = scmp.ne.s32.totalorder %s72, %s86
    %p88 = scmp.eq.s32.totalorder %s15, 0
    %p89 = por %p87, %p88
    %s90 = ssub.s32 %s9, %s16
    %p91 = scmp.eq.s32.totalorder %s90, 0
    %s93 = sadd.s32 %s92, 1
    %s94 = scalar_select %p91, %s92, %s93
    %p97 = pneg %p91
    %p98 = scmp.eq.s32.totalorder %s9, 1
    %p99 = por %p97, %p98
    %p100 = scmp.ne.s32.totalorder %s92, %s95
    %p101 = scmp.eq.s32.totalorder %s9, 0
    %p102 = por %p100, %p101
    %p103 = scmp.ne.s32.totalorder %s92, %s95
    %p104 = scmp.eq.s32.totalorder %s14, 1
    %p105 = por %p103, %p104
    %p106 = scmp.ne.s32.totalorder %s95, %s96
    %p107 = scmp.eq.s32.totalorder %s14, 0
    %p108 = por %p106, %p107
    %p109 = scmp.ne.s32.totalorder %s95, %s96
    %p110 = scmp.eq.s32.totalorder %s15, 1
    %p111 = por %p109, %p110
    %p113 = scmp.ne.s32.totalorder %s96, %s112
    %p114 = scmp.eq.s32.totalorder %s15, 0
    %p115 = por %p113, %p114
    %p116 = scmp.le.s32.totalorder 1, %s9
    %p117 = scmp.lt.s32.totalorder %s9, 3
    %p118 = pnand %p116, %p117
    %p119 = pneg %p118
    // Predicated region
    $region9: #{model_forward.1} parent=5 // pred_check
      _
    $region10: #{model_forward.1} parent=5 // pred_check_branch
      %121 = sbr.rel (%p118) target = $region12
    $region11: #{model_forward.1} parent=5 // pred_region
      %s122 = ssub.s32 %s9, 1
      // Predicated region
      $region13: #{model_forward.1} parent=11 // pred_check
        %p123 = pneg %p82
      $region14: #{model_forward.1} parent=11 // pred_check_branch
        %125 = sbr.rel (%p123) target = $region16
      $region15: #{model_forward.1} parent=11 // pred_region
        _
      $region16: #{model_forward.1} parent=11 // pred_fallthru
        _
    $region12: #{model_forward.1} parent=5 // pred_fallthru
      _
    %p126 = scmp.lt.s32.totalorder %s9, 2
    // Predicated region
    $region17: #{model_forward.1} parent=5 // pred_check
      %p127 = pneg %p126
    $region18: #{model_forward.1} parent=5 // pred_check_branch
      %129 = sbr.rel (%p127) target = $region20
    $region19: #{model_forward.1} parent=5 // pred_region
      // Predicated region
      $region21: #{model_forward.1} parent=19 // pred_check
        %p130 = pneg %p29
      $region22: #{model_forward.1} parent=19 // pred_check_branch
        %132 = sbr.rel (%p130) target = $region24
      $region23: #{model_forward.1} parent=19 // pred_region
        %p133 = scmp.lt.s32.totalorder %s9, 1
        %s134 = scalar_select %p133, %s9, 1
        %s135 = smul.addr %s134, 2
        %s136 = smul.addr %s135, 8
        %s137 = scalar_lea.vmem %s0, %s136
      $region24: #{model_forward.1} parent=19 // pred_fallthru
        _
      // Predicated region
      $region25: #{model_forward.1} parent=19 // pred_check
        %p138 = pneg %p55
      $region26: #{model_forward.1} parent=19 // pred_check_branch
        %140 = sbr.rel (%p138) target = $region28
      $region27: #{model_forward.1} parent=19 // pred_region
        %p141 = scmp.lt.s32.totalorder %s9, 1
        %s142 = scalar_select %p141, %s9, 1
        %s143 = smul.addr %s142, 2
        %s144 = smul.addr %s143, 8
        %s145 = scalar_lea.vmem %s1, %s144
      $region28: #{model_forward.1} parent=19 // pred_fallthru
        _
    $region20: #{model_forward.1} parent=5 // pred_fallthru
      _
    %p146 = scmp.le.s32.totalorder 1, %s9
    %p147 = scmp.lt.s32.totalorder %s9, 3
    %p148 = pnand %p146, %p147
    %p149 = pneg %p148
    // Predicated region
    $region29: #{model_forward.1} parent=5 // pred_check
      _
    $region30: #{model_forward.1} parent=5 // pred_check_branch
      %151 = sbr.rel (%p148) target = $region32
    $region31: #{model_forward.1} parent=5 // pred_region
      %s152 = ssub.s32 %s9, 1
      %p153 = scmp.lt.s32.totalorder %s14, 1
      %s154 = scalar_select %p153, %s14, 1
      %s155 = smul.addr %s154, 2
      %s156 = smul.addr %s155, 8
      %s157 = scalar_lea.vmem %s0, %s156
      %p158 = pneg %p35
      %p159 = pneg %p32
      %p160 = scmp.lt.s32.totalorder %s14, 1
      %s161 = scalar_select %p160, %s14, 1
      %s162 = smul.addr %s161, 2
      %s163 = smul.addr %s162, 8
      %s164 = scalar_lea.vmem %s1, %s163
      %p165 = pneg %p61
      %p166 = pneg %p58
      %p167 = pneg %p82
      %p168 = pneg %p79
      %p169 = pneg %p108
      %p170 = pneg %p105
      %p171 = scmp.lt.s32.totalorder %s14, 1
      %s172 = scalar_select %p171, %s14, 1
      %s173 = smul.addr %s172, 8
      %s174 = scalar_lea.vmem %s3, %s173
      %p175 = scmp.lt.s32.totalorder %s14, 1
      %s176 = scalar_select %p175, %s14, 1
      %s177 = smul.addr %s176, 2
      %s178 = smul.addr %s177, 8
      %s179 = scalar_lea.vmem %s0, %s178
      %p180 = scmp.lt.s32.totalorder %s14, 1
      %s181 = scalar_select %p180, %s14, 1
      %s182 = smul.addr %s181, 2
      %s183 = smul.addr %s182, 8
      %s184 = scalar_lea.vmem %s1, %s183
      %p185 = scmp.lt.s32.totalorder %s14, 1
      %s186 = scalar_select %p185, %s14, 1
      %s187 = smul.addr %s186, 8
      %s188 = scalar_lea.vmem %s3, %s187
      %v190 = vld [vmem:[%s179] sm:$0xff]
      %v191 = vld [vmem:[%s179 + $0x8] sm:$0xff]
      %v192 = vld [vmem:[%s2] sm:$0xff]
      %v193 = vld [vmem:[%s2 + $0x8] sm:$0xff]
      %v194 = vld [vmem:[%s2 + $0xb0] sm:$0xff]
      %v195 = vld [vmem:[%s2 + $0xb8] sm:$0xff]
      %v196 = vpack.c.bf16 %v191, %v190
      %v197 = vpack.c.bf16 %v195, %v194
      %vm198 = vcmask 130048
      %v200 = vsel %vm198, %v196, 0
      %202 = vmatprep.subr.bf16.mxu0 0
      %203 = vmatpush1.bf16.msra.mxu0 %v197
      %204 = vmatprep.subr.bf16.mxu0 0
      %205 = vmatpush1.bf16.msra.mxu0 0
      %206 = vmatprep.subr.bf16.mxu0 0
      %207 = vmatpush1.bf16.msra.mxu0 0
      %208 = vmatprep.subr.bf16.mxu0 0
      %209 = vmatpush1.bf16.msra.mxu0 0
      %210 = vmatprep.subr.bf16.mxu0 0
      %211 = vmatpush1.bf16.msra.mxu0 0
      %212 = vmatprep.subr.bf16.mxu0 0
      %213 = vmatpush1.bf16.msra.mxu0 0
      %214 = vmatprep.subr.bf16.mxu0 0
      %215 = vmatpush1.bf16.msra.mxu0 0
      %216 = vmatprep.subr.bf16.mxu0 0
      %217 = vmatpush1.bf16.msra.mxu0 0
      %218 = vmatprep.subr.bf16.mxu0 0
      %219 = vmatpush1.bf16.msra.mxu0 0
      %220 = vmatprep.subr.bf16.mxu0 0
      %221 = vmatpush1.bf16.msra.mxu0 0
      %222 = vmatprep.subr.bf16.mxu0 0
      %223 = vmatpush1.bf16.msra.mxu0 0
      %224 = vmatprep.subr.bf16.mxu0 0
      %225 = vmatpush1.bf16.msra.mxu0 0
      %226 = vmatprep.subr.bf16.mxu0 0
      %227 = vmatpush1.bf16.msra.mxu0 0
      %228 = vmatprep.subr.bf16.mxu0 0
      %229 = vmatpush1.bf16.msra.mxu0 0
      %230 = vmatprep.subr.bf16.mxu0 0
      %231 = vmatpush1.bf16.msra.mxu0 0
      %232 = vmatprep.subr.bf16.mxu0 0
      %233 = vmatpush1.bf16.msra.mxu0 0
      %234 = vmatprep.mubr.bf16.mxu0 0
      %235 = vmatmul.mubr.bf16.gmra.mrb[0].mxu0 %v200
      %v236 = vpop.f32.mrb[0].mxu0
      %v237 = vadd.f32 %v192, %v236
      %v238 = vpop.f32.mrb[0].mxu0
      %v239 = vpop.f32.mrb[0].mxu0
      %v240 = vadd.f32 %v193, %v239
      %v241 = vpop.f32.mrb[0].mxu0
      %242 = vdwg.mxu0
      %v243 = vld [vmem:[%s2 + $0x118] sm:$0xff]
      %v244 = vld [vmem:[%s2 + $0x120] sm:$0xff]
      %v245 = vld [vmem:[%s2 + $0x128] sm:$0xff]
      %v246 = vld [vmem:[%s2 + $0x130] sm:$0xff]
      %v247 = vpack.c.bf16 %v240, %v237
      %v248 = vpack.c.bf16 %v244, %v243
      %v249 = vpack.c.bf16 %v246, %v245
      %v250 = vld [vmem:[%s2 + $0x138] sm:$0x1]
      %v251 = vlaneseq
      %v252 = vshrl.u32 %v251, 7
      %v253 = vsub.s32 0, %v252
      %v254 = vrot.slane %v250, %v253
      %vm255 = vcmask 261120
      %v257 = vsel %vm255, %v247, 0
      %259 = vmatprep.subr.bf16.mxu0 0
      %260 = vmatpush1.bf16.msra.mxu0 %v248
      %261 = vmatprep.subr.bf16.mxu0 0
      %262 = vmatpush1.bf16.msra.mxu0 %v249
      %263 = vmatprep.subr.bf16.mxu0 0
      %264 = vmatpush1.bf16.msra.mxu0 0
      %265 = vmatprep.subr.bf16.mxu0 0
      %266 = vmatpush1.bf16.msra.mxu0 0
      %267 = vmatprep.subr.bf16.mxu0 0
      %268 = vmatpush1.bf16.msra.mxu0 0
      %269 = vmatprep.subr.bf16.mxu0 0
      %270 = vmatpush1.bf16.msra.mxu0 0
      %271 = vmatprep.subr.bf16.mxu0 0
      %272 = vmatpush1.bf16.msra.mxu0 0
      %273 = vmatprep.subr.bf16.mxu0 0
      %274 = vmatpush1.bf16.msra.mxu0 0
      %275 = vmatprep.subr.bf16.mxu0 0
      %276 = vmatpush1.bf16.msra.mxu0 0
      %277 = vmatprep.subr.bf16.mxu0 0
      %278 = vmatpush1.bf16.msra.mxu0 0
      %279 = vmatprep.subr.bf16.mxu0 0
      %280 = vmatpush1.bf16.msra.mxu0 0
      %281 = vmatprep.subr.bf16.mxu0 0
      %282 = vmatpush1.bf16.msra.mxu0 0
      %283 = vmatprep.subr.bf16.mxu0 0
      %284 = vmatpush1.bf16.msra.mxu0 0
      %285 = vmatprep.subr.bf16.mxu0 0
      %286 = vmatpush1.bf16.msra.mxu0 0
      %287 = vmatprep.subr.bf16.mxu0 0
      %288 = vmatpush1.bf16.msra.mxu0 0
      %289 = vmatprep.subr.bf16.mxu0 0
      %290 = vmatpush1.bf16.msra.mxu0 0
      %291 = vmatprep.mubr.bf16.mxu0 0
      %292 = vmatmul.mubr.bf16.gmra.mrb[0].mxu0 %v257
      %v293 = vpop.f32.mrb[0].mxu0
      %v294 = vadd.f32 %v254, %v293
      %v295 = vpop.f32.mrb[0].mxu0
      %v296 = vpop.f32.mrb[0].mxu0
      %v297 = vadd.f32 %v254, %v296
      %v298 = vpop.f32.mrb[0].mxu0
      %299 = vdwg.mxu0
      %v300 = vld [vmem:[%s2 + $0x20] sm:$0xff]
      %v301 = vld [vmem:[%s2 + $0x28] sm:$0xff]
      %v302 = vld [vmem:[%s2 + $0x30] sm:$0xff]
      %v303 = vld [vmem:[%s2 + $0x38] sm:$0xff]
      %v304 = vld [vmem:[%s2 + $0x40] sm:$0xff]
      %v305 = vld [vmem:[%s2 + $0x48] sm:$0xff]
      %v306 = vld [vmem:[%s2 + $0x50] sm:$0xff]
      %v307 = vld [vmem:[%s2 + $0x58] sm:$0xff]
      %316 = vrot.lane.b32.xlu0 %v300, 32
      %v317 = vpop.permute.xlu0 %316
      %318 = vrot.lane.b32.xlu0 %v301, 32
      %v319 = vpop.permute.xlu0 %318
      %320 = vrot.lane.b32.xlu0 %v302, 32
      %v321 = vpop.permute.xlu0 %320
      %322 = vrot.lane.b32.xlu0 %v303, 32
      %v323 = vpop.permute.xlu0 %322
      %324 = vrot.lane.b32.xlu0 %v304, 32
      %v325 = vpop.permute.xlu0 %324
      %326 = vrot.lane.b32.xlu0 %v305, 32
      %v327 = vpop.permute.xlu0 %326
      %328 = vrot.lane.b32.xlu0 %v306, 32
      %v329 = vpop.permute.xlu0 %328
      %330 = vrot.lane.b32.xlu0 %v307, 32
      %v331 = vpop.permute.xlu0 %330
      %v340 = vmul.f32 %v294, %v317
      %v341 = vmul.f32 %v297, %v319
      %v342 = vmul.f32 %v294, %v321
      %v343 = vmul.f32 %v297, %v323
      %v344 = vmul.f32 %v294, %v325
      %v345 = vmul.f32 %v297, %v327
      %v346 = vmul.f32 %v294, %v329
      %v347 = vmul.f32 %v297, %v331
      %348 = vrot.lane.b32.xlu0 %v300, 64
      %v349 = vpop.permute.xlu0 %348
      %350 = vrot.lane.b32.xlu0 %v301, 64
      %v351 = vpop.permute.xlu0 %350
      %352 = vrot.lane.b32.xlu0 %v302, 64
      %v353 = vpop.permute.xlu0 %352
      %354 = vrot.lane.b32.xlu0 %v303, 64
      %v355 = vpop.permute.xlu0 %354
      %356 = vrot.lane.b32.xlu0 %v304, 64
      %v357 = vpop.permute.xlu0 %356
      %358 = vrot.lane.b32.xlu0 %v305, 64
      %v359 = vpop.permute.xlu0 %358
      %360 = vrot.lane.b32.xlu0 %v306, 64
      %v361 = vpop.permute.xlu0 %360
      %362 = vrot.lane.b32.xlu0 %v307, 64
      %v363 = vpop.permute.xlu0 %362
      %v372 = vmul.f32 %v294, %v349
      %v373 = vmul.f32 %v297, %v351
      %v374 = vmul.f32 %v294, %v353
      %v375 = vmul.f32 %v297, %v355
      %v376 = vmul.f32 %v294, %v357
      %v377 = vmul.f32 %v297, %v359
      %v378 = vmul.f32 %v294, %v361
      %v379 = vmul.f32 %v297, %v363
      %v380 = vpack.c.bf16 %v297, %v294
      %v381 = vpack.c.bf16 %v341, %v340
      %v382 = vpack.c.bf16 %v343, %v342
      %v383 = vpack.c.bf16 %v345, %v344
      %v384 = vpack.c.bf16 %v347, %v346
      %389 = vrot.lane.b32.xlu0 %v381, 96
      %v390 = vpop.permute.xlu0 %389
      %391 = vrot.lane.b32.xlu0 %v382, 96
      %v392 = vpop.permute.xlu0 %391
      %393 = vrot.lane.b32.xlu0 %v383, 96
      %v394 = vpop.permute.xlu0 %393
      %395 = vrot.lane.b32.xlu0 %v384, 96
      %v396 = vpop.permute.xlu0 %395
      %v398 = vsel %vm255, %v380, 0
      %v401 = vsel %vm255, %v390, 0
      %v404 = vsel %vm255, %v392, 0
      %v407 = vsel %vm255, %v394, 0
      %v410 = vsel %vm255, %v396, 0
      %412 = vmatprep.subr.bf16.mxu0 0
      %413 = vmatpush1.bf16.xpose.msra.mxu0 %v401
      %414 = vmatprep.subr.bf16.mxu0 0
      %415 = vmatpush1.bf16.xpose.msra.mxu0 %v404
      %416 = vmatprep.subr.bf16.mxu0 0
      %417 = vmatpush1.bf16.xpose.msra.mxu0 %v407
      %418 = vmatprep.subr.bf16.mxu0 0
      %419 = vmatpush1.bf16.xpose.msra.mxu0 %v410
      %420 = vmatprep.subr.bf16.mxu0 0
      %421 = vmatpush1.bf16.xpose.msra.mxu0 0
      %422 = vmatprep.subr.bf16.mxu0 0
      %423 = vmatpush1.bf16.xpose.msra.mxu0 0
      %424 = vmatprep.subr.bf16.mxu0 0
      %425 = vmatpush1.bf16.xpose.msra.mxu0 0
      %426 = vmatprep.subr.bf16.mxu0 0
      %427 = vmatpush1.bf16.xpose.msra.mxu0 0
      %428 = vmatprep.subr.bf16.mxu0 0
      %429 = vmatpush1.bf16.xpose.msra.mxu0 0
      %430 = vmatprep.subr.bf16.mxu0 0
      %431 = vmatpush1.bf16.xpose.msra.mxu0 0
      %432 = vmatprep.subr.bf16.mxu0 0
      %433 = vmatpush1.bf16.xpose.msra.mxu0 0
      %434 = vmatprep.subr.bf16.mxu0 0
      %435 = vmatpush1.bf16.xpose.msra.mxu0 0
      %436 = vmatprep.subr.bf16.mxu0 0
      %437 = vmatpush1.bf16.xpose.msra.mxu0 0
      %438 = vmatprep.subr.bf16.mxu0 0
      %439 = vmatpush1.bf16.xpose.msra.mxu0 0
      %440 = vmatprep.subr.bf16.mxu0 0
      %441 = vmatpush1.bf16.xpose.msra.mxu0 0
      %442 = vmatprep.subr.bf16.mxu0 0
      %443 = vmatpush1.bf16.xpose.msra.mxu0 0
      %444 = vmatprep.mubr.bf16.mxu0 0
      %445 = vmatmul.mubr.bf16.gmra.mrb[0].mxu0 %v398
      %v446 = vpop.f32.mrb[0].mxu0
      %v447 = vadd.f32 0.0, %v446
      %v448 = vpop.f32.mrb[0].mxu0
      %v449 = vpop.f32.mrb[0].mxu0
      %v450 = vadd.f32 0.0, %v449
      %v451 = vpop.f32.mrb[0].mxu0
      %452 = vdwg.mxu0
      %vm453 = vcmask 523264
      %v454 = vsel %vm453, %v447, -inf
      %455 = vmax.xlane.f32.xlu0 %v454
      %v456 = vpop.xlane.xlu0 %455
      %v457 = vsel %vm453, %v450, -inf
      %458 = vmax.xlane.f32.xlu0 %v457
      %v459 = vpop.xlane.xlu0 %458
      %v460 = vsub.f32 %v447, %v456
      %v461 = vsub.f32 %v450, %v459
      %v462 = vmul.f32 %v460, 1.442695
      %v463 = vpow.pop %v462
      %v464 = vmul.f32 %v461, 1.442695
      %v465 = vpow.pop %v464
      %v467 = vsel %vm453, %v463, 0
      %v470 = vsel %vm453, %v465, 0
      %472 = vmatprep.subr.mxu0 0.0
      %473 = vmatpush1.msra.mxu0 %v300
      %474 = vmatprep.subr.mxu0 0.0
      %475 = vmatpush1.msra.mxu0 %v301
      %476 = vmatprep.subr.mxu0 0.0
      %477 = vmatpush1.msra.mxu0 %v302
      %478 = vmatprep.subr.mxu0 0.0
      %479 = vmatpush1.msra.mxu0 %v303
      %480 = vmatprep.subr.mxu0 0.0
      %481 = vmatpush1.msra.mxu0 %v304
      %482 = vmatprep.subr.mxu0 0.0
      %483 = vmatpush1.msra.mxu0 %v305
      %484 = vmatprep.subr.mxu0 0.0
      %485 = vmatpush1.msra.mxu0 %v306
      %486 = vmatprep.subr.mxu0 0.0
      %487 = vmatpush1.msra.mxu0 %v307
      %488 = vmatprep.subr.mxu0 0.0
      %489 = vmatpush1.msra.mxu0 0.0
      %490 = vmatprep.subr.mxu0 0.0
      %491 = vmatpush1.msra.mxu0 0.0
      %492 = vmatprep.subr.mxu0 0.0
      %493 = vmatpush1.msra.mxu0 0.0
      %494 = vmatprep.subr.mxu0 0.0
      %495 = vmatpush1.msra.mxu0 0.0
      %496 = vmatprep.subr.mxu0 0.0
      %497 = vmatpush1.msra.mxu0 0.0
      %498 = vmatprep.subr.mxu0 0.0
      %499 = vmatpush1.msra.mxu0 0.0
      %500 = vmatprep.subr.mxu0 0.0
      %501 = vmatpush1.msra.mxu0 0.0
      %502 = vmatprep.subr.mxu0 0.0
      %503 = vmatpush1.msra.mxu0 0.0
      %504 = vmatprep.subr.mxu0 0.0
      %505 = vmatpush1.msra.mxu0 0.0
      %506 = vmatprep.subr.mxu0 0.0
      %507 = vmatpush1.msra.mxu0 0.0
      %508 = vmatprep.subr.mxu0 0.0
      %509 = vmatpush1.msra.mxu0 0.0
      %510 = vmatprep.subr.mxu0 0.0
      %511 = vmatpush1.msra.mxu0 0.0
      %512 = vmatprep.subr.mxu0 0.0
      %513 = vmatpush1.msra.mxu0 0.0
      %514 = vmatprep.subr.mxu0 0.0
      %515 = vmatpush1.msra.mxu0 0.0
      %516 = vmatprep.subr.mxu0 0.0
      %517 = vmatpush1.msra.mxu0 0.0
      %518 = vmatprep.subr.mxu0 0.0
      %519 = vmatpush1.msra.mxu0 0.0
      %520 = vmatprep.subr.mxu0 0.0
      %521 = vmatpush1.msra.mxu0 0.0
      %522 = vmatprep.subr.mxu0 0.0
      %523 = vmatpush1.msra.mxu0 0.0
      %524 = vmatprep.subr.mxu0 0.0
      %525 = vmatpush1.msra.mxu0 0.0
      %526 = vmatprep.subr.mxu0 0.0
      %527 = vmatpush1.msra.mxu0 0.0
      %528 = vmatprep.subr.mxu0 0.0
      %529 = vmatpush1.msra.mxu0 0.0
      %530 = vmatprep.subr.mxu0 0.0
      %531 = vmatpush1.msra.mxu0 0.0
      %532 = vmatprep.subr.mxu0 0.0
      %533 = vmatpush1.msra.mxu0 0.0
      %534 = vmatprep.subr.mxu0 0.0
      %535 = vmatpush1.msra.mxu0 0.0
      %536 = vmatprep.mubr.f32.mxu0 0.0
      %537 = vmatmul.mubr.f32.gmra.mrb[0].mxu0 %v467
      %v538 = vpop.f32.mrb[0].mxu0
      %v539 = vadd.f32 0.0, %v538
      %v540 = vpop.f32.mrb[0].mxu0
      %541 = vmatprep.mubr.f32.mxu0 0.0
      %542 = vmatmul.mubr.f32.gmra.mrb[0].mxu0 %v470
      %v543 = vpop.f32.mrb[0].mxu0
      %v544 = vadd.f32 0.0, %v543
      %v545 = vpop.f32.mrb[0].mxu0
      %546 = vdwg.mxu0
      %v547 = vpack.c.bf16 %v465, %v463
      %v548 = vpack.c.bf16 %v373, %v372
      %v549 = vpack.c.bf16 %v375, %v374
      %v550 = vpack.c.bf16 %v377, %v376
      %v551 = vpack.c.bf16 %v379, %v378
      %556 = vrot.lane.b32.xlu0 %v548, 64
      %v557 = vpop.permute.xlu0 %556
      %558 = vrot.lane.b32.xlu0 %v549, 64
      %v559 = vpop.permute.xlu0 %558
      %560 = vrot.lane.b32.xlu0 %v550, 64
      %v561 = vpop.permute.xlu0 %560
      %562 = vrot.lane.b32.xlu0 %v551, 64
      %v563 = vpop.permute.xlu0 %562
      %v569 = vsel %vm453, %v547, 0
      %571 = vmatprep.subr.bf16.mxu0 0
      %572 = vmatpush1.bf16.msra.mxu0 %v557
      %573 = vmatprep.subr.bf16.mxu0 0
      %574 = vmatpush1.bf16.msra.mxu0 %v559
      %575 = vmatprep.subr.bf16.mxu0 0
      %576 = vmatpush1.bf16.msra.mxu0 %v561
      %577 = vmatprep.subr.bf16.mxu0 0
      %578 = vmatpush1.bf16.msra.mxu0 %v563
      %579 = vmatprep.subr.bf16.mxu0 0
      %580 = vmatpush1.bf16.msra.mxu0 0
      %581 = vmatprep.subr.bf16.mxu0 0
      %582 = vmatpush1.bf16.msra.mxu0 0
      %583 = vmatprep.subr.bf16.mxu0 0
      %584 = vmatpush1.bf16.msra.mxu0 0
      %585 = vmatprep.subr.bf16.mxu0 0
      %586 = vmatpush1.bf16.msra.mxu0 0
      %587 = vmatprep.subr.bf16.mxu0 0
      %588 = vmatpush1.bf16.msra.mxu0 0
      %589 = vmatprep.subr.bf16.mxu0 0
      %590 = vmatpush1.bf16.msra.mxu0 0
      %591 = vmatprep.subr.bf16.mxu0 0
      %592 = vmatpush1.bf16.msra.mxu0 0
      %593 = vmatprep.subr.bf16.mxu0 0
      %594 = vmatpush1.bf16.msra.mxu0 0
      %595 = vmatprep.subr.bf16.mxu0 0
      %596 = vmatpush1.bf16.msra.mxu0 0
      %597 = vmatprep.subr.bf16.mxu0 0
      %598 = vmatpush1.bf16.msra.mxu0 0
      %599 = vmatprep.subr.bf16.mxu0 0
      %600 = vmatpush1.bf16.msra.mxu0 0
      %601 = vmatprep.subr.bf16.mxu0 0
      %602 = vmatpush1.bf16.msra.mxu0 0
      %603 = vmatprep.mubr.bf16.mxu0 0
      %604 = vmatmul.mubr.bf16.gmra.mrb[0].mxu0 %v569
      %v605 = vpop.f32.mrb[0].mxu0
      %v606 = vadd.f32 0.0, %v605
      %v607 = vpop.f32.mrb[0].mxu0
      %v608 = vpop.f32.mrb[0].mxu0
      %v609 = vadd.f32 0.0, %v608
      %v610 = vpop.f32.mrb[0].mxu0
      %611 = vdwg.mxu0
      %v612 = vrcp.pop %v539
      %v613 = vrcp.pop %v544
      %v614 = vmul.f32 %v606, %v612
      %v615 = vmul.f32 %v609, %v613
      %v616 = vld [vmem:[%s2 + $0x140] sm:$0xff]
      %v617 = vld [vmem:[%s2 + $0x148] sm:$0xff]
      %v618 = vld [vmem:[%s2 + $0x150] sm:$0xff]
      %v619 = vld [vmem:[%s2 + $0x158] sm:$0xff]
      %v620 = vpack.c.bf16 %v615, %v614
      %v621 = vpack.c.bf16 %v617, %v616
      %v622 = vpack.c.bf16 %v619, %v618
      %v623 = vld [vmem:[%s2 + $0x160] sm:$0x1]
      %v624 = vlaneseq
      %v625 = vshrl.u32 %v624, 7
      %v626 = vsub.s32 0, %v625
      %v627 = vrot.slane %v623, %v626
      %v629 = vsel %vm255, %v620, 0
      %631 = vmatprep.subr.bf16.mxu0 0
      %632 = vmatpush1.bf16.msra.mxu0 %v621
      %633 = vmatprep.subr.bf16.mxu0 0
      %634 = vmatpush1.bf16.msra.mxu0 %v622
      %635 = vmatprep.subr.bf16.mxu0 0
      %636 = vmatpush1.bf16.msra.mxu0 0
      %637 = vmatprep.subr.bf16.mxu0 0
      %638 = vmatpush1.bf16.msra.mxu0 0
      %639 = vmatprep.subr.bf16.mxu0 0
      %640 = vmatpush1.bf16.msra.mxu0 0
      %641 = vmatprep.subr.bf16.mxu0 0
      %642 = vmatpush1.bf16.msra.mxu0 0
      %643 = vmatprep.subr.bf16.mxu0 0
      %644 = vmatpush1.bf16.msra.mxu0 0
      %645 = vmatprep.subr.bf16.mxu0 0
      %646 = vmatpush1.bf16.msra.mxu0 0
      %647 = vmatprep.subr.bf16.mxu0 0
      %648 = vmatpush1.bf16.msra.mxu0 0
      %649 = vmatprep.subr.bf16.mxu0 0
      %650 = vmatpush1.bf16.msra.mxu0 0
      %651 = vmatprep.subr.bf16.mxu0 0
      %652 = vmatpush1.bf16.msra.mxu0 0
      %653 = vmatprep.subr.bf16.mxu0 0
      %654 = vmatpush1.bf16.msra.mxu0 0
      %655 = vmatprep.subr.bf16.mxu0 0
      %656 = vmatpush1.bf16.msra.mxu0 0
      %657 = vmatprep.subr.bf16.mxu0 0
      %658 = vmatpush1.bf16.msra.mxu0 0
      %659 = vmatprep.subr.bf16.mxu0 0
      %660 = vmatpush1.bf16.msra.mxu0 0
      %661 = vmatprep.subr.bf16.mxu0 0
      %662 = vmatpush1.bf16.msra.mxu0 0
      %663 = vmatprep.mubr.bf16.mxu0 0
      %664 = vmatmul.mubr.bf16.gmra.mrb[0].mxu0 %v629
      %v665 = vpop.f32.mrb[0].mxu0
      %v666 = vadd.f32 %v627, %v665
      %v667 = vpop.f32.mrb[0].mxu0
      %v668 = vpop.f32.mrb[0].mxu0
      %v669 = vadd.f32 %v627, %v668
      %v670 = vpop.f32.mrb[0].mxu0
      %671 = vdwg.mxu0
      %v672 = vadd.f32 %v237, %v666
      %v673 = vadd.f32 %v240, %v669
      %v674 = vsel %vm255, %v672, 0.0
      %675 = vadd.xlane.f32.xlu0 %v674
      %v676 = vpop.xlane.xlu0 %675
      %v677 = vsel %vm255, %v673, 0.0
      %678 = vadd.xlane.f32.xlu0 %v677
      %v679 = vpop.xlane.xlu0 %678
      %v680 = vrcp.pop 32.0
      %v681 = vmul.f32 %v676, %v680
      %v682 = vmul.f32 %v679, %v680
      %v683 = vsub.f32 %v672, %v681
      %v684 = vsub.f32 %v673, %v682
      %v685 = vmul.f32 %v683, %v683
      %v686 = vmul.f32 %v684, %v684
      %v687 = vsel %vm255, %v685, 0.0
      %688 = vadd.xlane.f32.xlu0 %v687
      %v689 = vpop.xlane.xlu0 %688
      %v690 = vsel %vm255, %v686, 0.0
      %691 = vadd.xlane.f32.xlu0 %v690
      %v692 = vpop.xlane.xlu0 %691
      %v693 = vmul.f32 %v689, %v680
      %v694 = vmul.f32 %v692, %v680
      %v695 = vadd.f32 %v693, 1e-05
      %v696 = vadd.f32 %v694, 1e-05
      %v697 = vrsqrt.pop %v695
      %v698 = vrsqrt.pop %v696
      %v699 = vmul.f32 %v683, %v697
      %v700 = vmul.f32 %v684, %v698
      %v701 = vld [vmem:[%s2 + $0x1d8] sm:$0x1]
      %v702 = vlaneseq
      %v703 = vshrl.u32 %v702, 7
      %v704 = vsub.s32 0, %v703
      %v705 = vrot.slane %v701, %v704
      %v706 = vmul.f32 %v699, %v705
      %v707 = vmul.f32 %v700, %v705
      %v708 = vld [vmem:[%s2 + $0x1e0] sm:$0x1]
      %v709 = vlaneseq
      %v710 = vshrl.u32 %v709, 7
      %v711 = vsub.s32 0, %v710
      %v712 = vrot.slane %v708, %v711
      %v713 = vadd.f32 %v706, %v712
      %v714 = vadd.f32 %v707, %v712
      %v715 = vld [vmem:[%s2 + $0x168] sm:$0xff]
      %v716 = vld [vmem:[%s2 + $0x170] sm:$0xff]
      %v717 = vld [vmem:[%s2 + $0x178] sm:$0xff]
      %v718 = vld [vmem:[%s2 + $0x180] sm:$0xff]
      %v719 = vpack.c.bf16 %v714, %v713
      %v720 = vpack.c.bf16 %v716, %v715
      %v721 = vpack.c.bf16 %v718, %v717
      %v722 = vld [vmem:[%s2 + $0x188] sm:$0x1]
      %v723 = vlaneseq
      %v724 = vshrl.u32 %v723, 7
      %v725 = vsub.s32 0, %v724
      %v726 = vrot.slane %v722, %v725
      %v728 = vsel %vm255, %v719, 0
      %730 = vmatprep.subr.bf16.mxu0 0
      %731 = vmatpush1.bf16.msra.mxu0 %v720
      %732 = vmatprep.subr.bf16.mxu0 0
      %733 = vmatpush1.bf16.msra.mxu0 %v721
      %734 = vmatprep.subr.bf16.mxu0 0
      %735 = vmatpush1.bf16.msra.mxu0 0
      %736 = vmatprep.subr.bf16.mxu0 0
      %737 = vmatpush1.bf16.msra.mxu0 0
      %738 = vmatprep.subr.bf16.mxu0 0
      %739 = vmatpush1.bf16.msra.mxu0 0
      %740 = vmatprep.subr.bf16.mxu0 0
      %741 = vmatpush1.bf16.msra.mxu0 0
      %742 = vmatprep.subr.bf16.mxu0 0
      %743 = vmatpush1.bf16.msra.mxu0 0
      %744 = vmatprep.subr.bf16.mxu0 0
      %745 = vmatpush1.bf16.msra.mxu0 0
      %746 = vmatprep.subr.bf16.mxu0 0
      %747 = vmatpush1.bf16.msra.mxu0 0
      %748 = vmatprep.subr.bf16.mxu0 0
      %749 = vmatpush1.bf16.msra.mxu0 0
      %750 = vmatprep.subr.bf16.mxu0 0
      %751 = vmatpush1.bf16.msra.mxu0 0
      %752 = vmatprep.subr.bf16.mxu0 0
      %753 = vmatpush1.bf16.msra.mxu0 0
      %754 = vmatprep.subr.bf16.mxu0 0
      %755 = vmatpush1.bf16.msra.mxu0 0
      %756 = vmatprep.subr.bf16.mxu0 0
      %757 = vmatpush1.bf16.msra.mxu0 0
      %758 = vmatprep.subr.bf16.mxu0 0
      %759 = vmatpush1.bf16.msra.mxu0 0
      %760 = vmatprep.subr.bf16.mxu0 0
      %761 = vmatpush1.bf16.msra.mxu0 0
      %762 = vmatprep.mubr.bf16.mxu0 0
      %763 = vmatmul.mubr.bf16.gmra.mrb[0].mxu0 %v728
      %v764 = vpop.f32.mrb[0].mxu0
      %v765 = vadd.f32 %v726, %v764
      %v766 = vpop.f32.mrb[0].mxu0
      %v767 = vpop.f32.mrb[0].mxu0
      %v768 = vadd.f32 %v726, %v767
      %v769 = vpop.f32.mrb[0].mxu0
      %770 = vdwg.mxu0
      %v771 = vmax.f32 %v765, 0.0
      %v772 = vmax.f32 %v768, 0.0
      %v773 = vld [vmem:[%s2 + $0x190] sm:$0xff]
      %v774 = vld [vmem:[%s2 + $0x198] sm:$0xff]
      %v775 = vld [vmem:[%s2 + $0x1a0] sm:$0xff]
      %v776 = vld [vmem:[%s2 + $0x1a8] sm:$0xff]
      %v777 = vld [vmem:[%s2 + $0x1b0] sm:$0xff]
      %v778 = vld [vmem:[%s2 + $0x1b8] sm:$0xff]
      %v779 = vld [vmem:[%s2 + $0x1c0] sm:$0xff]
      %v780 = vld [vmem:[%s2 + $0x1c8] sm:$0xff]
      %v781 = vpack.c.bf16 %v772, %v771
      %v782 = vpack.c.bf16 %v774, %v773
      %v783 = vpack.c.bf16 %v776, %v775
      %v784 = vpack.c.bf16 %v778, %v777
      %v785 = vpack.c.bf16 %v780, %v779
      %v786 = vld [vmem:[%s2 + $0x1d0] sm:$0x1]
      %v787 = vlaneseq
      %v788 = vshrl.u32 %v787, 7
      %v789 = vsub.s32 0, %v788
      %v790 = vrot.slane %v786, %v789
      %v792 = vsel %vm453, %v781, 0
      %794 = vmatprep.subr.bf16.mxu0 0
      %795 = vmatpush1.bf16.msra.mxu0 %v782
      %796 = vmatprep.subr.bf16.mxu0 0
      %797 = vmatpush1.bf16.msra.mxu0 %v783
      %798 = vmatprep.subr.bf16.mxu0 0
      %799 = vmatpush1.bf16.msra.mxu0 %v784
      %800 = vmatprep.subr.bf16.mxu0 0
      %801 = vmatpush1.bf16.msra.mxu0 %v785
      %802 = vmatprep.subr.bf16.mxu0 0
      %803 = vmatpush1.bf16.msra.mxu0 0
      %804 = vmatprep.subr.bf16.mxu0 0
      %805 = vmatpush1.bf16.msra.mxu0 0
      %806 = vmatprep.subr.bf16.mxu0 0
      %807 = vmatpush1.bf16.msra.mxu0 0
      %808 = vmatprep.subr.bf16.mxu0 0
      %809 = vmatpush1.bf16.msra.mxu0 0
      %810 = vmatprep.subr.bf16.mxu0 0
      %811 = vmatpush1.bf16.msra.mxu0 0
      %812 = vmatprep.subr.bf16.mxu0 0
      %813 = vmatpush1.bf16.msra.mxu0 0
      %814 = vmatprep.subr.bf16.mxu0 0
      %815 = vmatpush1.bf16.msra.mxu0 0
      %816 = vmatprep.subr.bf16.mxu0 0
      %817 = vmatpush1.bf16.msra.mxu0 0
      %818 = vmatprep.subr.bf16.mxu0 0
      %819 = vmatpush1.bf16.msra.mxu0 0
      %820 = vmatprep.subr.bf16.mxu0 0
      %821 = vmatpush1.bf16.msra.mxu0 0
      %822 = vmatprep.subr.bf16.mxu0 0
      %823 = vmatpush1.bf16.msra.mxu0 0
      %824 = vmatprep.subr.bf16.mxu0 0
      %825 = vmatpush1.bf16.msra.mxu0 0
      %826 = vmatprep.mubr.bf16.mxu0 0
      %827 = vmatmul.mubr.bf16.gmra.mrb[0].mxu0 %v792
      %v828 = vpop.f32.mrb[0].mxu0
      %v829 = vadd.f32 %v790, %v828
      %v830 = vpop.f32.mrb[0].mxu0
      %v831 = vpop.f32.mrb[0].mxu0
      %v832 = vadd.f32 %v790, %v831
      %v833 = vpop.f32.mrb[0].mxu0
      %834 = vdwg.mxu0
      %v835 = vadd.f32 %v713, %v829
      %v836 = vadd.f32 %v714, %v832
      %v837 = vsel %vm255, %v835, 0.0
      %838 = vadd.xlane.f32.xlu0 %v837
      %v839 = vpop.xlane.xlu0 %838
      %v840 = vsel %vm255, %v836, 0.0
      %841 = vadd.xlane.f32.xlu0 %v840
      %v842 = vpop.xlane.xlu0 %841
      %v843 = vmul.f32 %v839, %v680
      %v844 = vmul.f32 %v842, %v680
      %v845 = vsub.f32 %v835, %v843
      %v846 = vsub.f32 %v836, %v844
      %v847 = vmul.f32 %v845, %v845
      %v848 = vmul.f32 %v846, %v846
      %v849 = vsel %vm255, %v847, 0.0
      %850 = vadd.xlane.f32.xlu0 %v849
      %v851 = vpop.xlane.xlu0 %850
      %v852 = vsel %vm255, %v848, 0.0
      %853 = vadd.xlane.f32.xlu0 %v852
      %v854 = vpop.xlane.xlu0 %853
      %v855 = vmul.f32 %v851, %v680
      %v856 = vmul.f32 %v854, %v680
      %v857 = vadd.f32 %v855, 1e-05
      %v858 = vadd.f32 %v856, 1e-05
      %v859 = vrsqrt.pop %v857
      %v860 = vrsqrt.pop %v858
      %v861 = vmul.f32 %v845, %v859
      %v862 = vmul.f32 %v846, %v860
      %v863 = vld [vmem:[%s2 + $0x1e8] sm:$0x1]
      %v864 = vlaneseq
      %v865 = vshrl.u32 %v864, 7
      %v866 = vsub.s32 0, %v865
      %v867 = vrot.slane %v863, %v866
      %v868 = vmul.f32 %v861, %v867
      %v869 = vmul.f32 %v862, %v867
      %v870 = vld [vmem:[%s2 + $0x1f0] sm:$0x1]
      %v871 = vlaneseq
      %v872 = vshrl.u32 %v871, 7
      %v873 = vsub.s32 0, %v872
      %v874 = vrot.slane %v870, %v873
      %v875 = vadd.f32 %v868, %v874
      %v876 = vadd.f32 %v869, %v874
      %v877 = vld [vmem:[%s2 + $0x1f8] sm:$0xff]
      %v878 = vld [vmem:[%s2 + $0x200] sm:$0xff]
      %v879 = vld [vmem:[%s2 + $0x208] sm:$0xff]
      %v880 = vld [vmem:[%s2 + $0x210] sm:$0xff]
      %v881 = vpack.c.bf16 %v876, %v875
      %v882 = vpack.c.bf16 %v878, %v877
      %v883 = vpack.c.bf16 %v880, %v879
      %v884 = vld [vmem:[%s2 + $0x218] sm:$0x1]
      %v885 = vlaneseq
      %v886 = vshrl.u32 %v885, 7
      %v887 = vsub.s32 0, %v886
      %v888 = vrot.slane %v884, %v887
      %v890 = vsel %vm255, %v881, 0
      %892 = vmatprep.subr.bf16.mxu0 0
      %893 = vmatpush1.bf16.msra.mxu0 %v882
      %894 = vmatprep.subr.bf16.mxu0 0
      %895 = vmatpush1.bf16.msra.mxu0 %v883
      %896 = vmatprep.subr.bf16.mxu0 0
      %897 = vmatpush1.bf16.msra.mxu0 0
      %898 = vmatprep.subr.bf16.mxu0 0
      %899 = vmatpush1.bf16.msra.mxu0 0
      %900 = vmatprep.subr.bf16.mxu0 0
      %901 = vmatpush1.bf16.msra.mxu0 0
      %902 = vmatprep.subr.bf16.mxu0 0
      %903 = vmatpush1.bf16.msra.mxu0 0
      %904 = vmatprep.subr.bf16.mxu0 0
      %905 = vmatpush1.bf16.msra.mxu0 0
      %906 = vmatprep.subr.bf16.mxu0 0
      %907 = vmatpush1.bf16.msra.mxu0 0
      %908 = vmatprep.subr.bf16.mxu0 0
      %909 = vmatpush1.bf16.msra.mxu0 0
      %910 = vmatprep.subr.bf16.mxu0 0
      %911 = vmatpush1.bf16.msra.mxu0 0
      %912 = vmatprep.subr.bf16.mxu0 0
      %913 = vmatpush1.bf16.msra.mxu0 0
      %914 = vmatprep.subr.bf16.mxu0 0
      %915 = vmatpush1.bf16.msra.mxu0 0
      %916 = vmatprep.subr.bf16.mxu0 0
      %917 = vmatpush1.bf16.msra.mxu0 0
      %918 = vmatprep.subr.bf16.mxu0 0
      %919 = vmatpush1.bf16.msra.mxu0 0
      %920 = vmatprep.subr.bf16.mxu0 0
      %921 = vmatpush1.bf16.msra.mxu0 0
      %922 = vmatprep.subr.bf16.mxu0 0
      %923 = vmatpush1.bf16.msra.mxu0 0
      %924 = vmatprep.mubr.bf16.mxu0 0
      %925 = vmatmul.mubr.bf16.gmra.mrb[0].mxu0 %v890
      %v926 = vpop.f32.mrb[0].mxu0
      %v927 = vadd.f32 %v888, %v926
      %v928 = vpop.f32.mrb[0].mxu0
      %v929 = vpop.f32.mrb[0].mxu0
      %v930 = vadd.f32 %v888, %v929
      %v931 = vpop.f32.mrb[0].mxu0
      %932 = vdwg.mxu0
      %v933 = vld [vmem:[%s2 + $0x20] sm:$0xff]
      %v934 = vld [vmem:[%s2 + $0x28] sm:$0xff]
      %v935 = vld [vmem:[%s2 + $0x30] sm:$0xff]
      %v936 = vld [vmem:[%s2 + $0x38] sm:$0xff]
      %v937 = vld [vmem:[%s2 + $0x40] sm:$0xff]
      %v938 = vld [vmem:[%s2 + $0x48] sm:$0xff]
      %v939 = vld [vmem:[%s2 + $0x50] sm:$0xff]
      %v940 = vld [vmem:[%s2 + $0x58] sm:$0xff]
      %949 = vrot.lane.b32.xlu0 %v933, 32
      %v950 = vpop.permute.xlu0 %949
      %951 = vrot.lane.b32.xlu0 %v934, 32
      %v952 = vpop.permute.xlu0 %951
      %953 = vrot.lane.b32.xlu0 %v935, 32
      %v954 = vpop.permute.xlu0 %953
      %955 = vrot.lane.b32.xlu0 %v936, 32
      %v956 = vpop.permute.xlu0 %955
      %957 = vrot.lane.b32.xlu0 %v937, 32
      %v958 = vpop.permute.xlu0 %957
      %959 = vrot.lane.b32.xlu0 %v938, 32
      %v960 = vpop.permute.xlu0 %959
      %961 = vrot.lane.b32.xlu0 %v939, 32
      %v962 = vpop.permute.xlu0 %961
      %963 = vrot.lane.b32.xlu0 %v940, 32
      %v964 = vpop.permute.xlu0 %963
      %v973 = vmul.f32 %v927, %v950
      %v974 = vmul.f32 %v930, %v952
      %v975 = vmul.f32 %v927, %v954
      %v976 = vmul.f32 %v930, %v956
      %v977 = vmul.f32 %v927, %v958
      %v978 = vmul.f32 %v930, %v960
      %v979 = vmul.f32 %v927, %v962
      %v980 = vmul.f32 %v930, %v964
      %981 = vrot.lane.b32.xlu0 %v933, 64
      %v982 = vpop.permute.xlu0 %981
      %983 = vrot.lane.b32.xlu0 %v934, 64
      %v984 = vpop.permute.xlu0 %983
      %985 = vrot.lane.b32.xlu0 %v935, 64
      %v986 = vpop.permute.xlu0 %985
      %987 = vrot.lane.b32.xlu0 %v936, 64
      %v988 = vpop.permute.xlu0 %987
      %989 = vrot.lane.b32.xlu0 %v937, 64
      %v990 = vpop.permute.xlu0 %989
      %991 = vrot.lane.b32.xlu0 %v938, 64
      %v992 = vpop.permute.xlu0 %991
      %993 = vrot.lane.b32.xlu0 %v939, 64
      %v994 = vpop.permute.xlu0 %993
      %995 = vrot.lane.b32.xlu0 %v940, 64
      %v996 = vpop.permute.xlu0 %995
      %v1005 = vmul.f32 %v927, %v982
      %v1006 = vmul.f32 %v930, %v984
      %v1007 = vmul.f32 %v927, %v986
      %v1008 = vmul.f32 %v930, %v988
      %v1009 = vmul.f32 %v927, %v990
      %v1010 = vmul.f32 %v930, %v992
      %v1011 = vmul.f32 %v927, %v994
      %v1012 = vmul.f32 %v930, %v996
      %v1013 = vpack.c.bf16 %v930, %v927
      %v1014 = vpack.c.bf16 %v974, %v973
      %v1015 = vpack.c.bf16 %v976, %v975
      %v1016 = vpack.c.bf16 %v978, %v977
      %v1017 = vpack.c.bf16 %v980, %v979
      %1022 = vrot.lane.b32.xlu0 %v1014, 96
      %v1023 = vpop.permute.xlu0 %1022
      %1024 = vrot.lane.b32.xlu0 %v1015, 96
      %v1025 = vpop.permute.xlu0 %1024
      %1026 = vrot.lane.b32.xlu0 %v1016, 96
      %v1027 = vpop.permute.xlu0 %1026
      %1028 = vrot.lane.b32.xlu0 %v1017, 96
      %v1029 = vpop.permute.xlu0 %1028
      %v1031 = vsel %vm255, %v1013, 0
      %v1034 = vsel %vm255, %v1023, 0
      %v1037 = vsel %vm255, %v1025, 0
      %v1040 = vsel %vm255, %v1027, 0
      %v1043 = vsel %vm255, %v1029, 0
      %1045 = vmatprep.subr.bf16.mxu0 0
      %1046 = vmatpush1.bf16.xpose.msra.mxu0 %v1034
      %1047 = vmatprep.subr.bf16.mxu0 0
      %1048 = vmatpush1.bf16.xpose.msra.mxu0 %v1037
      %1049 = vmatprep.subr.bf16.mxu0 0
      %1050 = vmatpush1.bf16.xpose.msra.mxu0 %v1040
      %1051 = vmatprep.subr.bf16.mxu0 0
      %1052 = vmatpush1.bf16.xpose.msra.mxu0 %v1043
      %1053 = vmatprep.subr.bf16.mxu0 0
      %1054 = vmatpush1.bf16.xpose.msra.mxu0 0
      %1055 = vmatprep.subr.bf16.mxu0 0
      %1056 = vmatpush1.bf16.xpose.msra.mxu0 0
      %1057 = vmatprep.subr.bf16.mxu0 0
      %1058 = vmatpush1.bf16.xpose.msra.mxu0 0
      %1059 = vmatprep.subr.bf16.mxu0 0
      %1060 = vmatpush1.bf16.xpose.msra.mxu0 0
      %1061 = vmatprep.subr.bf16.mxu0 0
      %1062 = vmatpush1.bf16.xpose.msra.mxu0 0
      %1063 = vmatprep.subr.bf16.mxu0 0
      %1064 = vmatpush1.bf16.xpose.msra.mxu0 0
      %1065 = vmatprep.subr.bf16.mxu0 0
      %1066 = vmatpush1.bf16.xpose.msra.mxu0 0
      %1067 = vmatprep.subr.bf16.mxu0 0
      %1068 = vmatpush1.bf16.xpose.msra.mxu0 0
      %1069 = vmatprep.subr.bf16.mxu0 0
      %1070 = vmatpush1.bf16.xpose.msra.mxu0 0
      %1071 = vmatprep.subr.bf16.mxu0 0
      %1072 = vmatpush1.bf16.xpose.msra.mxu0 0
      %1073 = vmatprep.subr.bf16.mxu0 0
      %1074 = vmatpush1.bf16.xpose.msra.mxu0 0
      %1075 = vmatprep.subr.bf16.mxu0 0
      %1076 = vmatpush1.bf16.xpose.msra.mxu0 0
      %1077 = vmatprep.mubr.bf16.mxu0 0
      %1078 = vmatmul.mubr.bf16.gmra.mrb[0].mxu0 %v1031
      %v1079 = vpop.f32.mrb[0].mxu0
      %v1080 = vadd.f32 0.0, %v1079
      %v1081 = vpop.f32.mrb[0].mxu0
      %v1082 = vpop.f32.mrb[0].mxu0
      %v1083 = vadd.f32 0.0, %v1082
      %v1084 = vpop.f32.mrb[0].mxu0
      %1085 = vdwg.mxu0
      %v1086 = vsel %vm453, %v1080, -inf
      %1087 = vmax.xlane.f32.xlu0 %v1086
      %v1088 = vpop.xlane.xlu0 %1087
      %v1089 = vsel %vm453, %v1083, -inf
      %1090 = vmax.xlane.f32.xlu0 %v1089
      %v1091 = vpop.xlane.xlu0 %1090
      %v1092 = vsub.f32 %v1080, %v1088
      %v1093 = vsub.f32 %v1083, %v1091
      %v1094 = vmul.f32 %v1092, 1.442695
      %v1095 = vpow.pop %v1094
      %v1096 = vmul.f32 %v1093, 1.442695
      %v1097 = vpow.pop %v1096
      %v1099 = vsel %vm453, %v1095, 0
      %v1102 = vsel %vm453, %v1097, 0
      %1104 = vmatprep.subr.mxu0 0.0
      %1105 = vmatpush1.msra.mxu0 %v933
      %1106 = vmatprep.subr.mxu0 0.0
      %1107 = vmatpush1.msra.mxu0 %v934
      %1108 = vmatprep.subr.mxu0 0.0
      %1109 = vmatpush1.msra.mxu0 %v935
      %1110 = vmatprep.subr.mxu0 0.0
      %1111 = vmatpush1.msra.mxu0 %v936
      %1112 = vmatprep.subr.mxu0 0.0
      %1113 = vmatpush1.msra.mxu0 %v937
      %1114 = vmatprep.subr.mxu0 0.0
      %1115 = vmatpush1.msra.mxu0 %v938
      %1116 = vmatprep.subr.mxu0 0.0
      %1117 = vmatpush1.msra.mxu0 %v939
      %1118 = vmatprep.subr.mxu0 0.0
      %1119 = vmatpush1.msra.mxu0 %v940
      %1120 = vmatprep.subr.mxu0 0.0
      %1121 = vmatpush1.msra.mxu0 0.0
      %1122 = vmatprep.subr.mxu0 0.0
      %1123 = vmatpush1.msra.mxu0 0.0
      %1124 = vmatprep.subr.mxu0 0.0
      %1125 = vmatpush1.msra.mxu0 0.0
      %1126 = vmatprep.subr.mxu0 0.0
      %1127 = vmatpush1.msra.mxu0 0.0
      %1128 = vmatprep.subr.mxu0 0.0
      %1129 = vmatpush1.msra.mxu0 0.0
      %1130 = vmatprep.subr.mxu0 0.0
      %1131 = vmatpush1.msra.mxu0 0.0
      %1132 = vmatprep.subr.mxu0 0.0
      %1133 = vmatpush1.msra.mxu0 0.0
      %1134 = vmatprep.subr.mxu0 0.0
      %1135 = vmatpush1.msra.mxu0 0.0
      %1136 = vmatprep.subr.mxu0 0.0
      %1137 = vmatpush1.msra.mxu0 0.0
      %1138 = vmatprep.subr.mxu0 0.0
      %1139 = vmatpush1.msra.mxu0 0.0
      %1140 = vmatprep.subr.mxu0 0.0
      %1141 = vmatpush1.msra.mxu0 0.0
      %1142 = vmatprep.subr.mxu0 0.0
      %1143 = vmatpush1.msra.mxu0 0.0
      %1144 = vmatprep.subr.mxu0 0.0
      %1145 = vmatpush1.msra.mxu0 0.0
      %1146 = vmatprep.subr.mxu0 0.0
      %1147 = vmatpush1.msra.mxu0 0.0
      %1148 = vmatprep.subr.mxu0 0.0
      %1149 = vmatpush1.msra.mxu0 0.0
      %1150 = vmatprep.subr.mxu0 0.0
      %1151 = vmatpush1.msra.mxu0 0.0
      %1152 = vmatprep.subr.mxu0 0.0
      %1153 = vmatpush1.msra.mxu0 0.0
      %1154 = vmatprep.subr.mxu0 0.0
      %1155 = vmatpush1.msra.mxu0 0.0
      %1156 = vmatprep.subr.mxu0 0.0
      %1157 = vmatpush1.msra.mxu0 0.0
      %1158 = vmatprep.subr.mxu0 0.0
      %1159 = vmatpush1.msra.mxu0 0.0
      %1160 = vmatprep.subr.mxu0 0.0
      %1161 = vmatpush1.msra.mxu0 0.0
      %1162 = vmatprep.subr.mxu0 0.0
      %1163 = vmatpush1.msra.mxu0 0.0
      %1164 = vmatprep.subr.mxu0 0.0
      %1165 = vmatpush1.msra.mxu0 0.0
      %1166 = vmatprep.subr.mxu0 0.0
      %1167 = vmatpush1.msra.mxu0 0.0
      %1168 = vmatprep.mubr.f32.mxu0 0.0
      %1169 = vmatmul.mubr.f32.gmra.mrb[0].mxu0 %v1099
      %v1170 = vpop.f32.mrb[0].mxu0
      %v1171 = vadd.f32 0.0, %v1170
      %v1172 = vpop.f32.mrb[0].mxu0
      %1173 = vmatprep.mubr.f32.mxu0 0.0
      %1174 = vmatmul.mubr.f32.gmra.mrb[0].mxu0 %v1102
      %v1175 = vpop.f32.mrb[0].mxu0
      %v1176 = vadd.f32 0.0, %v1175
      %v1177 = vpop.f32.mrb[0].mxu0
      %1178 = vdwg.mxu0
      %v1179 = vpack.c.bf16 %v1097, %v1095
      %v1180 = vpack.c.bf16 %v1006, %v1005
      %v1181 = vpack.c.bf16 %v1008, %v1007
      %v1182 = vpack.c.bf16 %v1010, %v1009
      %v1183 = vpack.c.bf16 %v1012, %v1011
      %1188 = vrot.lane.b32.xlu0 %v1180, 64
      %v1189 = vpop.permute.xlu0 %1188
      %1190 = vrot.lane.b32.xlu0 %v1181, 64
      %v1191 = vpop.permute.xlu0 %1190
      %1192 = vrot.lane.b32.xlu0 %v1182, 64
      %v1193 = vpop.permute.xlu0 %1192
      %1194 = vrot.lane.b32.xlu0 %v1183, 64
      %v1195 = vpop.permute.xlu0 %1194
      %v1201 = vsel %vm453, %v1179, 0
      %1203 = vmatprep.subr.bf16.mxu0 0
      %1204 = vmatpush1.bf16.msra.mxu0 %v1189
      %1205 = vmatprep.subr.bf16.mxu0 0
      %1206 = vmatpush1.bf16.msra.mxu0 %v1191
      %1207 = vmatprep.subr.bf16.mxu0 0
      %1208 = vmatpush1.bf16.msra.mxu0 %v1193
      %1209 = vmatprep.subr.bf16.mxu0 0
      %1210 = vmatpush1.bf16.msra.mxu0 %v1195
      %1211 = vmatprep.subr.bf16.mxu0 0
      %1212 = vmatpush1.bf16.msra.mxu0 0
      %1213 = vmatprep.subr.bf16.mxu0 0
      %1214 = vmatpush1.bf16.msra.mxu0 0
      %1215 = vmatprep.subr.bf16.mxu0 0
      %1216 = vmatpush1.bf16.msra.mxu0 0
      %1217 = vmatprep.subr.bf16.mxu0 0
      %1218 = vmatpush1.bf16.msra.mxu0 0
      %1219 = vmatprep.subr.bf16.mxu0 0
      %1220 = vmatpush1.bf16.msra.mxu0 0
      %1221 = vmatprep.subr.bf16.mxu0 0
      %1222 = vmatpush1.bf16.msra.mxu0 0
      %1223 = vmatprep.subr.bf16.mxu0 0
      %1224 = vmatpush1.bf16.msra.mxu0 0
      %1225 = vmatprep.subr.bf16.mxu0 0
      %1226 = vmatpush1.bf16.msra.mxu0 0
      %1227 = vmatprep.subr.bf16.mxu0 0
      %1228 = vmatpush1.bf16.msra.mxu0 0
      %1229 = vmatprep.subr.bf16.mxu0 0
      %1230 = vmatpush1.bf16.msra.mxu0 0
      %1231 = vmatprep.subr.bf16.mxu0 0
      %1232 = vmatpush1.bf16.msra.mxu0 0
      %1233 = vmatprep.subr.bf16.mxu0 0
      %1234 = vmatpush1.bf16.msra.mxu0 0
      %1235 = vmatprep.mubr.bf16.mxu0 0
      %1236 = vmatmul.mubr.bf16.gmra.mrb[0].mxu0 %v1201
      %v1237 = vpop.f32.mrb[0].mxu0
      %v1238 = vadd.f32 0.0, %v1237
      %v1239 = vpop.f32.mrb[0].mxu0
      %v1240 = vpop.f32.mrb[0].mxu0
      %v1241 = vadd.f32 0.0, %v1240
      %v1242 = vpop.f32.mrb[0].mxu0
      %1243 = vdwg.mxu0
      %v1244 = vrcp.pop %v1171
      %v1245 = vrcp.pop %v1176
      %v1246 = vmul.f32 %v1238, %v1244
      %v1247 = vmul.f32 %v1241, %v1245
      %v1248 = vld [vmem:[%s2 + $0x220] sm:$0xff]
      %v1249 = vld [vmem:[%s2 + $0x228] sm:$0xff]
      %v1250 = vld [vmem:[%s2 + $0x230] sm:$0xff]
      %v1251 = vld [vmem:[%s2 + $0x238] sm:$0xff]
      %v1252 = vpack.c.bf16 %v1247, %v1246
      %v1253 = vpack.c.bf16 %v1249, %v1248
      %v1254 = vpack.c.bf16 %v1251, %v1250
      %v1255 = vld [vmem:[%s2 + $0x240] sm:$0x1]
      %v1256 = vlaneseq
      %v1257 = vshrl.u32 %v1256, 7
      %v1258 = vsub.s32 0, %v1257
      %v1259 = vrot.slane %v1255, %v1258
      %v1261 = vsel %vm255, %v1252, 0
      %1263 = vmatprep.subr.bf16.mxu0 0
      %1264 = vmatpush1.bf16.msra.mxu0 %v1253
      %1265 = vmatprep.subr.bf16.mxu0 0
      %1266 = vmatpush1.bf16.msra.mxu0 %v1254
      %1267 = vmatprep.subr.bf16.mxu0 0
      %1268 = vmatpush1.bf16.msra.mxu0 0
      %1269 = vmatprep.subr.bf16.mxu0 0
      %1270 = vmatpush1.bf16.msra.mxu0 0
      %1271 = vmatprep.subr.bf16.mxu0 0
      %1272 = vmatpush1.bf16.msra.mxu0 0
      %1273 = vmatprep.subr.bf16.mxu0 0
      %1274 = vmatpush1.bf16.msra.mxu0 0
      %1275 = vmatprep.subr.bf16.mxu0 0
      %1276 = vmatpush1.bf16.msra.mxu0 0
      %1277 = vmatprep.subr.bf16.mxu0 0
      %1278 = vmatpush1.bf16.msra.mxu0 0
      %1279 = vmatprep.subr.bf16.mxu0 0
      %1280 = vmatpush1.bf16.msra.mxu0 0
      %1281 = vmatprep.subr.bf16.mxu0 0
      %1282 = vmatpush1.bf16.msra.mxu0 0
      %1283 = vmatprep.subr.bf16.mxu0 0
      %1284 = vmatpush1.bf16.msra.mxu0 0
      %1285 = vmatprep.subr.bf16.mxu0 0
      %1286 = vmatpush1.bf16.msra.mxu0 0
      %1287 = vmatprep.subr.bf16.mxu0 0
      %1288 = vmatpush1.bf16.msra.mxu0 0
      %1289 = vmatprep.subr.bf16.mxu0 0
      %1290 = vmatpush1.bf16.msra.mxu0 0
      %1291 = vmatprep.subr.bf16.mxu0 0
      %1292 = vmatpush1.bf16.msra.mxu0 0
      %1293 = vmatprep.subr.bf16.mxu0 0
      %1294 = vmatpush1.bf16.msra.mxu0 0
      %1295 = vmatprep.mubr.bf16.mxu0 0
      %1296 = vmatmul.mubr.bf16.gmra.mrb[0].mxu0 %v1261
      %v1297 = vpop.f32.mrb[0].mxu0
      %v1298 = vadd.f32 %v1259, %v1297
      %v1299 = vpop.f32.mrb[0].mxu0
      %v1300 = vpop.f32.mrb[0].mxu0
      %v1301 = vadd.f32 %v1259, %v1300
      %v1302 = vpop.f32.mrb[0].mxu0
      %1303 = vdwg.mxu0
      %v1304 = vadd.f32 %v875, %v1298
      %v1305 = vadd.f32 %v876, %v1301
      %v1306 = vsel %vm255, %v1304, 0.0
      %1307 = vadd.xlane.f32.xlu0 %v1306
      %v1308 = vpop.xlane.xlu0 %1307
      %v1309 = vsel %vm255, %v1305, 0.0
      %1310 = vadd.xlane.f32.xlu0 %v1309
      %v1311 = vpop.xlane.xlu0 %1310
      %v1312 = vmul.f32 %v1308, %v680
      %v1313 = vmul.f32 %v1311, %v680
      %v1314 = vsub.f32 %v1304, %v1312
      %v1315 = vsub.f32 %v1305, %v1313
      %v1316 = vmul.f32 %v1314, %v1314
      %v1317 = vmul.f32 %v1315, %v1315
      %v1318 = vsel %vm255, %v1316, 0.0
      %1319 = vadd.xlane.f32.xlu0 %v1318
      %v1320 = vpop.xlane.xlu0 %1319
      %v1321 = vsel %vm255, %v1317, 0.0
      %1322 = vadd.xlane.f32.xlu0 %v1321
      %v1323 = vpop.xlane.xlu0 %1322
      %v1324 = vmul.f32 %v1320, %v680
      %v1325 = vmul.f32 %v1323, %v680
      %v1326 = vadd.f32 %v1324, 1e-05
      %v1327 = vadd.f32 %v1325, 1e-05
      %v1328 = vrsqrt.pop %v1326
      %v1329 = vrsqrt.pop %v1327
      %v1330 = vmul.f32 %v1314, %v1328
      %v1331 = vmul.f32 %v1315, %v1329
      %v1332 = vld [vmem:[%s2 + $0x2b8] sm:$0x1]
      %v1333 = vlaneseq
      %v1334 = vshrl.u32 %v1333, 7
      %v1335 = vsub.s32 0, %v1334
      %v1336 = vrot.slane %v1332, %v1335
      %v1337 = vmul.f32 %v1330, %v1336
      %v1338 = vmul.f32 %v1331, %v1336
      %v1339 = vld [vmem:[%s2 + $0x2c0] sm:$0x1]
      %v1340 = vlaneseq
      %v1341 = vshrl.u32 %v1340, 7
      %v1342 = vsub.s32 0, %v1341
      %v1343 = vrot.slane %v1339, %v1342
      %v1344 = vadd.f32 %v1337, %v1343
      %v1345 = vadd.f32 %v1338, %v1343
      %v1346 = vld [vmem:[%s2 + $0x248] sm:$0xff]
      %v1347 = vld [vmem:[%s2 + $0x250] sm:$0xff]
      %v1348 = vld [vmem:[%s2 + $0x258] sm:$0xff]
      %v1349 = vld [vmem:[%s2 + $0x260] sm:$0xff]
      %v1350 = vpack.c.bf16 %v1345, %v1344
      %v1351 = vpack.c.bf16 %v1347, %v1346
      %v1352 = vpack.c.bf16 %v1349, %v1348
      %v1353 = vld [vmem:[%s2 + $0x268] sm:$0x1]
      %v1354 = vlaneseq
      %v1355 = vshrl.u32 %v1354, 7
      %v1356 = vsub.s32 0, %v1355
      %v1357 = vrot.slane %v1353, %v1356
      %v1359 = vsel %vm255, %v1350, 0
      %1361 = vmatprep.subr.bf16.mxu0 0
      %1362 = vmatpush1.bf16.msra.mxu0 %v1351
      %1363 = vmatprep.subr.bf16.mxu0 0
      %1364 = vmatpush1.bf16.msra.mxu0 %v1352
      %1365 = vmatprep.subr.bf16.mxu0 0
      %1366 = vmatpush1.bf16.msra.mxu0 0
      %1367 = vmatprep.subr.bf16.mxu0 0
      %1368 = vmatpush1.bf16.msra.mxu0 0
      %1369 = vmatprep.subr.bf16.mxu0 0
      %1370 = vmatpush1.bf16.msra.mxu0 0
      %1371 = vmatprep.subr.bf16.mxu0 0
      %1372 = vmatpush1.bf16.msra.mxu0 0
      %1373 = vmatprep.subr.bf16.mxu0 0
      %1374 = vmatpush1.bf16.msra.mxu0 0
      %1375 = vmatprep.subr.bf16.mxu0 0
      %1376 = vmatpush1.bf16.msra.mxu0 0
      %1377 = vmatprep.subr.bf16.mxu0 0
      %1378 = vmatpush1.bf16.msra.mxu0 0
      %1379 = vmatprep.subr.bf16.mxu0 0
      %1380 = vmatpush1.bf16.msra.mxu0 0
      %1381 = vmatprep.subr.bf16.mxu0 0
      %1382 = vmatpush1.bf16.msra.mxu0 0
      %1383 = vmatprep.subr.bf16.mxu0 0
      %1384 = vmatpush1.bf16.msra.mxu0 0
      %1385 = vmatprep.subr.bf16.mxu0 0
      %1386 = vmatpush1.bf16.msra.mxu0 0
      %1387 = vmatprep.subr.bf16.mxu0 0
      %1388 = vmatpush1.bf16.msra.mxu0 0
      %1389 = vmatprep.subr.bf16.mxu0 0
      %1390 = vmatpush1.bf16.msra.mxu0 0
      %1391 = vmatprep.subr.bf16.mxu0 0
      %1392 = vmatpush1.bf16.msra.mxu0 0
      %1393 = vmatprep.mubr.bf16.mxu0 0
      %1394 = vmatmul.mubr.bf16.gmra.mrb[0].mxu0 %v1359
      %v1395 = vpop.f32.mrb[0].mxu0
      %v1396 = vadd.f32 %v1357, %v1395
      %v1397 = vpop.f32.mrb[0].mxu0
      %v1398 = vpop.f32.mrb[0].mxu0
      %v1399 = vadd.f32 %v1357, %v1398
      %v1400 = vpop.f32.mrb[0].mxu0
      %1401 = vdwg.mxu0
      %v1402 = vmax.f32 %v1396, 0.0
      %v1403 = vmax.f32 %v1399, 0.0
      %v1404 = vld [vmem:[%s2 + $0x270] sm:$0xff]
      %v1405 = vld [vmem:[%s2 + $0x278] sm:$0xff]
      %v1406 = vld [vmem:[%s2 + $0x280] sm:$0xff]
      %v1407 = vld [vmem:[%s2 + $0x288] sm:$0xff]
      %v1408 = vld [vmem:[%s2 + $0x290] sm:$0xff]
      %v1409 = vld [vmem:[%s2 + $0x298] sm:$0xff]
      %v1410 = vld [vmem:[%s2 + $0x2a0] sm:$0xff]
      %v1411 = vld [vmem:[%s2 + $0x2a8] sm:$0xff]
      %v1412 = vpack.c.bf16 %v1403, %v1402
      %v1413 = vpack.c.bf16 %v1405, %v1404
      %v1414 = vpack.c.bf16 %v1407, %v1406
      %v1415 = vpack.c.bf16 %v1409, %v1408
      %v1416 = vpack.c.bf16 %v1411, %v1410
      %v1417 = vld [vmem:[%s2 + $0x2b0] sm:$0x1]
      %v1418 = vlaneseq
      %v1419 = vshrl.u32 %v1418, 7
      %v1420 = vsub.s32 0, %v1419
      %v1421 = vrot.slane %v1417, %v1420
      %v1423 = vsel %vm453, %v1412, 0
      %1425 = vmatprep.subr.bf16.mxu0 0
      %1426 = vmatpush1.bf16.msra.mxu0 %v1413
      %1427 = vmatprep.subr.bf16.mxu0 0
      %1428 = vmatpush1.bf16.msra.mxu0 %v1414
      %1429 = vmatprep.subr.bf16.mxu0 0
      %1430 = vmatpush1.bf16.msra.mxu0 %v1415
      %1431 = vmatprep.subr.bf16.mxu0 0
      %1432 = vmatpush1.bf16.msra.mxu0 %v1416
      %1433 = vmatprep.subr.bf16.mxu0 0
      %1434 = vmatpush1.bf16.msra.mxu0 0
      %1435 = vmatprep.subr.bf16.mxu0 0
      %1436 = vmatpush1.bf16.msra.mxu0 0
      %1437 = vmatprep.subr.bf16.mxu0 0
      %1438 = vmatpush1.bf16.msra.mxu0 0
      %1439 = vmatprep.subr.bf16.mxu0 0
      %1440 = vmatpush1.bf16.msra.mxu0 0
      %1441 = vmatprep.subr.bf16.mxu0 0
      %1442 = vmatpush1.bf16.msra.mxu0 0
      %1443 = vmatprep.subr.bf16.mxu0 0
      %1444 = vmatpush1.bf16.msra.mxu0 0
      %1445 = vmatprep.subr.bf16.mxu0 0
      %1446 = vmatpush1.bf16.msra.mxu0 0
      %1447 = vmatprep.subr.bf16.mxu0 0
      %1448 = vmatpush1.bf16.msra.mxu0 0
      %1449 = vmatprep.subr.bf16.mxu0 0
      %1450 = vmatpush1.bf16.msra.mxu0 0
      %1451 = vmatprep.subr.bf16.mxu0 0
      %1452 = vmatpush1.bf16.msra.mxu0 0
      %1453 = vmatprep.subr.bf16.mxu0 0
      %1454 = vmatpush1.bf16.msra.mxu0 0
      %1455 = vmatprep.subr.bf16.mxu0 0
      %1456 = vmatpush1.bf16.msra.mxu0 0
      %1457 = vmatprep.mubr.bf16.mxu0 0
      %1458 = vmatmul.mubr.bf16.gmra.mrb[0].mxu0 %v1423
      %v1459 = vpop.f32.mrb[0].mxu0
      %v1460 = vadd.f32 %v1421, %v1459
      %v1461 = vpop.f32.mrb[0].mxu0
      %v1462 = vpop.f32.mrb[0].mxu0
      %v1463 = vadd.f32 %v1421, %v1462
      %v1464 = vpop.f32.mrb[0].mxu0
      %1465 = vdwg.mxu0
      %v1466 = vadd.f32 %v1344, %v1460
      %v1467 = vadd.f32 %v1345, %v1463
      %v1468 = vsel %vm255, %v1466, 0.0
      %1469 = vadd.xlane.f32.xlu0 %v1468
      %v1470 = vpop.xlane.xlu0 %1469
      %v1471 = vsel %vm255, %v1467, 0.0
      %1472 = vadd.xlane.f32.xlu0 %v1471
      %v1473 = vpop.xlane.xlu0 %1472
      %v1474 = vmul.f32 %v1470, %v680
      %v1475 = vmul.f32 %v1473, %v680
      %v1476 = vsub.f32 %v1466, %v1474
      %v1477 = vsub.f32 %v1467, %v1475
      %v1478 = vmul.f32 %v1476, %v1476
      %v1479 = vmul.f32 %v1477, %v1477
      %v1480 = vsel %vm255, %v1478, 0.0
      %1481 = vadd.xlane.f32.xlu0 %v1480
      %v1482 = vpop.xlane.xlu0 %1481
      %v1483 = vsel %vm255, %v1479, 0.0
      %1484 = vadd.xlane.f32.xlu0 %v1483
      %v1485 = vpop.xlane.xlu0 %1484
      %v1486 = vmul.f32 %v1482, %v680
      %v1487 = vmul.f32 %v1485, %v680
      %v1488 = vadd.f32 %v1486, 1e-05
      %v1489 = vadd.f32 %v1487, 1e-05
      %v1490 = vrsqrt.pop %v1488
      %v1491 = vrsqrt.pop %v1489
      %v1492 = vmul.f32 %v1476, %v1490
      %v1493 = vmul.f32 %v1477, %v1491
      %v1494 = vld [vmem:[%s2 + $0x2c8] sm:$0x1]
      %v1495 = vlaneseq
      %v1496 = vshrl.u32 %v1495, 7
      %v1497 = vsub.s32 0, %v1496
      %v1498 = vrot.slane %v1494, %v1497
      %v1499 = vmul.f32 %v1492, %v1498
      %v1500 = vmul.f32 %v1493, %v1498
      %v1501 = vld [vmem:[%s2 + $0x2d0] sm:$0x1]
      %v1502 = vlaneseq
      %v1503 = vshrl.u32 %v1502, 7
      %v1504 = vsub.s32 0, %v1503
      %v1505 = vrot.slane %v1501, %v1504
      %v1506 = vadd.f32 %v1499, %v1505
      %v1507 = vadd.f32 %v1500, %v1505
      %v1508 = vsel %vm255, %v1506, 0.0
      %1509 = vadd.xlane.f32.xlu0 %v1508
      %v1510 = vpop.xlane.xlu0 %1509
      %v1511 = vsel %vm255, %v1507, 0.0
      %1512 = vadd.xlane.f32.xlu0 %v1511
      %v1513 = vpop.xlane.xlu0 %1512
      %v1514 = vmul.f32 %v1510, %v680
      %v1515 = vmul.f32 %v1513, %v680
      %v1516 = vsub.f32 %v1506, %v1514
      %v1517 = vsub.f32 %v1507, %v1515
      %v1518 = vmul.f32 %v1516, %v1516
      %v1519 = vmul.f32 %v1517, %v1517
      %v1520 = vsel %vm255, %v1518, 0.0
      %1521 = vadd.xlane.f32.xlu0 %v1520
      %v1522 = vpop.xlane.xlu0 %1521
      %v1523 = vsel %vm255, %v1519, 0.0
      %1524 = vadd.xlane.f32.xlu0 %v1523
      %v1525 = vpop.xlane.xlu0 %1524
      %v1526 = vmul.f32 %v1522, %v680
      %v1527 = vmul.f32 %v1525, %v680
      %v1528 = vadd.f32 %v1526, 1e-05
      %v1529 = vadd.f32 %v1527, 1e-05
      %v1530 = vrsqrt.pop %v1528
      %v1531 = vrsqrt.pop %v1529
      %v1532 = vmul.f32 %v1516, %v1530
      %v1533 = vmul.f32 %v1517, %v1531
      %v1534 = vld [vmem:[%s2 + $0xd0] sm:$0x1]
      %v1535 = vlaneseq
      %v1536 = vshrl.u32 %v1535, 7
      %v1537 = vsub.s32 0, %v1536
      %v1538 = vrot.slane %v1534, %v1537
      %v1539 = vmul.f32 %v1532, %v1538
      %v1540 = vmul.f32 %v1533, %v1538
      %v1541 = vld [vmem:[%s2 + $0xd8] sm:$0x1]
      %v1542 = vlaneseq
      %v1543 = vshrl.u32 %v1542, 7
      %v1544 = vsub.s32 0, %v1543
      %v1545 = vrot.slane %v1541, %v1544
      %v1546 = vadd.f32 %v1539, %v1545
      %v1547 = vadd.f32 %v1540, %v1545
      %v1548 = vld [vmem:[%s184] sm:$0xff]
      %v1549 = vld [vmem:[%s184 + $0x8] sm:$0xff]
      %v1550 = vld [vmem:[%s2 + $0x10] sm:$0xff]
      %v1551 = vld [vmem:[%s2 + $0x18] sm:$0xff]
      %v1552 = vld [vmem:[%s2 + $0xc0] sm:$0xff]
      %v1553 = vld [vmem:[%s2 + $0xc8] sm:$0xff]
      %v1554 = vpack.c.bf16 %v1549, %v1548
      %v1555 = vpack.c.bf16 %v1553, %v1552
      %v1557 = vsel %vm198, %v1554, 0
      %1559 = vmatprep.subr.bf16.mxu0 0
      %1560 = vmatpush1.bf16.msra.mxu0 %v1555
      %1561 = vmatprep.subr.bf16.mxu0 0
      %1562 = vmatpush1.bf16.msra.mxu0 0
      %1563 = vmatprep.subr.bf16.mxu0 0
      %1564 = vmatpush1.bf16.msra.mxu0 0
      %1565 = vmatprep.subr.bf16.mxu0 0
      %1566 = vmatpush1.bf16.msra.mxu0 0
      %1567 = vmatprep.subr.bf16.mxu0 0
      %1568 = vmatpush1.bf16.msra.mxu0 0
      %1569 = vmatprep.subr.bf16.mxu0 0
      %1570 = vmatpush1.bf16.msra.mxu0 0
      %1571 = vmatprep.subr.bf16.mxu0 0
      %1572 = vmatpush1.bf16.msra.mxu0 0
      %1573 = vmatprep.subr.bf16.mxu0 0
      %1574 = vmatpush1.bf16.msra.mxu0 0
      %1575 = vmatprep.subr.bf16.mxu0 0
      %1576 = vmatpush1.bf16.msra.mxu0 0
      %1577 = vmatprep.subr.bf16.mxu0 0
      %1578 = vmatpush1.bf16.msra.mxu0 0
      %1579 = vmatprep.subr.bf16.mxu0 0
      %1580 = vmatpush1.bf16.msra.mxu0 0
      %1581 = vmatprep.subr.bf16.mxu0 0
      %1582 = vmatpush1.bf16.msra.mxu0 0
      %1583 = vmatprep.subr.bf16.mxu0 0
      %1584 = vmatpush1.bf16.msra.mxu0 0
      %1585 = vmatprep.subr.bf16.mxu0 0
      %1586 = vmatpush1.bf16.msra.mxu0 0
      %1587 = vmatprep.subr.bf16.mxu0 0
      %1588 = vmatpush1.bf16.msra.mxu0 0
      %1589 = vmatprep.subr.bf16.mxu0 0
      %1590 = vmatpush1.bf16.msra.mxu0 0
      %1591 = vmatprep.mubr.bf16.mxu0 0
      %1592 = vmatmul.mubr.bf16.gmra.mrb[0].mxu0 %v1557
      %v1593 = vpop.f32.mrb[0].mxu0
      %v1594 = vadd.f32 %v1550, %v1593
      %v1595 = vpop.f32.mrb[0].mxu0
      %v1596 = vpop.f32.mrb[0].mxu0
      %v1597 = vadd.f32 %v1551, %v1596
      %v1598 = vpop.f32.mrb[0].mxu0
      %1599 = vdwg.mxu0
      %v1600 = vld [vmem:[%s2 + $0x2d8] sm:$0xff]
      %v1601 = vld [vmem:[%s2 + $0x2e0] sm:$0xff]
      %v1602 = vld [vmem:[%s2 + $0x2e8] sm:$0xff]
      %v1603 = vld [vmem:[%s2 + $0x2f0] sm:$0xff]
      %v1604 = vpack.c.bf16 %v1597, %v1594
      %v1605 = vpack.c.bf16 %v1601, %v1600
      %v1606 = vpack.c.bf16 %v1603, %v1602
      %v1607 = vld [vmem:[%s2 + $0x2f8] sm:$0x1]
      %v1608 = vlaneseq
      %v1609 = vshrl.u32 %v1608, 7
      %v1610 = vsub.s32 0, %v1609
      %v1611 = vrot.slane %v1607, %v1610
      %v1613 = vsel %vm255, %v1604, 0
      %1615 = vmatprep.subr.bf16.mxu0 0
      %1616 = vmatpush1.bf16.msra.mxu0 %v1605
      %1617 = vmatprep.subr.bf16.mxu0 0
      %1618 = vmatpush1.bf16.msra.mxu0 %v1606
      %1619 = vmatprep.subr.bf16.mxu0 0
      %1620 = vmatpush1.bf16.msra.mxu0 0
      %1621 = vmatprep.subr.bf16.mxu0 0
      %1622 = vmatpush1.bf16.msra.mxu0 0
      %1623 = vmatprep.subr.bf16.mxu0 0
      %1624 = vmatpush1.bf16.msra.mxu0 0
      %1625 = vmatprep.subr.bf16.mxu0 0
      %1626 = vmatpush1.bf16.msra.mxu0 0
      %1627 = vmatprep.subr.bf16.mxu0 0
      %1628 = vmatpush1.bf16.msra.mxu0 0
      %1629 = vmatprep.subr.bf16.mxu0 0
      %1630 = vmatpush1.bf16.msra.mxu0 0
      %1631 = vmatprep.subr.bf16.mxu0 0
      %1632 = vmatpush1.bf16.msra.mxu0 0
      %1633 = vmatprep.subr.bf16.mxu0 0
      %1634 = vmatpush1.bf16.msra.mxu0 0
      %1635 = vmatprep.subr.bf16.mxu0 0
      %1636 = vmatpush1.bf16.msra.mxu0 0
      %1637 = vmatprep.subr.bf16.mxu0 0
      %1638 = vmatpush1.bf16.msra.mxu0 0
      %1639 = vmatprep.subr.bf16.mxu0 0
      %1640 = vmatpush1.bf16.msra.mxu0 0
      %1641 = vmatprep.subr.bf16.mxu0 0
      %1642 = vmatpush1.bf16.msra.mxu0 0
      %1643 = vmatprep.subr.bf16.mxu0 0
      %1644 = vmatpush1.bf16.msra.mxu0 0
      %1645 = vmatprep.subr.bf16.mxu0 0
      %1646 = vmatpush1.bf16.msra.mxu0 0
      %1647 = vmatprep.mubr.bf16.mxu0 0
      %1648 = vmatmul.mubr.bf16.gmra.mrb[0].mxu0 %v1613
      %v1649 = vpop.f32.mrb[0].mxu0
      %v1650 = vadd.f32 %v1611, %v1649
      %v1651 = vpop.f32.mrb[0].mxu0
      %v1652 = vpop.f32.mrb[0].mxu0
      %v1653 = vadd.f32 %v1611, %v1652
      %v1654 = vpop.f32.mrb[0].mxu0
      %1655 = vdwg.mxu0
      %v1656 = vld [vmem:[%s2 + $0x60] sm:$0xff]
      %v1657 = vld [vmem:[%s2 + $0x68] sm:$0xff]
      %v1658 = vld [vmem:[%s2 + $0x70] sm:$0xff]
      %v1659 = vld [vmem:[%s2 + $0x78] sm:$0xff]
      %v1660 = vld [vmem:[%s2 + $0x80] sm:$0xff]
      %v1661 = vld [vmem:[%s2 + $0x88] sm:$0xff]
      %v1662 = vld [vmem:[%s2 + $0x90] sm:$0xff]
      %v1663 = vld [vmem:[%s2 + $0x98] sm:$0xff]
      %v1664 = vld [vmem:[%s2 + $0xa0] sm:$0xff]
      %v1665 = vld [vmem:[%s2 + $0xa8] sm:$0xff]
      %1674 = vrot.lane.b32.xlu0 %v1656, 32
      %v1675 = vpop.permute.xlu0 %1674
      %1676 = vrot.lane.b32.xlu0 %v1657, 32
      %v1677 = vpop.permute.xlu0 %1676
      %1678 = vrot.lane.b32.xlu0 %v1658, 32
      %v1679 = vpop.permute.xlu0 %1678
      %1680 = vrot.lane.b32.xlu0 %v1659, 32
      %v1681 = vpop.permute.xlu0 %1680
      %1682 = vrot.lane.b32.xlu0 %v1660, 32
      %v1683 = vpop.permute.xlu0 %1682
      %1684 = vrot.lane.b32.xlu0 %v1661, 32
      %v1685 = vpop.permute.xlu0 %1684
      %1686 = vrot.lane.b32.xlu0 %v1662, 32
      %v1687 = vpop.permute.xlu0 %1686
      %1688 = vrot.lane.b32.xlu0 %v1663, 32
      %v1689 = vpop.permute.xlu0 %1688
      %v1698 = vmul.f32 %v1650, %v1675
      %v1699 = vmul.f32 %v1653, %v1677
      %v1700 = vmul.f32 %v1650, %v1679
      %v1701 = vmul.f32 %v1653, %v1681
      %v1702 = vmul.f32 %v1650, %v1683
      %v1703 = vmul.f32 %v1653, %v1685
      %v1704 = vmul.f32 %v1650, %v1687
      %v1705 = vmul.f32 %v1653, %v1689
      %1706 = vrot.lane.b32.xlu0 %v1656, 64
      %v1707 = vpop.permute.xlu0 %1706
      %1708 = vrot.lane.b32.xlu0 %v1657, 64
      %v1709 = vpop.permute.xlu0 %1708
      %1710 = vrot.lane.b32.xlu0 %v1658, 64
      %v1711 = vpop.permute.xlu0 %1710
      %1712 = vrot.lane.b32.xlu0 %v1659, 64
      %v1713 = vpop.permute.xlu0 %1712
      %1714 = vrot.lane.b32.xlu0 %v1660, 64
      %v1715 = vpop.permute.xlu0 %1714
      %1716 = vrot.lane.b32.xlu0 %v1661, 64
      %v1717 = vpop.permute.xlu0 %1716
      %1718 = vrot.lane.b32.xlu0 %v1662, 64
      %v1719 = vpop.permute.xlu0 %1718
      %1720 = vrot.lane.b32.xlu0 %v1663, 64
      %v1721 = vpop.permute.xlu0 %1720
      %v1730 = vmul.f32 %v1650, %v1707
      %v1731 = vmul.f32 %v1653, %v1709
      %v1732 = vmul.f32 %v1650, %v1711
      %v1733 = vmul.f32 %v1653, %v1713
      %v1734 = vmul.f32 %v1650, %v1715
      %v1735 = vmul.f32 %v1653, %v1717
      %v1736 = vmul.f32 %v1650, %v1719
      %v1737 = vmul.f32 %v1653, %v1721
      %v1738 = vpack.c.bf16 %v1653, %v1650
      %v1739 = vpack.c.bf16 %v1699, %v1698
      %v1740 = vpack.c.bf16 %v1701, %v1700
      %v1741 = vpack.c.bf16 %v1703, %v1702
      %v1742 = vpack.c.bf16 %v1705, %v1704
      %1747 = vrot.lane.b32.xlu0 %v1739, 96
      %v1748 = vpop.permute.xlu0 %1747
      %1749 = vrot.lane.b32.xlu0 %v1740, 96
      %v1750 = vpop.permute.xlu0 %1749
      %1751 = vrot.lane.b32.xlu0 %v1741, 96
      %v1752 = vpop.permute.xlu0 %1751
      %1753 = vrot.lane.b32.xlu0 %v1742, 96
      %v1754 = vpop.permute.xlu0 %1753
      %v1756 = vsel %vm255, %v1738, 0
      %v1759 = vsel %vm255, %v1748, 0
      %v1762 = vsel %vm255, %v1750, 0
      %v1765 = vsel %vm255, %v1752, 0
      %v1768 = vsel %vm255, %v1754, 0
      %1770 = vmatprep.subr.bf16.mxu0 0
      %1771 = vmatpush1.bf16.xpose.msra.mxu0 %v1759
      %1772 = vmatprep.subr.bf16.mxu0 0
      %1773 = vmatpush1.bf16.xpose.msra.mxu0 %v1762
      %1774 = vmatprep.subr.bf16.mxu0 0
      %1775 = vmatpush1.bf16.xpose.msra.mxu0 %v1765
      %1776 = vmatprep.subr.bf16.mxu0 0
      %1777 = vmatpush1.bf16.xpose.msra.mxu0 %v1768
      %1778 = vmatprep.subr.bf16.mxu0 0
      %1779 = vmatpush1.bf16.xpose.msra.mxu0 0
      %1780 = vmatprep.subr.bf16.mxu0 0
      %1781 = vmatpush1.bf16.xpose.msra.mxu0 0
      %1782 = vmatprep.subr.bf16.mxu0 0
      %1783 = vmatpush1.bf16.xpose.msra.mxu0 0
      %1784 = vmatprep.subr.bf16.mxu0 0
      %1785 = vmatpush1.bf16.xpose.msra.mxu0 0
      %1786 = vmatprep.subr.bf16.mxu0 0
      %1787 = vmatpush1.bf16.xpose.msra.mxu0 0
      %1788 = vmatprep.subr.bf16.mxu0 0
      %1789 = vmatpush1.bf16.xpose.msra.mxu0 0
      %1790 = vmatprep.subr.bf16.mxu0 0
      %1791 = vmatpush1.bf16.xpose.msra.mxu0 0
      %1792 = vmatprep.subr.bf16.mxu0 0
      %1793 = vmatpush1.bf16.xpose.msra.mxu0 0
      %1794 = vmatprep.subr.bf16.mxu0 0
      %1795 = vmatpush1.bf16.xpose.msra.mxu0 0
      %1796 = vmatprep.subr.bf16.mxu0 0
      %1797 = vmatpush1.bf16.xpose.msra.mxu0 0
      %1798 = vmatprep.subr.bf16.mxu0 0
      %1799 = vmatpush1.bf16.xpose.msra.mxu0 0
      %1800 = vmatprep.subr.bf16.mxu0 0
      %1801 = vmatpush1.bf16.xpose.msra.mxu0 0
      %1802 = vmatprep.mubr.bf16.mxu0 0
      %1803 = vmatmul.mubr.bf16.gmra.mrb[0].mxu0 %v1756
      %v1804 = vpop.f32.mrb[0].mxu0
      %v1805 = vadd.f32 %v1664, %v1804
      %v1806 = vpop.f32.mrb[0].mxu0
      %v1807 = vpop.f32.mrb[0].mxu0
      %v1808 = vadd.f32 %v1665, %v1807
      %v1809 = vpop.f32.mrb[0].mxu0
      %1810 = vdwg.mxu0
      %v1811 = vsel %vm453, %v1805, -inf
      %1812 = vmax.xlane.f32.xlu0 %v1811
      %v1813 = vpop.xlane.xlu0 %1812
      %v1814 = vsel %vm453, %v1808, -inf
      %1815 = vmax.xlane.f32.xlu0 %v1814
      %v1816 = vpop.xlane.xlu0 %1815
      %v1817 = vsub.f32 %v1805, %v1813
      %v1818 = vsub.f32 %v1808, %v1816
      %v1819 = vmul.f32 %v1817, 1.442695
      %v1820 = vpow.pop %v1819
      %v1821 = vmul.f32 %v1818, 1.442695
      %v1822 = vpow.pop %v1821
      %v1824 = vsel %vm453, %v1820, 0
      %v1827 = vsel %vm453, %v1822, 0
      %1829 = vmatprep.subr.mxu0 0.0
      %1830 = vmatpush1.msra.mxu0 %v1656
      %1831 = vmatprep.subr.mxu0 0.0
      %1832 = vmatpush1.msra.mxu0 %v1657
      %1833 = vmatprep.subr.mxu0 0.0
      %1834 = vmatpush1.msra.mxu0 %v1658
      %1835 = vmatprep.subr.mxu0 0.0
      %1836 = vmatpush1.msra.mxu0 %v1659
      %1837 = vmatprep.subr.mxu0 0.0
      %1838 = vmatpush1.msra.mxu0 %v1660
      %1839 = vmatprep.subr.mxu0 0.0
      %1840 = vmatpush1.msra.mxu0 %v1661
      %1841 = vmatprep.subr.mxu0 0.0
      %1842 = vmatpush1.msra.mxu0 %v1662
      %1843 = vmatprep.subr.mxu0 0.0
      %1844 = vmatpush1.msra.mxu0 %v1663
      %1845 = vmatprep.subr.mxu0 0.0
      %1846 = vmatpush1.msra.mxu0 0.0
      %1847 = vmatprep.subr.mxu0 0.0
      %1848 = vmatpush1.msra.mxu0 0.0
      %1849 = vmatprep.subr.mxu0 0.0
      %1850 = vmatpush1.msra.mxu0 0.0
      %1851 = vmatprep.subr.mxu0 0.0
      %1852 = vmatpush1.msra.mxu0 0.0
      %1853 = vmatprep.subr.mxu0 0.0
      %1854 = vmatpush1.msra.mxu0 0.0
      %1855 = vmatprep.subr.mxu0 0.0
      %1856 = vmatpush1.msra.mxu0 0.0
      %1857 = vmatprep.subr.mxu0 0.0
      %1858 = vmatpush1.msra.mxu0 0.0
      %1859 = vmatprep.subr.mxu0 0.0
      %1860 = vmatpush1.msra.mxu0 0.0
      %1861 = vmatprep.subr.mxu0 0.0
      %1862 = vmatpush1.msra.mxu0 0.0
      %1863 = vmatprep.subr.mxu0 0.0
      %1864 = vmatpush1.msra.mxu0 0.0
      %1865 = vmatprep.subr.mxu0 0.0
      %1866 = vmatpush1.msra.mxu0 0.0
      %1867 = vmatprep.subr.mxu0 0.0
      %1868 = vmatpush1.msra.mxu0 0.0
      %1869 = vmatprep.subr.mxu0 0.0
      %1870 = vmatpush1.msra.mxu0 0.0
      %1871 = vmatprep.subr.mxu0 0.0
      %1872 = vmatpush1.msra.mxu0 0.0
      %1873 = vmatprep.subr.mxu0 0.0
      %1874 = vmatpush1.msra.mxu0 0.0
      %1875 = vmatprep.subr.mxu0 0.0
      %1876 = vmatpush1.msra.mxu0 0.0
      %1877 = vmatprep.subr.mxu0 0.0
      %1878 = vmatpush1.msra.mxu0 0.0
      %1879 = vmatprep.subr.mxu0 0.0
      %1880 = vmatpush1.msra.mxu0 0.0
      %1881 = vmatprep.subr.mxu0 0.0
      %1882 = vmatpush1.msra.mxu0 0.0
      %1883 = vmatprep.subr.mxu0 0.0
      %1884 = vmatpush1.msra.mxu0 0.0
      %1885 = vmatprep.subr.mxu0 0.0
      %1886 = vmatpush1.msra.mxu0 0.0
      %1887 = vmatprep.subr.mxu0 0.0
      %1888 = vmatpush1.msra.mxu0 0.0
      %1889 = vmatprep.subr.mxu0 0.0
      %1890 = vmatpush1.msra.mxu0 0.0
      %1891 = vmatprep.subr.mxu0 0.0
      %1892 = vmatpush1.msra.mxu0 0.0
      %1893 = vmatprep.mubr.f32.mxu0 0.0
      %1894 = vmatmul.mubr.f32.gmra.mrb[0].mxu0 %v1824
      %v1895 = vpop.f32.mrb[0].mxu0
      %v1896 = vadd.f32 0.0, %v1895
      %v1897 = vpop.f32.mrb[0].mxu0
      %1898 = vmatprep.mubr.f32.mxu0 0.0
      %1899 = vmatmul.mubr.f32.gmra.mrb[0].mxu0 %v1827
      %v1900 = vpop.f32.mrb[0].mxu0
      %v1901 = vadd.f32 0.0, %v1900
      %v1902 = vpop.f32.mrb[0].mxu0
      %1903 = vdwg.mxu0
      %v1904 = vpack.c.bf16 %v1822, %v1820
      %v1905 = vpack.c.bf16 %v1731, %v1730
      %v1906 = vpack.c.bf16 %v1733, %v1732
      %v1907 = vpack.c.bf16 %v1735, %v1734
      %v1908 = vpack.c.bf16 %v1737, %v1736
      %1913 = vrot.lane.b32.xlu0 %v1905, 64
      %v1914 = vpop.permute.xlu0 %1913
      %1915 = vrot.lane.b32.xlu0 %v1906, 64
      %v1916 = vpop.permute.xlu0 %1915
      %1917 = vrot.lane.b32.xlu0 %v1907, 64
      %v1918 = vpop.permute.xlu0 %1917
      %1919 = vrot.lane.b32.xlu0 %v1908, 64
      %v1920 = vpop.permute.xlu0 %1919
      %v1926 = vsel %vm453, %v1904, 0
      %1928 = vmatprep.subr.bf16.mxu0 0
      %1929 = vmatpush1.bf16.msra.mxu0 %v1914
      %1930 = vmatprep.subr.bf16.mxu0 0
      %1931 = vmatpush1.bf16.msra.mxu0 %v1916
      %1932 = vmatprep.subr.bf16.mxu0 0
      %1933 = vmatpush1.bf16.msra.mxu0 %v1918
      %1934 = vmatprep.subr.bf16.mxu0 0
      %1935 = vmatpush1.bf16.msra.mxu0 %v1920
      %1936 = vmatprep.subr.bf16.mxu0 0
      %1937 = vmatpush1.bf16.msra.mxu0 0
      %1938 = vmatprep.subr.bf16.mxu0 0
      %1939 = vmatpush1.bf16.msra.mxu0 0
      %1940 = vmatprep.subr.bf16.mxu0 0
      %1941 = vmatpush1.bf16.msra.mxu0 0
      %1942 = vmatprep.subr.bf16.mxu0 0
      %1943 = vmatpush1.bf16.msra.mxu0 0
      %1944 = vmatprep.subr.bf16.mxu0 0
      %1945 = vmatpush1.bf16.msra.mxu0 0
      %1946 = vmatprep.subr.bf16.mxu0 0
      %1947 = vmatpush1.bf16.msra.mxu0 0
      %1948 = vmatprep.subr.bf16.mxu0 0
      %1949 = vmatpush1.bf16.msra.mxu0 0
      %1950 = vmatprep.subr.bf16.mxu0 0
      %1951 = vmatpush1.bf16.msra.mxu0 0
      %1952 = vmatprep.subr.bf16.mxu0 0
      %1953 = vmatpush1.bf16.msra.mxu0 0
      %1954 = vmatprep.subr.bf16.mxu0 0
      %1955 = vmatpush1.bf16.msra.mxu0 0
      %1956 = vmatprep.subr.bf16.mxu0 0
      %1957 = vmatpush1.bf16.msra.mxu0 0
      %1958 = vmatprep.subr.bf16.mxu0 0
      %1959 = vmatpush1.bf16.msra.mxu0 0
      %1960 = vmatprep.mubr.bf16.mxu0 0
      %1961 = vmatmul.mubr.bf16.gmra.mrb[0].mxu0 %v1926
      %v1962 = vpop.f32.mrb[0].mxu0
      %v1963 = vadd.f32 0.0, %v1962
      %v1964 = vpop.f32.mrb[0].mxu0
      %v1965 = vpop.f32.mrb[0].mxu0
      %v1966 = vadd.f32 0.0, %v1965
      %v1967 = vpop.f32.mrb[0].mxu0
      %1968 = vdwg.mxu0
      %v1969 = vrcp.pop %v1896
      %v1970 = vrcp.pop %v1901
      %v1971 = vmul.f32 %v1963, %v1969
      %v1972 = vmul.f32 %v1966, %v1970
      %v1973 = vld [vmem:[%s2 + $0x300] sm:$0xff]
      %v1974 = vld [vmem:[%s2 + $0x308] sm:$0xff]
      %v1975 = vld [vmem:[%s2 + $0x310] sm:$0xff]
      %v1976 = vld [vmem:[%s2 + $0x318] sm:$0xff]
      %v1977 = vpack.c.bf16 %v1972, %v1971
      %v1978 = vpack.c.bf16 %v1974, %v1973
      %v1979 = vpack.c.bf16 %v1976, %v1975
      %v1980 = vld [vmem:[%s2 + $0x320] sm:$0x1]
      %v1981 = vlaneseq
      %v1982 = vshrl.u32 %v1981, 7
      %v1983 = vsub.s32 0, %v1982
      %v1984 = vrot.slane %v1980, %v1983
      %v1986 = vsel %vm255, %v1977, 0
      %1988 = vmatprep.subr.bf16.mxu0 0
      %1989 = vmatpush1.bf16.msra.mxu0 %v1978
      %1990 = vmatprep.subr.bf16.mxu0 0
      %1991 = vmatpush1.bf16.msra.mxu0 %v1979
      %1992 = vmatprep.subr.bf16.mxu0 0
      %1993 = vmatpush1.bf16.msra.mxu0 0
      %1994 = vmatprep.subr.bf16.mxu0 0
      %1995 = vmatpush1.bf16.msra.mxu0 0
      %1996 = vmatprep.subr.bf16.mxu0 0
      %1997 = vmatpush1.bf16.msra.mxu0 0
      %1998 = vmatprep.subr.bf16.mxu0 0
      %1999 = vmatpush1.bf16.msra.mxu0 0
      %2000 = vmatprep.subr.bf16.mxu0 0
      %2001 = vmatpush1.bf16.msra.mxu0 0
      %2002 = vmatprep.subr.bf16.mxu0 0
      %2003 = vmatpush1.bf16.msra.mxu0 0
      %2004 = vmatprep.subr.bf16.mxu0 0
      %2005 = vmatpush1.bf16.msra.mxu0 0
      %2006 = vmatprep.subr.bf16.mxu0 0
      %2007 = vmatpush1.bf16.msra.mxu0 0
      %2008 = vmatprep.subr.bf16.mxu0 0
      %2009 = vmatpush1.bf16.msra.mxu0 0
      %2010 = vmatprep.subr.bf16.mxu0 0
      %2011 = vmatpush1.bf16.msra.mxu0 0
      %2012 = vmatprep.subr.bf16.mxu0 0
      %2013 = vmatpush1.bf16.msra.mxu0 0
      %2014 = vmatprep.subr.bf16.mxu0 0
      %2015 = vmatpush1.bf16.msra.mxu0 0
      %2016 = vmatprep.subr.bf16.mxu0 0
      %2017 = vmatpush1.bf16.msra.mxu0 0
      %2018 = vmatprep.subr.bf16.mxu0 0
      %2019 = vmatpush1.bf16.msra.mxu0 0
      %2020 = vmatprep.mubr.bf16.mxu0 0
      %2021 = vmatmul.mubr.bf16.gmra.mrb[0].mxu0 %v1986
      %v2022 = vpop.f32.mrb[0].mxu0
      %v2023 = vadd.f32 %v1984, %v2022
      %v2024 = vpop.f32.mrb[0].mxu0
      %v2025 = vpop.f32.mrb[0].mxu0
      %v2026 = vadd.f32 %v1984, %v2025
      %v2027 = vpop.f32.mrb[0].mxu0
      %2028 = vdwg.mxu0
      %v2029 = vadd.f32 %v1594, %v2023
      %v2030 = vadd.f32 %v1597, %v2026
      %v2031 = vsel %vm255, %v2029, 0.0
      %2032 = vadd.xlane.f32.xlu0 %v2031
      %v2033 = vpop.xlane.xlu0 %2032
      %v2034 = vsel %vm255, %v2030, 0.0
      %2035 = vadd.xlane.f32.xlu0 %v2034
      %v2036 = vpop.xlane.xlu0 %2035
      %v2037 = vmul.f32 %v2033, %v680
      %v2038 = vmul.f32 %v2036, %v680
      %v2039 = vsub.f32 %v2029, %v2037
      %v2040 = vsub.f32 %v2030, %v2038
      %v2041 = vmul.f32 %v2039, %v2039
      %v2042 = vmul.f32 %v2040, %v2040
      %v2043 = vsel %vm255, %v2041, 0.0
      %2044 = vadd.xlane.f32.xlu0 %v2043
      %v2045 = vpop.xlane.xlu0 %2044
      %v2046 = vsel %vm255, %v2042, 0.0
      %2047 = vadd.xlane.f32.xlu0 %v2046
      %v2048 = vpop.xlane.xlu0 %2047
      %v2049 = vmul.f32 %v2045, %v680
      %v2050 = vmul.f32 %v2048, %v680
      %v2051 = vadd.f32 %v2049, 1e-05
      %v2052 = vadd.f32 %v2050, 1e-05
      %v2053 = vrsqrt.pop %v2051
      %v2054 = vrsqrt.pop %v2052
      %v2055 = vmul.f32 %v2039, %v2053
      %v2056 = vmul.f32 %v2040, %v2054
      %v2057 = vld [vmem:[%s2 + $0x410] sm:$0x1]
      %v2058 = vlaneseq
      %v2059 = vshrl.u32 %v2058, 7
      %v2060 = vsub.s32 0, %v2059
      %v2061 = vrot.slane %v2057, %v2060
      %v2062 = vmul.f32 %v2055, %v2061
      %v2063 = vmul.f32 %v2056, %v2061
      %v2064 = vld [vmem:[%s2 + $0x418] sm:$0x1]
      %v2065 = vlaneseq
      %v2066 = vshrl.u32 %v2065, 7
      %v2067 = vsub.s32 0, %v2066
      %v2068 = vrot.slane %v2064, %v2067
      %v2069 = vadd.f32 %v2062, %v2068
      %v2070 = vadd.f32 %v2063, %v2068
      %v2071 = vld [vmem:[%s2 + $0x328] sm:$0xff]
      %v2072 = vld [vmem:[%s2 + $0x330] sm:$0xff]
      %v2073 = vld [vmem:[%s2 + $0x338] sm:$0xff]
      %v2074 = vld [vmem:[%s2 + $0x340] sm:$0xff]
      %v2075 = vpack.c.bf16 %v2070, %v2069
      %v2076 = vpack.c.bf16 %v2072, %v2071
      %v2077 = vpack.c.bf16 %v2074, %v2073
      %v2078 = vld [vmem:[%s2 + $0x348] sm:$0x1]
      %v2079 = vlaneseq
      %v2080 = vshrl.u32 %v2079, 7
      %v2081 = vsub.s32 0, %v2080
      %v2082 = vrot.slane %v2078, %v2081
      %v2084 = vsel %vm255, %v2075, 0
      %2086 = vmatprep.subr.bf16.mxu0 0
      %2087 = vmatpush1.bf16.msra.mxu0 %v2076
      %2088 = vmatprep.subr.bf16.mxu0 0
      %2089 = vmatpush1.bf16.msra.mxu0 %v2077
      %2090 = vmatprep.subr.bf16.mxu0 0
      %2091 = vmatpush1.bf16.msra.mxu0 0
      %2092 = vmatprep.subr.bf16.mxu0 0
      %2093 = vmatpush1.bf16.msra.mxu0 0
      %2094 = vmatprep.subr.bf16.mxu0 0
      %2095 = vmatpush1.bf16.msra.mxu0 0
      %2096 = vmatprep.subr.bf16.mxu0 0
      %2097 = vmatpush1.bf16.msra.mxu0 0
      %2098 = vmatprep.subr.bf16.mxu0 0
      %2099 = vmatpush1.bf16.msra.mxu0 0
      %2100 = vmatprep.subr.bf16.mxu0 0
      %2101 = vmatpush1.bf16.msra.mxu0 0
      %2102 = vmatprep.subr.bf16.mxu0 0
      %2103 = vmatpush1.bf16.msra.mxu0 0
      %2104 = vmatprep.subr.bf16.mxu0 0
      %2105 = vmatpush1.bf16.msra.mxu0 0
      %2106 = vmatprep.subr.bf16.mxu0 0
      %2107 = vmatpush1.bf16.msra.mxu0 0
      %2108 = vmatprep.subr.bf16.mxu0 0
      %2109 = vmatpush1.bf16.msra.mxu0 0
      %2110 = vmatprep.subr.bf16.mxu0 0
      %2111 = vmatpush1.bf16.msra.mxu0 0
      %2112 = vmatprep.subr.bf16.mxu0 0
      %2113 = vmatpush1.bf16.msra.mxu0 0
      %2114 = vmatprep.subr.bf16.mxu0 0
      %2115 = vmatpush1.bf16.msra.mxu0 0
      %2116 = vmatprep.subr.bf16.mxu0 0
      %2117 = vmatpush1.bf16.msra.mxu0 0
      %2118 = vmatprep.mubr.bf16.mxu0 0
      %2119 = vmatmul.mubr.bf16.gmra.mrb[0].mxu0 %v2084
      %v2120 = vpop.f32.mrb[0].mxu0
      %v2121 = vadd.f32 %v2082, %v2120
      %v2122 = vpop.f32.mrb[0].mxu0
      %v2123 = vpop.f32.mrb[0].mxu0
      %v2124 = vadd.f32 %v2082, %v2123
      %v2125 = vpop.f32.mrb[0].mxu0
      %2126 = vdwg.mxu0
      %v2127 = vld [vmem:[%s2 + $0x350] sm:$0xff]
      %v2128 = vld [vmem:[%s2 + $0x358] sm:$0xff]
      %v2129 = vld [vmem:[%s2 + $0x360] sm:$0xff]
      %v2130 = vld [vmem:[%s2 + $0x368] sm:$0xff]
      %v2131 = vpack.c.bf16 %v1547, %v1546
      %v2132 = vpack.c.bf16 %v2128, %v2127
      %v2133 = vpack.c.bf16 %v2130, %v2129
      %v2134 = vld [vmem:[%s2 + $0x370] sm:$0x1]
      %v2135 = vlaneseq
      %v2136 = vshrl.u32 %v2135, 7
      %v2137 = vsub.s32 0, %v2136
      %v2138 = vrot.slane %v2134, %v2137
      %v2140 = vsel %vm255, %v2131, 0
      %2142 = vmatprep.subr.bf16.mxu0 0
      %2143 = vmatpush1.bf16.msra.mxu0 %v2132
      %2144 = vmatprep.subr.bf16.mxu0 0
      %2145 = vmatpush1.bf16.msra.mxu0 %v2133
      %2146 = vmatprep.subr.bf16.mxu0 0
      %2147 = vmatpush1.bf16.msra.mxu0 0
      %2148 = vmatprep.subr.bf16.mxu0 0
      %2149 = vmatpush1.bf16.msra.mxu0 0
      %2150 = vmatprep.subr.bf16.mxu0 0
      %2151 = vmatpush1.bf16.msra.mxu0 0
      %2152 = vmatprep.subr.bf16.mxu0 0
      %2153 = vmatpush1.bf16.msra.mxu0 0
      %2154 = vmatprep.subr.bf16.mxu0 0
      %2155 = vmatpush1.bf16.msra.mxu0 0
      %2156 = vmatprep.subr.bf16.mxu0 0
      %2157 = vmatpush1.bf16.msra.mxu0 0
      %2158 = vmatprep.subr.bf16.mxu0 0
      %2159 = vmatpush1.bf16.msra.mxu0 0
      %2160 = vmatprep.subr.bf16.mxu0 0
      %2161 = vmatpush1.bf16.msra.mxu0 0
      %2162 = vmatprep.subr.bf16.mxu0 0
      %2163 = vmatpush1.bf16.msra.mxu0 0
      %2164 = vmatprep.subr.bf16.mxu0 0
      %2165 = vmatpush1.bf16.msra.mxu0 0
      %2166 = vmatprep.subr.bf16.mxu0 0
      %2167 = vmatpush1.bf16.msra.mxu0 0
      %2168 = vmatprep.subr.bf16.mxu0 0
      %2169 = vmatpush1.bf16.msra.mxu0 0
      %2170 = vmatprep.subr.bf16.mxu0 0
      %2171 = vmatpush1.bf16.msra.mxu0 0
      %2172 = vmatprep.subr.bf16.mxu0 0
      %2173 = vmatpush1.bf16.msra.mxu0 0
      %2174 = vmatprep.mubr.bf16.mxu0 0
      %2175 = vmatmul.mubr.bf16.gmra.mrb[0].mxu0 %v2140
      %v2176 = vpop.f32.mrb[0].mxu0
      %v2177 = vadd.f32 %v2138, %v2176
      %v2178 = vpop.f32.mrb[0].mxu0
      %v2179 = vpop.f32.mrb[0].mxu0
      %v2180 = vadd.f32 %v2138, %v2179
      %v2181 = vpop.f32.mrb[0].mxu0
      %2182 = vdwg.mxu0
      %v2183 = vld [vmem:[%s2 + $0x20] sm:$0xff]
      %v2184 = vld [vmem:[%s2 + $0x28] sm:$0xff]
      %v2185 = vld [vmem:[%s2 + $0x30] sm:$0xff]
      %v2186 = vld [vmem:[%s2 + $0x38] sm:$0xff]
      %v2187 = vld [vmem:[%s2 + $0x40] sm:$0xff]
      %v2188 = vld [vmem:[%s2 + $0x48] sm:$0xff]
      %v2189 = vld [vmem:[%s2 + $0x50] sm:$0xff]
      %v2190 = vld [vmem:[%s2 + $0x58] sm:$0xff]
      %v2191 = vmul.f32 %v2177, %v2183
      %v2192 = vmul.f32 %v2180, %v2184
      %v2193 = vmul.f32 %v2177, %v2185
      %v2194 = vmul.f32 %v2180, %v2186
      %v2195 = vmul.f32 %v2177, %v2187
      %v2196 = vmul.f32 %v2180, %v2188
      %v2197 = vmul.f32 %v2177, %v2189
      %v2198 = vmul.f32 %v2180, %v2190
      %2207 = vrot.lane.b32.xlu0 %v2183, 32
      %v2208 = vpop.permute.xlu0 %2207
      %2209 = vrot.lane.b32.xlu0 %v2184, 32
      %v2210 = vpop.permute.xlu0 %2209
      %2211 = vrot.lane.b32.xlu0 %v2185, 32
      %v2212 = vpop.permute.xlu0 %2211
      %2213 = vrot.lane.b32.xlu0 %v2186, 32
      %v2214 = vpop.permute.xlu0 %2213
      %2215 = vrot.lane.b32.xlu0 %v2187, 32
      %v2216 = vpop.permute.xlu0 %2215
      %2217 = vrot.lane.b32.xlu0 %v2188, 32
      %v2218 = vpop.permute.xlu0 %2217
      %2219 = vrot.lane.b32.xlu0 %v2189, 32
      %v2220 = vpop.permute.xlu0 %2219
      %2221 = vrot.lane.b32.xlu0 %v2190, 32
      %v2222 = vpop.permute.xlu0 %2221
      %v2231 = vmul.f32 %v2177, %v2208
      %v2232 = vmul.f32 %v2180, %v2210
      %v2233 = vmul.f32 %v2177, %v2212
      %v2234 = vmul.f32 %v2180, %v2214
      %v2235 = vmul.f32 %v2177, %v2216
      %v2236 = vmul.f32 %v2180, %v2218
      %v2237 = vmul.f32 %v2177, %v2220
      %v2238 = vmul.f32 %v2180, %v2222
      %v2239 = vpack.c.bf16 %v2124, %v2121
      %v2240 = vpack.c.bf16 %v2192, %v2191
      %v2241 = vpack.c.bf16 %v2194, %v2193
      %v2242 = vpack.c.bf16 %v2196, %v2195
      %v2243 = vpack.c.bf16 %v2198, %v2197
      %v2245 = vsel %vm255, %v2239, 0
      %v2248 = vsel %vm255, %v2240, 0
      %v2251 = vsel %vm255, %v2241, 0
      %v2254 = vsel %vm255, %v2242, 0
      %v2257 = vsel %vm255, %v2243, 0
      %2259 = vmatprep.subr.bf16.mxu0 0
      %2260 = vmatpush1.bf16.xpose.msra.mxu0 %v2248
      %2261 = vmatprep.subr.bf16.mxu0 0
      %2262 = vmatpush1.bf16.xpose.msra.mxu0 %v2251
      %2263 = vmatprep.subr.bf16.mxu0 0
      %2264 = vmatpush1.bf16.xpose.msra.mxu0 %v2254
      %2265 = vmatprep.subr.bf16.mxu0 0
      %2266 = vmatpush1.bf16.xpose.msra.mxu0 %v2257
      %2267 = vmatprep.subr.bf16.mxu0 0
      %2268 = vmatpush1.bf16.xpose.msra.mxu0 0
      %2269 = vmatprep.subr.bf16.mxu0 0
      %2270 = vmatpush1.bf16.xpose.msra.mxu0 0
      %2271 = vmatprep.subr.bf16.mxu0 0
      %2272 = vmatpush1.bf16.xpose.msra.mxu0 0
      %2273 = vmatprep.subr.bf16.mxu0 0
      %2274 = vmatpush1.bf16.xpose.msra.mxu0 0
      %2275 = vmatprep.subr.bf16.mxu0 0
      %2276 = vmatpush1.bf16.xpose.msra.mxu0 0
      %2277 = vmatprep.subr.bf16.mxu0 0
      %2278 = vmatpush1.bf16.xpose.msra.mxu0 0
      %2279 = vmatprep.subr.bf16.mxu0 0
      %2280 = vmatpush1.bf16.xpose.msra.mxu0 0
      %2281 = vmatprep.subr.bf16.mxu0 0
      %2282 = vmatpush1.bf16.xpose.msra.mxu0 0
      %2283 = vmatprep.subr.bf16.mxu0 0
      %2284 = vmatpush1.bf16.xpose.msra.mxu0 0
      %2285 = vmatprep.subr.bf16.mxu0 0
      %2286 = vmatpush1.bf16.xpose.msra.mxu0 0
      %2287 = vmatprep.subr.bf16.mxu0 0
      %2288 = vmatpush1.bf16.xpose.msra.mxu0 0
      %2289 = vmatprep.subr.bf16.mxu0 0
      %2290 = vmatpush1.bf16.xpose.msra.mxu0 0
      %2291 = vmatprep.mubr.bf16.mxu0 0
      %2292 = vmatmul.mubr.bf16.gmra.mrb[0].mxu0 %v2245
      %v2293 = vpop.f32.mrb[0].mxu0
      %v2294 = vadd.f32 0.0, %v2293
      %v2295 = vpop.f32.mrb[0].mxu0
      %v2296 = vpop.f32.mrb[0].mxu0
      %v2297 = vadd.f32 0.0, %v2296
      %v2298 = vpop.f32.mrb[0].mxu0
      %2299 = vdwg.mxu0
      %v2300 = vsel %vm453, %v2294, -inf
      %2301 = vmax.xlane.f32.xlu0 %v2300
      %v2302 = vpop.xlane.xlu0 %2301
      %v2303 = vsel %vm453, %v2297, -inf
      %2304 = vmax.xlane.f32.xlu0 %v2303
      %v2305 = vpop.xlane.xlu0 %2304
      %v2306 = vsub.f32 %v2294, %v2302
      %v2307 = vsub.f32 %v2297, %v2305
      %v2308 = vmul.f32 %v2306, 1.442695
      %v2309 = vpow.pop %v2308
      %v2310 = vmul.f32 %v2307, 1.442695
      %v2311 = vpow.pop %v2310
      %v2313 = vsel %vm453, %v2309, 0
      %v2316 = vsel %vm453, %v2311, 0
      %2318 = vmatprep.subr.mxu0 0.0
      %2319 = vmatpush1.msra.mxu0 %v2183
      %2320 = vmatprep.subr.mxu0 0.0
      %2321 = vmatpush1.msra.mxu0 %v2184
      %2322 = vmatprep.subr.mxu0 0.0
      %2323 = vmatpush1.msra.mxu0 %v2185
      %2324 = vmatprep.subr.mxu0 0.0
      %2325 = vmatpush1.msra.mxu0 %v2186
      %2326 = vmatprep.subr.mxu0 0.0
      %2327 = vmatpush1.msra.mxu0 %v2187
      %2328 = vmatprep.subr.mxu0 0.0
      %2329 = vmatpush1.msra.mxu0 %v2188
      %2330 = vmatprep.subr.mxu0 0.0
      %2331 = vmatpush1.msra.mxu0 %v2189
      %2332 = vmatprep.subr.mxu0 0.0
      %2333 = vmatpush1.msra.mxu0 %v2190
      %2334 = vmatprep.subr.mxu0 0.0
      %2335 = vmatpush1.msra.mxu0 0.0
      %2336 = vmatprep.subr.mxu0 0.0
      %2337 = vmatpush1.msra.mxu0 0.0
      %2338 = vmatprep.subr.mxu0 0.0
      %2339 = vmatpush1.msra.mxu0 0.0
      %2340 = vmatprep.subr.mxu0 0.0
      %2341 = vmatpush1.msra.mxu0 0.0
      %2342 = vmatprep.subr.mxu0 0.0
      %2343 = vmatpush1.msra.mxu0 0.0
      %2344 = vmatprep.subr.mxu0 0.0
      %2345 = vmatpush1.msra.mxu0 0.0
      %2346 = vmatprep.subr.mxu0 0.0
      %2347 = vmatpush1.msra.mxu0 0.0
      %2348 = vmatprep.subr.mxu0 0.0
      %2349 = vmatpush1.msra.mxu0 0.0
      %2350 = vmatprep.subr.mxu0 0.0
      %2351 = vmatpush1.msra.mxu0 0.0
      %2352 = vmatprep.subr.mxu0 0.0
      %2353 = vmatpush1.msra.mxu0 0.0
      %2354 = vmatprep.subr.mxu0 0.0
      %2355 = vmatpush1.msra.mxu0 0.0
      %2356 = vmatprep.subr.mxu0 0.0
      %2357 = vmatpush1.msra.mxu0 0.0
      %2358 = vmatprep.subr.mxu0 0.0
      %2359 = vmatpush1.msra.mxu0 0.0
      %2360 = vmatprep.subr.mxu0 0.0
      %2361 = vmatpush1.msra.mxu0 0.0
      %2362 = vmatprep.subr.mxu0 0.0
      %2363 = vmatpush1.msra.mxu0 0.0
      %2364 = vmatprep.subr.mxu0 0.0
      %2365 = vmatpush1.msra.mxu0 0.0
      %2366 = vmatprep.subr.mxu0 0.0
      %2367 = vmatpush1.msra.mxu0 0.0
      %2368 = vmatprep.subr.mxu0 0.0
      %2369 = vmatpush1.msra.mxu0 0.0
      %2370 = vmatprep.subr.mxu0 0.0
      %2371 = vmatpush1.msra.mxu0 0.0
      %2372 = vmatprep.subr.mxu0 0.0
      %2373 = vmatpush1.msra.mxu0 0.0
      %2374 = vmatprep.subr.mxu0 0.0
      %2375 = vmatpush1.msra.mxu0 0.0
      %2376 = vmatprep.subr.mxu0 0.0
      %2377 = vmatpush1.msra.mxu0 0.0
      %2378 = vmatprep.subr.mxu0 0.0
      %2379 = vmatpush1.msra.mxu0 0.0
      %2380 = vmatprep.subr.mxu0 0.0
      %2381 = vmatpush1.msra.mxu0 0.0
      %2382 = vmatprep.mubr.f32.mxu0 0.0
      %2383 = vmatmul.mubr.f32.gmra.mrb[0].mxu0 %v2313
      %v2384 = vpop.f32.mrb[0].mxu0
      %v2385 = vadd.f32 0.0, %v2384
      %v2386 = vpop.f32.mrb[0].mxu0
      %2387 = vmatprep.mubr.f32.mxu0 0.0
      %2388 = vmatmul.mubr.f32.gmra.mrb[0].mxu0 %v2316
      %v2389 = vpop.f32.mrb[0].mxu0
      %v2390 = vadd.f32 0.0, %v2389
      %v2391 = vpop.f32.mrb[0].mxu0
      %2392 = vdwg.mxu0
      %v2393 = vpack.c.bf16 %v2311, %v2309
      %v2394 = vpack.c.bf16 %v2232, %v2231
      %v2395 = vpack.c.bf16 %v2234, %v2233
      %v2396 = vpack.c.bf16 %v2236, %v2235
      %v2397 = vpack.c.bf16 %v2238, %v2237
      %2402 = vrot.lane.b32.xlu0 %v2394, 96
      %v2403 = vpop.permute.xlu0 %2402
      %2404 = vrot.lane.b32.xlu0 %v2395, 96
      %v2405 = vpop.permute.xlu0 %2404
      %2406 = vrot.lane.b32.xlu0 %v2396, 96
      %v2407 = vpop.permute.xlu0 %2406
      %2408 = vrot.lane.b32.xlu0 %v2397, 96
      %v2409 = vpop.permute.xlu0 %2408
      %v2415 = vsel %vm453, %v2393, 0
      %2417 = vmatprep.subr.bf16.mxu0 0
      %2418 = vmatpush1.bf16.msra.mxu0 %v2403
      %2419 = vmatprep.subr.bf16.mxu0 0
      %2420 = vmatpush1.bf16.msra.mxu0 %v2405
      %2421 = vmatprep.subr.bf16.mxu0 0
      %2422 = vmatpush1.bf16.msra.mxu0 %v2407
      %2423 = vmatprep.subr.bf16.mxu0 0
      %2424 = vmatpush1.bf16.msra.mxu0 %v2409
      %2425 = vmatprep.subr.bf16.mxu0 0
      %2426 = vmatpush1.bf16.msra.mxu0 0
      %2427 = vmatprep.subr.bf16.mxu0 0
      %2428 = vmatpush1.bf16.msra.mxu0 0
      %2429 = vmatprep.subr.bf16.mxu0 0
      %2430 = vmatpush1.bf16.msra.mxu0 0
      %2431 = vmatprep.subr.bf16.mxu0 0
      %2432 = vmatpush1.bf16.msra.mxu0 0
      %2433 = vmatprep.subr.bf16.mxu0 0
      %2434 = vmatpush1.bf16.msra.mxu0 0
      %2435 = vmatprep.subr.bf16.mxu0 0
      %2436 = vmatpush1.bf16.msra.mxu0 0
      %2437 = vmatprep.subr.bf16.mxu0 0
      %2438 = vmatpush1.bf16.msra.mxu0 0
      %2439 = vmatprep.subr.bf16.mxu0 0
      %2440 = vmatpush1.bf16.msra.mxu0 0
      %2441 = vmatprep.subr.bf16.mxu0 0
      %2442 = vmatpush1.bf16.msra.mxu0 0
      %2443 = vmatprep.subr.bf16.mxu0 0
      %2444 = vmatpush1.bf16.msra.mxu0 0
      %2445 = vmatprep.subr.bf16.mxu0 0
      %2446 = vmatpush1.bf16.msra.mxu0 0
      %2447 = vmatprep.subr.bf16.mxu0 0
      %2448 = vmatpush1.bf16.msra.mxu0 0
      %2449 = vmatprep.mubr.bf16.mxu0 0
      %2450 = vmatmul.mubr.bf16.gmra.mrb[0].mxu0 %v2415
      %v2451 = vpop.f32.mrb[0].mxu0
      %v2452 = vadd.f32 0.0, %v2451
      %v2453 = vpop.f32.mrb[0].mxu0
      %v2454 = vpop.f32.mrb[0].mxu0
      %v2455 = vadd.f32 0.0, %v2454
      %v2456 = vpop.f32.mrb[0].mxu0
      %2457 = vdwg.mxu0
      %v2458 = vrcp.pop %v2385
      %v2459 = vrcp.pop %v2390
      %v2460 = vmul.f32 %v2452, %v2458
      %v2461 = vmul.f32 %v2455, %v2459
      %v2462 = vld [vmem:[%s2 + $0x378] sm:$0xff]
      %v2463 = vld [vmem:[%s2 + $0x380] sm:$0xff]
      %v2464 = vld [vmem:[%s2 + $0x388] sm:$0xff]
      %v2465 = vld [vmem:[%s2 + $0x390] sm:$0xff]
      %v2466 = vpack.c.bf16 %v2461, %v2460
      %v2467 = vpack.c.bf16 %v2463, %v2462
      %v2468 = vpack.c.bf16 %v2465, %v2464
      %v2469 = vld [vmem:[%s2 + $0x398] sm:$0x1]
      %v2470 = vlaneseq
      %v2471 = vshrl.u32 %v2470, 7
      %v2472 = vsub.s32 0, %v2471
      %v2473 = vrot.slane %v2469, %v2472
      %v2475 = vsel %vm255, %v2466, 0
      %2477 = vmatprep.subr.bf16.mxu0 0
      %2478 = vmatpush1.bf16.msra.mxu0 %v2467
      %2479 = vmatprep.subr.bf16.mxu0 0
      %2480 = vmatpush1.bf16.msra.mxu0 %v2468
      %2481 = vmatprep.subr.bf16.mxu0 0
      %2482 = vmatpush1.bf16.msra.mxu0 0
      %2483 = vmatprep.subr.bf16.mxu0 0
      %2484 = vmatpush1.bf16.msra.mxu0 0
      %2485 = vmatprep.subr.bf16.mxu0 0
      %2486 = vmatpush1.bf16.msra.mxu0 0
      %2487 = vmatprep.subr.bf16.mxu0 0
      %2488 = vmatpush1.bf16.msra.mxu0 0
      %2489 = vmatprep.subr.bf16.mxu0 0
      %2490 = vmatpush1.bf16.msra.mxu0 0
      %2491 = vmatprep.subr.bf16.mxu0 0
      %2492 = vmatpush1.bf16.msra.mxu0 0
      %2493 = vmatprep.subr.bf16.mxu0 0
      %2494 = vmatpush1.bf16.msra.mxu0 0
      %2495 = vmatprep.subr.bf16.mxu0 0
      %2496 = vmatpush1.bf16.msra.mxu0 0
      %2497 = vmatprep.subr.bf16.mxu0 0
      %2498 = vmatpush1.bf16.msra.mxu0 0
      %2499 = vmatprep.subr.bf16.mxu0 0
      %2500 = vmatpush1.bf16.msra.mxu0 0
      %2501 = vmatprep.subr.bf16.mxu0 0
      %2502 = vmatpush1.bf16.msra.mxu0 0
      %2503 = vmatprep.subr.bf16.mxu0 0
      %2504 = vmatpush1.bf16.msra.mxu0 0
      %2505 = vmatprep.subr.bf16.mxu0 0
      %2506 = vmatpush1.bf16.msra.mxu0 0
      %2507 = vmatprep.subr.bf16.mxu0 0
      %2508 = vmatpush1.bf16.msra.mxu0 0
      %2509 = vmatprep.mubr.bf16.mxu0 0
      %2510 = vmatmul.mubr.bf16.gmra.mrb[0].mxu0 %v2475
      %v2511 = vpop.f32.mrb[0].mxu0
      %v2512 = vadd.f32 %v2473, %v2511
      %v2513 = vpop.f32.mrb[0].mxu0
      %v2514 = vpop.f32.mrb[0].mxu0
      %v2515 = vadd.f32 %v2473, %v2514
      %v2516 = vpop.f32.mrb[0].mxu0
      %2517 = vdwg.mxu0
      %v2518 = vadd.f32 %v2069, %v2512
      %v2519 = vadd.f32 %v2070, %v2515
      %v2520 = vsel %vm255, %v2518, 0.0
      %2521 = vadd.xlane.f32.xlu0 %v2520
      %v2522 = vpop.xlane.xlu0 %2521
      %v2523 = vsel %vm255, %v2519, 0.0
      %2524 = vadd.xlane.f32.xlu0 %v2523
      %v2525 = vpop.xlane.xlu0 %2524
      %v2526 = vmul.f32 %v2522, %v680
      %v2527 = vmul.f32 %v2525, %v680
      %v2528 = vsub.f32 %v2518, %v2526
      %v2529 = vsub.f32 %v2519, %v2527
      %v2530 = vmul.f32 %v2528, %v2528
      %v2531 = vmul.f32 %v2529, %v2529
      %v2532 = vsel %vm255, %v2530, 0.0
      %2533 = vadd.xlane.f32.xlu0 %v2532
      %v2534 = vpop.xlane.xlu0 %2533
      %v2535 = vsel %vm255, %v2531, 0.0
      %2536 = vadd.xlane.f32.xlu0 %v2535
      %v2537 = vpop.xlane.xlu0 %2536
      %v2538 = vmul.f32 %v2534, %v680
      %v2539 = vmul.f32 %v2537, %v680
      %v2540 = vadd.f32 %v2538, 1e-05
      %v2541 = vadd.f32 %v2539, 1e-05
      %v2542 = vrsqrt.pop %v2540
      %v2543 = vrsqrt.pop %v2541
      %v2544 = vmul.f32 %v2528, %v2542
      %v2545 = vmul.f32 %v2529, %v2543
      %v2546 = vld [vmem:[%s2 + $0x420] sm:$0x1]
      %v2547 = vlaneseq
      %v2548 = vshrl.u32 %v2547, 7
      %v2549 = vsub.s32 0, %v2548
      %v2550 = vrot.slane %v2546, %v2549
      %v2551 = vmul.f32 %v2544, %v2550
      %v2552 = vmul.f32 %v2545, %v2550
      %v2553 = vld [vmem:[%s2 + $0x428] sm:$0x1]
      %v2554 = vlaneseq
      %v2555 = vshrl.u32 %v2554, 7
      %v2556 = vsub.s32 0, %v2555
      %v2557 = vrot.slane %v2553, %v2556
      %v2558 = vadd.f32 %v2551, %v2557
      %v2559 = vadd.f32 %v2552, %v2557
      %v2560 = vld [vmem:[%s2 + $0x3a0] sm:$0xff]
      %v2561 = vld [vmem:[%s2 + $0x3a8] sm:$0xff]
      %v2562 = vld [vmem:[%s2 + $0x3b0] sm:$0xff]
      %v2563 = vld [vmem:[%s2 + $0x3b8] sm:$0xff]
      %v2564 = vpack.c.bf16 %v2559, %v2558
      %v2565 = vpack.c.bf16 %v2561, %v2560
      %v2566 = vpack.c.bf16 %v2563, %v2562
      %v2567 = vld [vmem:[%s2 + $0x3c0] sm:$0x1]
      %v2568 = vlaneseq
      %v2569 = vshrl.u32 %v2568, 7
      %v2570 = vsub.s32 0, %v2569
      %v2571 = vrot.slane %v2567, %v2570
      %v2573 = vsel %vm255, %v2564, 0
      %2575 = vmatprep.subr.bf16.mxu0 0
      %2576 = vmatpush1.bf16.msra.mxu0 %v2565
      %2577 = vmatprep.subr.bf16.mxu0 0
      %2578 = vmatpush1.bf16.msra.mxu0 %v2566
      %2579 = vmatprep.subr.bf16.mxu0 0
      %2580 = vmatpush1.bf16.msra.mxu0 0
      %2581 = vmatprep.subr.bf16.mxu0 0
      %2582 = vmatpush1.bf16.msra.mxu0 0
      %2583 = vmatprep.subr.bf16.mxu0 0
      %2584 = vmatpush1.bf16.msra.mxu0 0
      %2585 = vmatprep.subr.bf16.mxu0 0
      %2586 = vmatpush1.bf16.msra.mxu0 0
      %2587 = vmatprep.subr.bf16.mxu0 0
      %2588 = vmatpush1.bf16.msra.mxu0 0
      %2589 = vmatprep.subr.bf16.mxu0 0
      %2590 = vmatpush1.bf16.msra.mxu0 0
      %2591 = vmatprep.subr.bf16.mxu0 0
      %2592 = vmatpush1.bf16.msra.mxu0 0
      %2593 = vmatprep.subr.bf16.mxu0 0
      %2594 = vmatpush1.bf16.msra.mxu0 0
      %2595 = vmatprep.subr.bf16.mxu0 0
      %2596 = vmatpush1.bf16.msra.mxu0 0
      %2597 = vmatprep.subr.bf16.mxu0 0
      %2598 = vmatpush1.bf16.msra.mxu0 0
      %2599 = vmatprep.subr.bf16.mxu0 0
      %2600 = vmatpush1.bf16.msra.mxu0 0
      %2601 = vmatprep.subr.bf16.mxu0 0
      %2602 = vmatpush1.bf16.msra.mxu0 0
      %2603 = vmatprep.subr.bf16.mxu0 0
      %2604 = vmatpush1.bf16.msra.mxu0 0
      %2605 = vmatprep.subr.bf16.mxu0 0
      %2606 = vmatpush1.bf16.msra.mxu0 0
      %2607 = vmatprep.mubr.bf16.mxu0 0
      %2608 = vmatmul.mubr.bf16.gmra.mrb[0].mxu0 %v2573
      %v2609 = vpop.f32.mrb[0].mxu0
      %v2610 = vadd.f32 %v2571, %v2609
      %v2611 = vpop.f32.mrb[0].mxu0
      %v2612 = vpop.f32.mrb[0].mxu0
      %v2613 = vadd.f32 %v2571, %v2612
      %v2614 = vpop.f32.mrb[0].mxu0
      %2615 = vdwg.mxu0
      %v2616 = vmax.f32 %v2610, 0.0
      %v2617 = vmax.f32 %v2613, 0.0
      %v2618 = vld [vmem:[%s2 + $0x3c8] sm:$0xff]
      %v2619 = vld [vmem:[%s2 + $0x3d0] sm:$0xff]
      %v2620 = vld [vmem:[%s2 + $0x3d8] sm:$0xff]
      %v2621 = vld [vmem:[%s2 + $0x3e0] sm:$0xff]
      %v2622 = vld [vmem:[%s2 + $0x3e8] sm:$0xff]
      %v2623 = vld [vmem:[%s2 + $0x3f0] sm:$0xff]
      %v2624 = vld [vmem:[%s2 + $0x3f8] sm:$0xff]
      %v2625 = vld [vmem:[%s2 + $0x400] sm:$0xff]
      %v2626 = vpack.c.bf16 %v2617, %v2616
      %v2627 = vpack.c.bf16 %v2619, %v2618
      %v2628 = vpack.c.bf16 %v2621, %v2620
      %v2629 = vpack.c.bf16 %v2623, %v2622
      %v2630 = vpack.c.bf16 %v2625, %v2624
      %v2631 = vld [vmem:[%s2 + $0x408] sm:$0x1]
      %v2632 = vlaneseq
      %v2633 = vshrl.u32 %v2632, 7
      %v2634 = vsub.s32 0, %v2633
      %v2635 = vrot.slane %v2631, %v2634
      %v2637 = vsel %vm453, %v2626, 0
      %2639 = vmatprep.subr.bf16.mxu0 0
      %2640 = vmatpush1.bf16.msra.mxu0 %v2627
      %2641 = vmatprep.subr.bf16.mxu0 0
      %2642 = vmatpush1.bf16.msra.mxu0 %v2628
      %2643 = vmatprep.subr.bf16.mxu0 0
      %2644 = vmatpush1.bf16.msra.mxu0 %v2629
      %2645 = vmatprep.subr.bf16.mxu0 0
      %2646 = vmatpush1.bf16.msra.mxu0 %v2630
      %2647 = vmatprep.subr.bf16.mxu0 0
      %2648 = vmatpush1.bf16.msra.mxu0 0
      %2649 = vmatprep.subr.bf16.mxu0 0
      %2650 = vmatpush1.bf16.msra.mxu0 0
      %2651 = vmatprep.subr.bf16.mxu0 0
      %2652 = vmatpush1.bf16.msra.mxu0 0
      %2653 = vmatprep.subr.bf16.mxu0 0
      %2654 = vmatpush1.bf16.msra.mxu0 0
      %2655 = vmatprep.subr.bf16.mxu0 0
      %2656 = vmatpush1.bf16.msra.mxu0 0
      %2657 = vmatprep.subr.bf16.mxu0 0
      %2658 = vmatpush1.bf16.msra.mxu0 0
      %2659 = vmatprep.subr.bf16.mxu0 0
      %2660 = vmatpush1.bf16.msra.mxu0 0
      %2661 = vmatprep.subr.bf16.mxu0 0
      %2662 = vmatpush1.bf16.msra.mxu0 0
      %2663 = vmatprep.subr.bf16.mxu0 0
      %2664 = vmatpush1.bf16.msra.mxu0 0
      %2665 = vmatprep.subr.bf16.mxu0 0
      %2666 = vmatpush1.bf16.msra.mxu0 0
      %2667 = vmatprep.subr.bf16.mxu0 0
      %2668 = vmatpush1.bf16.msra.mxu0 0
      %2669 = vmatprep.subr.bf16.mxu0 0
      %2670 = vmatpush1.bf16.msra.mxu0 0
      %2671 = vmatprep.mubr.bf16.mxu0 0
      %2672 = vmatmul.mubr.bf16.gmra.mrb[0].mxu0 %v2637
      %v2673 = vpop.f32.mrb[0].mxu0
      %v2674 = vpop.f32.mrb[0].mxu0
      %v2675 = vpop.f32.mrb[0].mxu0
      %v2676 = vadd.f32 %v2635, %v2675
      %v2677 = vpop.f32.mrb[0].mxu0
      %2678 = vdwg.mxu0
      %v2679 = vadd.f32 %v2559, %v2676
      %v2680 = vsel %vm255, %v2679, 0.0
      %2681 = vadd.xlane.f32.xlu0 %v2680
      %v2682 = vpop.xlane.xlu0 %2681
      %v2683 = vmul.f32 %v2682, %v680
      %v2684 = vsub.f32 %v2679, %v2683
      %v2685 = vmul.f32 %v2684, %v2684
      %v2686 = vsel %vm255, %v2685, 0.0
      %2687 = vadd.xlane.f32.xlu0 %v2686
      %v2688 = vpop.xlane.xlu0 %2687
      %v2689 = vmul.f32 %v2688, %v680
      %v2690 = vadd.f32 %v2689, 1e-05
      %v2691 = vrsqrt.pop %v2690
      %v2692 = vmul.f32 %v2684, %v2691
      %v2693 = vld [vmem:[%s2 + $0x430] sm:$0x1]
      %v2694 = vlaneseq
      %v2695 = vshrl.u32 %v2694, 7
      %v2696 = vsub.s32 0, %v2695
      %v2697 = vrot.slane %v2693, %v2696
      %v2698 = vmul.f32 %v2692, %v2697
      %v2699 = vld [vmem:[%s2 + $0x438] sm:$0x1]
      %v2700 = vlaneseq
      %v2701 = vshrl.u32 %v2700, 7
      %v2702 = vsub.s32 0, %v2701
      %v2703 = vrot.slane %v2699, %v2702
      %v2704 = vadd.f32 %v2698, %v2703
      %v2705 = vsel %vm255, %v2704, 0.0
      %2706 = vadd.xlane.f32.xlu0 %v2705
      %v2707 = vpop.xlane.xlu0 %2706
      %v2708 = vmul.f32 %v2707, %v680
      %v2709 = vsub.f32 %v2704, %v2708
      %v2710 = vmul.f32 %v2709, %v2709
      %v2711 = vsel %vm255, %v2710, 0.0
      %2712 = vadd.xlane.f32.xlu0 %v2711
      %v2713 = vpop.xlane.xlu0 %2712
      %v2714 = vmul.f32 %v2713, %v680
      %v2715 = vadd.f32 %v2714, 1e-05
      %v2716 = vrsqrt.pop %v2715
      %v2717 = vmul.f32 %v2709, %v2716
      %v2718 = vld [vmem:[%s2 + $0xe0] sm:$0x1]
      %v2719 = vlaneseq
      %v2720 = vshrl.u32 %v2719, 7
      %v2721 = vsub.s32 0, %v2720
      %v2722 = vrot.slane %v2718, %v2721
      %v2723 = vmul.f32 %v2717, %v2722
      %v2724 = vld [vmem:[%s2 + $0xe8] sm:$0x1]
      %v2725 = vlaneseq
      %v2726 = vshrl.u32 %v2725, 7
      %v2727 = vsub.s32 0, %v2726
      %v2728 = vrot.slane %v2724, %v2727
      %v2729 = vadd.f32 %v2723, %v2728
      %v2730 = vld [vmem:[%s2 + $0xf0] sm:$0xff]
      %v2731 = vld [vmem:[%s2 + $0xf8] sm:$0xff]
      %v2732 = vld [vmem:[%s2 + $0x100] sm:$0xff]
      %v2733 = vld [vmem:[%s2 + $0x108] sm:$0xff]
      %v2734 = vpack.c.bf16 %v2729, %v2729
      %v2735 = vpack.c.bf16 %v2731, %v2730
      %v2736 = vpack.c.bf16 %v2733, %v2732
      %v2737 = vld [vmem:[%s2 + $0x110] sm:$0x1]
      %v2738 = vlaneseq
      %v2739 = vshrl.u32 %v2738, 7
      %v2740 = vsub.s32 0, %v2739
      %v2741 = vrot.slane %v2737, %v2740
      %v2743 = vsel %vm255, %v2734, 0
      %2745 = vmatprep.subr.bf16.mxu0 0
      %2746 = vmatpush1.bf16.msra.mxu0 %v2735
      %2747 = vmatprep.subr.bf16.mxu0 0
      %2748 = vmatpush1.bf16.msra.mxu0 %v2736
      %2749 = vmatprep.subr.bf16.mxu0 0
      %2750 = vmatpush1.bf16.msra.mxu0 0
      %2751 = vmatprep.subr.bf16.mxu0 0
      %2752 = vmatpush1.bf16.msra.mxu0 0
      %2753 = vmatprep.subr.bf16.mxu0 0
      %2754 = vmatpush1.bf16.msra.mxu0 0
      %2755 = vmatprep.subr.bf16.mxu0 0
      %2756 = vmatpush1.bf16.msra.mxu0 0
      %2757 = vmatprep.subr.bf16.mxu0 0
      %2758 = vmatpush1.bf16.msra.mxu0 0
      %2759 = vmatprep.subr.bf16.mxu0 0
      %2760 = vmatpush1.bf16.msra.mxu0 0
      %2761 = vmatprep.subr.bf16.mxu0 0
      %2762 = vmatpush1.bf16.msra.mxu0 0
      %2763 = vmatprep.subr.bf16.mxu0 0
      %2764 = vmatpush1.bf16.msra.mxu0 0
      %2765 = vmatprep.subr.bf16.mxu0 0
      %2766 = vmatpush1.bf16.msra.mxu0 0
      %2767 = vmatprep.subr.bf16.mxu0 0
      %2768 = vmatpush1.bf16.msra.mxu0 0
      %2769 = vmatprep.subr.bf16.mxu0 0
      %2770 = vmatpush1.bf16.msra.mxu0 0
      %2771 = vmatprep.subr.bf16.mxu0 0
      %2772 = vmatpush1.bf16.msra.mxu0 0
      %2773 = vmatprep.subr.bf16.mxu0 0
      %2774 = vmatpush1.bf16.msra.mxu0 0
      %2775 = vmatprep.subr.bf16.mxu0 0
      %2776 = vmatpush1.bf16.msra.mxu0 0
      %2777 = vmatprep.mubr.bf16.mxu0 0
      %2778 = vmatmul.mubr.bf16.gmra.mrb[0].mxu0 %v2743
      %v2779 = vpop.f32.mrb[0].mxu0
      %v2780 = vadd.f32 %v2741, %v2779
      %v2781 = vpop.f32.mrb[0].mxu0
      %v2782 = vpop.f32.mrb[0].mxu0
      %v2783 = vpop.f32.mrb[0].mxu0
      %2784 = vdwg.mxu0
      %2785 = vst [vmem:[%s188] sm:$0xff] %v2780
      %p2786 = scmp.lt.s32.totalorder %s14, 1
      %s2787 = scalar_select %p2786, %s14, 1
      %s2788 = smul.addr %s2787, 8
      %s2789 = scalar_lea.vmem %s3, %s2788
      // Predicated region
      $region33: #{model_forward.1} parent=31 // pred_check
        %p2790 = pneg %p105
      $region34: #{model_forward.1} parent=31 // pred_check_branch
        %2792 = sbr.rel (%p2790) target = $region36
      $region35: #{model_forward.1} parent=31 // pred_region
        _
      $region36: #{model_forward.1} parent=31 // pred_fallthru
        _
    $region32: #{model_forward.1} parent=5 // pred_fallthru
      _
    %p2793 = scmp.le.s32.totalorder 2, %s9
    // Predicated region
    $region37: #{model_forward.1} parent=5 // pred_check
      %p2794 = pneg %p2793
    $region38: #{model_forward.1} parent=5 // pred_check_branch
      %2796 = sbr.rel (%p2794) target = $region40
    $region39: #{model_forward.1} parent=5 // pred_region
      %s2797 = ssub.s32 %s9, 2
      // Predicated region
      $region41: #{model_forward.1} parent=39 // pred_check
        %p2798 = pneg %p111
      $region42: #{model_forward.1} parent=39 // pred_check_branch
        %2800 = sbr.rel (%p2798) target = $region44
      $region43: #{model_forward.1} parent=39 // pred_region
        %p2801 = scmp.lt.s32.totalorder %s15, 1
        %s2802 = scalar_select %p2801, %s15, 1
        %s2803 = smul.addr %s2802, 8
        %s2804 = scalar_lea.vmem %s3, %s2803
      $region44: #{model_forward.1} parent=39 // pred_fallthru
        _
    $region40: #{model_forward.1} parent=5 // pred_fallthru
      _
  $region6: #{model_forward.1} parent=0 // loop_footer
    %s13 = sadd.s32 1, %s9
  $region7: #{model_forward.1} parent=0 // loop_footer_branch
    %8 = sbr.rel target = $region3
  $region8: #{model_forward.1} parent=0 // loop_exit
    _

</llo_original>
